<compile_context>
chip_gen: v5e
topology: v5e:2x2
jax: 0.10.0
libtpu: 0.0.40
codegen_flags: <defaults>
</compile_context>

<pallas_src>
import functools
import math

import jax
import jax.numpy as jnp
from jax.experimental import pallas as pl
from jax.experimental.pallas import tpu as pltpu

_EPS = 1e-5


# ----------------------------------------------------------------------------
# small helpers
# ----------------------------------------------------------------------------
def _resident(shape):
    """Whole-array VMEM-resident BlockSpec (same block for every grid step)."""
    zeros = (0,) * len(shape)
    return pl.BlockSpec(tuple(shape), lambda *_: zeros)


def _ln_f32(x, g, b, eps):
    mu = jnp.mean(x, axis=-1, keepdims=True)
    xc = x - mu
    var = jnp.mean(xc * xc, axis=-1, keepdims=True)
    return xc * jax.lax.rsqrt(var + eps) * g + b


def _softmax_rows(s):
    s = s - jnp.max(s, axis=-1, keepdims=True)
    e = jnp.exp(s)
    return e * pl.reciprocal(jnp.sum(e, axis=-1, keepdims=True), approx=True)


# ----------------------------------------------------------------------------
# Pallas kernels
# ----------------------------------------------------------------------------
def _conv_pool_relu_kernel(p0_ref, p1_ref, w_ref, b_ref, o_ref):
    # p0[p] = [x[2p], x[2p+1]],  p1[p] = [x[2p+1], x[2p+2]]   (concat over channels)
    # y[t]  = [x[t], x[t+1]] @ Wf + b ; out[p] = relu(max(y[2p], y[2p+1]))
    w = w_ref[...]
    b = b_ref[...]
    ye = jnp.dot(p0_ref[0], w, preferred_element_type=jnp.float32) + b
    yo = jnp.dot(p1_ref[0], w, preferred_element_type=jnp.float32) + b
    o_ref[0] = jnp.maximum(jnp.maximum(ye, yo), 0.0).astype(o_ref.dtype)


def _encoder_layer_kernel(x_ref, wqkv_ref, bqkv_ref, wo_ref, bo_ref,
                          g1_ref, bb1_ref, w1_ref, fb1_ref, w2_ref, fb2_ref,
                          g2_ref, bb2_ref, o_ref, *, n_head, d_k, d_v, eps):
    # Whole encoder layer for one batch element, fully in VMEM.
    # dropout is eval-mode identity (deterministic forward).
    x = x_ref[0].astype(jnp.float32)                                    # (L, D)
    qkv = jnp.dot(x, wqkv_ref[...], preferred_element_type=jnp.float32) + bqkv_ref[...]
    hdk = n_head * d_k
    scale = 1.0 / math.sqrt(d_k)
    attn = jnp.zeros(x.shape, jnp.float32)
    for h in range(n_head):                                             # static unroll
        q = qkv[:, h * d_k:(h + 1) * d_k]                               # (L, dk)
        k = qkv[:, hdk + h * d_k: hdk + (h + 1) * d_k]                  # (L, dk)
        v = qkv[:, 2 * hdk + h * d_v: 2 * hdk + (h + 1) * d_v]          # (L, dv)
        s = jax.lax.dot_general(q, k, (((1,), (1,)), ((), ())),
                                preferred_element_type=jnp.float32) * scale
        p = _softmax_rows(s)
        o_h = jnp.dot(p, v, preferred_element_type=jnp.float32)         # (L, dv)
        # accumulate directly into the output projection (avoids lane concat)
        attn = attn + jnp.dot(o_h, wo_ref[h * d_v:(h + 1) * d_v, :],
                              preferred_element_type=jnp.float32)
    attn = attn + bo_ref[...]
    x1 = _ln_f32(attn + x, g1_ref[...], bb1_ref[...], eps)
    hmid = jnp.dot(x1, w1_ref[...], preferred_element_type=jnp.float32) + fb1_ref[...]
    hmid = jnp.maximum(hmid, 0.0)
    ff = jnp.dot(hmid, w2_ref[...], preferred_element_type=jnp.float32) + fb2_ref[...]
    x2 = _ln_f32(ff + x1, g2_ref[...], bb2_ref[...], eps)
    o_ref[0] = x2.astype(o_ref.dtype)


def _task_head_kernel(x_ref, q_ref, wkv_ref, bkv_ref, wo_ref, bo_ref,
                      lng_ref, lnb_ref, w1_ref, b1_ref, w2_ref, b2_ref,
                      w3_ref, b3_ref, o_ref, *, n_head, d_k, d_v, eps):
    # TODO(synk): EncoderTaskLayer2 source is not in the prompt; implemented as
    # learned-query multi-head attention pooling (attn_flag=False -> output only),
    # followed by the fused 32->200->200->out head MLP.
    x = x_ref[0].astype(jnp.float32)                                    # (L, D)
    kv = jnp.dot(x, wkv_ref[...], preferred_element_type=jnp.float32) + bkv_ref[...]
    hdk = n_head * d_k
    scale = 1.0 / math.sqrt(d_k)
    q_all = q_ref[...]                                                  # (1, H*dk)
    d_model = wo_ref.shape[1]
    pooled = jnp.zeros((1, d_model), jnp.float32)
    for h in range(n_head):
        qh = q_all[:, h * d_k:(h + 1) * d_k]                            # (1, dk)
        kh = kv[:, h * d_k:(h + 1) * d_k]                               # (L, dk)
        vh = kv[:, hdk + h * d_v: hdk + (h + 1) * d_v]                  # (L, dv)
        s = jax.lax.dot_general(qh, kh, (((1,), (1,)), ((), ())),
                                preferred_element_type=jnp.float32) * scale   # (1, L)
        p = _softmax_rows(s)
        oh = jnp.dot(p, vh, preferred_element_type=jnp.float32)         # (1, dv)
        pooled = pooled + jnp.dot(oh, wo_ref[h * d_v:(h + 1) * d_v, :],
                                  preferred_element_type=jnp.float32)
    pooled = pooled + bo_ref[...]
    pooled = _ln_f32(pooled, lng_ref[...], lnb_ref[...], eps)           # (1, D)
    h1 = jnp.maximum(jnp.dot(pooled, w1_ref[...],
                             preferred_element_type=jnp.float32) + b1_ref[...], 0.0)
    h2 = jnp.maximum(jnp.dot(h1, w2_ref[...],
                             preferred_element_type=jnp.float32) + b2_ref[...], 0.0)
    out = jnp.dot(h2, w3_ref[...], preferred_element_type=jnp.float32) + b3_ref[...]
    o_ref[0] = out.astype(o_ref.dtype)                                  # (1, out)


# ----------------------------------------------------------------------------
# Pallas wrappers (one fused launch each)
# ----------------------------------------------------------------------------
def conv_pool_relu(x, w_flat, b_row):
    """x:(B,L,Cin) NLC; w_flat:(2*Cin,Cout); b_row:(1,Cout).
    Fused Conv1d(k=2) + MaxPool1d(2) + ReLU, specialized to kernel=pool=2."""
    B, L, Cin = x.shape
    Cout = w_flat.shape[1]
    Lout = L - 1
    Lp = Lout // 2
    # contiguous slices + free reshapes: pair0[p]=[x[2p],x[2p+1]], pair1[p]=[x[2p+1],x[2p+2]]
    p0 = x[:, :2 * Lp, :].reshape(B, Lp, 2 * Cin)
    p1 = x[:, 1:2 * Lp + 1, :].reshape(B, Lp, 2 * Cin)
    return pl.pallas_call(
        _conv_pool_relu_kernel,
        out_shape=jax.ShapeDtypeStruct((B, Lp, Cout), jnp.float32),
        grid=(B,),
        in_specs=[
            pl.BlockSpec((1, Lp, 2 * Cin), lambda b: (b, 0, 0)),
            pl.BlockSpec((1, Lp, 2 * Cin), lambda b: (b, 0, 0)),
            _resident(w_flat.shape),
            _resident(b_row.shape),
        ],
        out_specs=pl.BlockSpec((1, Lp, Cout), lambda b: (b, 0, 0)),
        compiler_params=pltpu.CompilerParams(dimension_semantics=("parallel",)),
    )(p0, p1, w_flat, b_row)


def encoder_layer(x, p):
    B, L, D = x.shape
    kernel = functools.partial(_encoder_layer_kernel, n_head=p["n_head"],
                               d_k=p["d_k"], d_v=p["d_v"], eps=_EPS)
    args = [x, p["w_qkv"], p["b_qkv"], p["w_o"], p["b_o"],
            p["ln1_g"], p["ln1_b"], p["ffn_w1"], p["ffn_b1"],
            p["ffn_w2"], p["ffn_b2"], p["ln2_g"], p["ln2_b"]]
    in_specs = [pl.BlockSpec((1, L, D), lambda b: (b, 0, 0))]
    in_specs += [_resident(a.shape) for a in args[1:]]
    return pl.pallas_call(
        kernel,
        out_shape=jax.ShapeDtypeStruct((B, L, D), jnp.float32),
        grid=(B,),
        in_specs=in_specs,
        out_specs=pl.BlockSpec((1, L, D), lambda b: (b, 0, 0)),
        compiler_params=pltpu.CompilerParams(dimension_semantics=("parallel",)),
    )(*args)


def task_and_head(x, p):
    B, L, D = x.shape
    out_size = p["head_w3"].shape[1]
    kernel = functools.partial(_task_head_kernel, n_head=p["n_head"],
                               d_k=p["d_k"], d_v=p["d_v"], eps=_EPS)
    args = [x, p["q_proj"], p["w_kv"], p["b_kv"], p["w_o"], p["b_o"],
            p["ln_g"], p["ln_b"], p["head_w1"], p["head_b1"],
            p["head_w2"], p["head_b2"], p["head_w3"], p["head_b3"]]
    in_specs = [pl.BlockSpec((1, L, D), lambda b: (b, 0, 0))]
    in_specs += [_resident(a.shape) for a in args[1:]]
    out3 = pl.pallas_call(
        kernel,
        out_shape=jax.ShapeDtypeStruct((B, 1, out_size), jnp.float32),
        grid=(B,),
        in_specs=in_specs,
        out_specs=pl.BlockSpec((1, 1, out_size), lambda b: (b, 0, 0)),
        compiler_params=pltpu.CompilerParams(dimension_semantics=("parallel",)),
    )(*args)
    return out3.reshape(B, out_size)


# ----------------------------------------------------------------------------
# Model forward (glue in JAX, compute in Pallas)
# ----------------------------------------------------------------------------
def transformer_net_forward(x_ncl, params, noise=None):
    if noise is not None:
        x_ncl = x_ncl + noise
    x = jnp.transpose(x_ncl, (0, 2, 1))                 # NCW -> NLC
    for i in (1, 2, 3):
        x = conv_pool_relu(x, params[f"conv{i}_w"], params[f"conv{i}_b"])
    # (equivalent of x.permute(0, 2, 1): we are already NLC)
    for layer in params["enc_layers"]:
        x = encoder_layer(x, layer)
    return task_and_head(x, params["task"])             # (B, output_size)


# ----------------------------------------------------------------------------
# One-time parameter preprocessing: QKV merge, conv weight flatten, (1,N) biases
# ----------------------------------------------------------------------------
def prepare_params(params):
    def row(b):
        return b.reshape(1, -1)

    prepped = {}
    for i in (1, 2, 3):
        W = params[f"conv{i}_w"]            # (Cout, Cin, k) PyTorch layout, k == 2
        b = params[f"conv{i}_b"]
        Cout, Cin, k = W.shape
        assert k == 2, "fused conv kernel is specialized to kernel_size=2"
        # Wf[j*Cin + c, o] = W[o, c, j]
        prepped[f"conv{i}_w"] = jnp.transpose(W, (2, 1, 0)).reshape(k * Cin, Cout)
        prepped[f"conv{i}_b"] = row(b)

    layers = []
    for lyr in params["enc_layers"]:
        a = lyr["attn"]
        layers.append({
            "n_head": a["n_head"], "d_k": a["d_k"], "d_v": a["d_v"],
            "w_qkv": jnp.concatenate([a["w_q"], a["w_k"], a["w_v"]], axis=1),
            "b_qkv": row(jnp.concatenate([a["b_q"], a["b_k"], a["b_v"]])),
            "w_o": a["w_o"], "b_o": row(a["b_o"]),
            "ln1_g": row(lyr["ln1_g"]), "ln1_b": row(lyr["ln1_b"]),
            "ffn_w1": lyr["ffn_w1"], "ffn_b1": row(lyr["ffn_b1"]),
            "ffn_w2": lyr["ffn_w2"], "ffn_b2": row(lyr["ffn_b2"]),
            "ln2_g": row(lyr["ln2_g"]), "ln2_b": row(lyr["ln2_b"]),
        })
    prepped["enc_layers"] = layers

    t = params["task"]
    prepped["task"] = {
        "n_head": t["n_head"], "d_k": t["d_k"], "d_v": t["d_v"],
        # query projection depends only on params -> precompute once
        "q_proj": t["query"] @ t["w_q"] + row(t["b_q"]),
        "w_kv": jnp.concatenate([t["w_k"], t["w_v"]], axis=1),
        "b_kv": row(jnp.concatenate([t["b_k"], t["b_v"]])),
        "w_o": t["w_o"], "b_o": row(t["b_o"]),
        "ln_g": row(t["ln_g"]), "ln_b": row(t["ln_b"]),
        "head_w1": params["head_w1"], "head_b1": row(params["head_b1"]),
        "head_w2": params["head_w2"], "head_b2": row(params["head_b2"]),
        "head_w3": params["head_w3"], "head_b3": row(params["head_b3"]),
    }
    return prepped


# ----------------------------------------------------------------------------
# Deterministic parameter init (matches original module defaults)
# ----------------------------------------------------------------------------
def init_params(key, input_size=4, hidden=32, output_size=5, n_layers=2,
                kernel_size=2, n_heads=4, d_k=8, d_v=8, inner=16):
    keys = iter(jax.random.split(key, 128))

    def dense(kin, kout):
        w = jax.random.normal(next(keys), (kin, kout), jnp.float32) / jnp.sqrt(kin)
        b = jnp.zeros((kout,), jnp.float32)
        return w, b

    def conv(cin, cout, k):
        w = jax.random.normal(next(keys), (cout, cin, k), jnp.float32) / jnp.sqrt(cin * k)
        b = jnp.zeros((cout,), jnp.float32)
        return w, b

    def attn_params():
        p = {"n_head": n_heads, "d_k": d_k, "d_v": d_v}
        p["w_q"], p["b_q"] = dense(hidden, n_heads * d_k)
        p["w_k"], p["b_k"] = dense(hidden, n_heads * d_k)
        p["w_v"], p["b_v"] = dense(hidden, n_heads * d_v)
        p["w_o"], p["b_o"] = dense(n_heads * d_v, hidden)
        return p

    params = {}
    params["conv1_w"], params["conv1_b"] = conv(input_size, hidden, kernel_size)
    params["conv2_w"], params["conv2_b"] = conv(hidden, hidden, kernel_size)
    params["conv3_w"], params["conv3_b"] = conv(hidden, hidden, kernel_size)

    enc_layers = []
    for _ in range(n_layers):
        layer = {"attn": attn_params()}
        layer["ln1_g"] = jnp.ones((hidden,), jnp.float32)
        layer["ln1_b"] = jnp.zeros((hidden,), jnp.float32)
        layer["ffn_w1"], layer["ffn_b1"] = dense(hidden, inner)
        layer["ffn_w2"], layer["ffn_b2"] = dense(inner, hidden)
        layer["ln2_g"] = jnp.ones((hidden,), jnp.float32)
        layer["ln2_b"] = jnp.zeros((hidden,), jnp.float32)
        enc_layers.append(layer)
    params["enc_layers"] = enc_layers

    task = attn_params()
    task["query"] = jax.random.normal(next(keys), (1, hidden), jnp.float32) / jnp.sqrt(hidden)
    task["ln_g"] = jnp.ones((hidden,), jnp.float32)
    task["ln_b"] = jnp.zeros((hidden,), jnp.float32)
    params["task"] = task

    params["head_w1"], params["head_b1"] = dense(hidden, 200)
    params["head_w2"], params["head_b2"] = dense(200, 200)
    params["head_w3"], params["head_b3"] = dense(200, output_size)
    return params


# ----------------------------------------------------------------------------
if __name__ == "__main__":
    key = jax.random.PRNGKey(0)
    pkey, xkey = jax.random.split(key)

    B, C_IN, L = 2, 4, 128           # small stand-in for the 3072-sample ECG
    HIDDEN, OUT = 32, 5
    raw_params = init_params(pkey, input_size=C_IN, hidden=HIDDEN, output_size=OUT)
    params = prepare_params(raw_params)

    x = jax.random.normal(xkey, (B, C_IN, L), jnp.float32)   # PyTorch NCW layout

    fwd = jax.jit(lambda xx: transformer_net_forward(xx, params))
    out = jax.block_until_ready(fwd(x))

    assert out.shape == (B, OUT), out.shape
    assert bool(jnp.all(jnp.isfinite(out)))
    print("KERNEL_OK")
</pallas_src>

<mosaic_0001>
module attributes {stable_mosaic.version = 11 : i64} {
  func.func @_conv_pool_relu_kernel(%arg0: i32, %arg1: memref<1x15x64xf32, #tpu.memory_space<vmem>>, %arg2: memref<1x15x64xf32, #tpu.memory_space<vmem>>, %arg3: memref<64x32xf32, #tpu.memory_space<vmem>>, %arg4: memref<1x32xf32, #tpu.memory_space<vmem>>, %arg5: memref<1x15x32xf32, #tpu.memory_space<vmem>>) attributes {dimension_semantics = [#tpu.dimension_semantics<parallel>], iteration_bounds = array<i64: 2>, scalar_prefetch = 0 : i64, scratch_operands = 0 : i64, tpu.core_type = #tpu.core_type<tc>, window_params = [{transform_indices = @transform_0, window_bounds = array<i64: 1, 15, 64>}, {transform_indices = @transform_1, window_bounds = array<i64: 1, 15, 64>}, {pipeline_mode = #tpu.pipeline_mode<synchronous>, transform_indices = @transform_2, window_bounds = array<i64: 64, 32>}, {pipeline_mode = #tpu.pipeline_mode<synchronous>, transform_indices = @transform_3, window_bounds = array<i64: 1, 32>}, {transform_indices = @transform_4, window_bounds = array<i64: 1, 15, 32>}]} {
    %c0 = arith.constant 0 : index
    %c0_0 = arith.constant 0 : index
    %0 = vector.load %arg3[%c0, %c0_0] : memref<64x32xf32, #tpu.memory_space<vmem>>, vector<64x32xf32>
    %c0_1 = arith.constant 0 : index
    %c0_2 = arith.constant 0 : index
    %1 = vector.load %arg4[%c0_1, %c0_2] : memref<1x32xf32, #tpu.memory_space<vmem>>, vector<1x32xf32>
    %c0_3 = arith.constant 0 : index
    %c0_4 = arith.constant 0 : index
    %c0_5 = arith.constant 0 : index
    %2 = vector.load %arg1[%c0_3, %c0_4, %c0_5] : memref<1x15x64xf32, #tpu.memory_space<vmem>>, vector<1x15x64xf32>
    %3 = vector.shape_cast %2 : vector<1x15x64xf32> to vector<15x64xf32>
    %cst = arith.constant dense<0.000000e+00> : vector<15x32xf32>
    %4 = tpu.matmul %3, %0, %cst {dimension_numbers = #tpu.dot_dimension_numbers<[1], [0], [0], [1], [0, 0, 1, 1], [], []>} : vector<15x64xf32>, vector<64x32xf32>, vector<15x32xf32> -> vector<15x32xf32>
    %5 = vector.broadcast %1 : vector<1x32xf32> to vector<15x32xf32>
    %6 = arith.addf %4, %5 : vector<15x32xf32>
    %c0_6 = arith.constant 0 : index
    %c0_7 = arith.constant 0 : index
    %c0_8 = arith.constant 0 : index
    %7 = vector.load %arg2[%c0_6, %c0_7, %c0_8] : memref<1x15x64xf32, #tpu.memory_space<vmem>>, vector<1x15x64xf32>
    %8 = vector.shape_cast %7 : vector<1x15x64xf32> to vector<15x64xf32>
    %cst_9 = arith.constant dense<0.000000e+00> : vector<15x32xf32>
    %9 = tpu.matmul %8, %0, %cst_9 {dimension_numbers = #tpu.dot_dimension_numbers<[1], [0], [0], [1], [0, 0, 1, 1], [], []>} : vector<15x64xf32>, vector<64x32xf32>, vector<15x32xf32> -> vector<15x32xf32>
    %10 = vector.broadcast %1 : vector<1x32xf32> to vector<15x32xf32>
    %11 = arith.addf %9, %10 : vector<15x32xf32>
    %12 = arith.maximumf %6, %11 : vector<15x32xf32>
    %cst_10 = arith.constant 0.000000e+00 : f32
    %13 = vector.broadcast %cst_10 : f32 to vector<15x32xf32>
    %14 = arith.maximumf %12, %13 : vector<15x32xf32>
    %c0_11 = arith.constant 0 : index
    %c0_12 = arith.constant 0 : index
    %c0_13 = arith.constant 0 : index
    %15 = vector.load %arg5[%c0_11, %c0_12, %c0_13] : memref<1x15x32xf32, #tpu.memory_space<vmem>>, vector<1x15x32xf32>
    %16 = vector.shape_cast %15 : vector<1x15x32xf32> to vector<15x32xf32>
    %17 = vector.shape_cast %14 : vector<15x32xf32> to vector<1x15x32xf32>
    tpu.vector_store %arg5[%c0_11, %c0_12, %c0_13], %17 {strides = array<i32>} : memref<1x15x32xf32, #tpu.memory_space<vmem>>, vector<1x15x32xf32>,
    return
  }
  func.func @transform_0(%arg0: i32) -> (i32, i32, i32) {
    %c0_i32 = arith.constant 0 : i32
    %c0_i32_0 = arith.constant 0 : i32
    %c0_i32_1 = arith.constant 0 : i32
    return %arg0, %c0_i32, %c0_i32_0 : i32, i32, i32
  }
  func.func @transform_1(%arg0: i32) -> (i32, i32, i32) {
    %c0_i32 = arith.constant 0 : i32
    %c0_i32_0 = arith.constant 0 : i32
    %c0_i32_1 = arith.constant 0 : i32
    return %arg0, %c0_i32, %c0_i32_0 : i32, i32, i32
  }
  func.func @transform_2(%arg0: i32) -> (i32, i32) {
    %c0_i32 = arith.constant 0 : i32
    %c0_i32_0 = arith.constant 0 : i32
    %c0_i32_1 = arith.constant 0 : i32
    return %c0_i32, %c0_i32_0 : i32, i32
  }
  func.func @transform_3(%arg0: i32) -> (i32, i32) {
    %c0_i32 = arith.constant 0 : i32
    %c0_i32_0 = arith.constant 0 : i32
    %c0_i32_1 = arith.constant 0 : i32
    return %c0_i32, %c0_i32_0 : i32, i32
  }
  func.func @transform_4(%arg0: i32) -> (i32, i32, i32) {
    %c0_i32 = arith.constant 0 : i32
    %c0_i32_0 = arith.constant 0 : i32
    %c0_i32_1 = arith.constant 0 : i32
    return %arg0, %c0_i32, %c0_i32_0 : i32, i32, i32
  }
}

module attributes {stable_mosaic.version = 11 : i64} {
  func.func @_conv_pool_relu_kernel(%arg0: i32, %arg1: memref<1x31x64xf32, #tpu.memory_space<vmem>>, %arg2: memref<1x31x64xf32, #tpu.memory_space<vmem>>, %arg3: memref<64x32xf32, #tpu.memory_space<vmem>>, %arg4: memref<1x32xf32, #tpu.memory_space<vmem>>, %arg5: memref<1x31x32xf32, #tpu.memory_space<vmem>>) attributes {dimension_semantics = [#tpu.dimension_semantics<parallel>], iteration_bounds = array<i64: 2>, scalar_prefetch = 0 : i64, scratch_operands = 0 : i64, tpu.core_type = #tpu.core_type<tc>, window_params = [{transform_indices = @transform_0, window_bounds = array<i64: 1, 31, 64>}, {transform_indices = @transform_1, window_bounds = array<i64: 1, 31, 64>}, {pipeline_mode = #tpu.pipeline_mode<synchronous>, transform_indices = @transform_2, window_bounds = array<i64: 64, 32>}, {pipeline_mode = #tpu.pipeline_mode<synchronous>, transform_indices = @transform_3, window_bounds = array<i64: 1, 32>}, {transform_indices = @transform_4, window_bounds = array<i64: 1, 31, 32>}]} {
    %c0 = arith.constant 0 : index
    %c0_0 = arith.constant 0 : index
    %0 = vector.load %arg3[%c0, %c0_0] : memref<64x32xf32, #tpu.memory_space<vmem>>, vector<64x32xf32>
    %c0_1 = arith.constant 0 : index
    %c0_2 = arith.constant 0 : index
    %1 = vector.load %arg4[%c0_1, %c0_2] : memref<1x32xf32, #tpu.memory_space<vmem>>, vector<1x32xf32>
    %c0_3 = arith.constant 0 : index
    %c0_4 = arith.constant 0 : index
    %c0_5 = arith.constant 0 : index
    %2 = vector.load %arg1[%c0_3, %c0_4, %c0_5] : memref<1x31x64xf32, #tpu.memory_space<vmem>>, vector<1x31x64xf32>
    %3 = vector.shape_cast %2 : vector<1x31x64xf32> to vector<31x64xf32>
    %cst = arith.constant dense<0.000000e+00> : vector<31x32xf32>
    %4 = tpu.matmul %3, %0, %cst {dimension_numbers = #tpu.dot_dimension_numbers<[1], [0], [0], [1], [0, 0, 1, 1], [], []>} : vector<31x64xf32>, vector<64x32xf32>, vector<31x32xf32> -> vector<31x32xf32>
    %5 = vector.broadcast %1 : vector<1x32xf32> to vector<31x32xf32>
    %6 = arith.addf %4, %5 : vector<31x32xf32>
    %c0_6 = arith.constant 0 : index
    %c0_7 = arith.constant 0 : index
    %c0_8 = arith.constant 0 : index
    %7 = vector.load %arg2[%c0_6, %c0_7, %c0_8] : memref<1x31x64xf32, #tpu.memory_space<vmem>>, vector<1x31x64xf32>
    %8 = vector.shape_cast %7 : vector<1x31x64xf32> to vector<31x64xf32>
    %cst_9 = arith.constant dense<0.000000e+00> : vector<31x32xf32>
    %9 = tpu.matmul %8, %0, %cst_9 {dimension_numbers = #tpu.dot_dimension_numbers<[1], [0], [0], [1], [0, 0, 1, 1], [], []>} : vector<31x64xf32>, vector<64x32xf32>, vector<31x32xf32> -> vector<31x32xf32>
    %10 = vector.broadcast %1 : vector<1x32xf32> to vector<31x32xf32>
    %11 = arith.addf %9, %10 : vector<31x32xf32>
    %12 = arith.maximumf %6, %11 : vector<31x32xf32>
    %cst_10 = arith.constant 0.000000e+00 : f32
    %13 = vector.broadcast %cst_10 : f32 to vector<31x32xf32>
    %14 = arith.maximumf %12, %13 : vector<31x32xf32>
    %c0_11 = arith.constant 0 : index
    %c0_12 = arith.constant 0 : index
    %c0_13 = arith.constant 0 : index
    %15 = vector.load %arg5[%c0_11, %c0_12, %c0_13] : memref<1x31x32xf32, #tpu.memory_space<vmem>>, vector<1x31x32xf32>
    %16 = vector.shape_cast %15 : vector<1x31x32xf32> to vector<31x32xf32>
    %17 = vector.shape_cast %14 : vector<31x32xf32> to vector<1x31x32xf32>
    tpu.vector_store %arg5[%c0_11, %c0_12, %c0_13], %17 {strides = array<i32>} : memref<1x31x32xf32, #tpu.memory_space<vmem>>, vector<1x31x32xf32>,
    return
  }
  func.func @transform_0(%arg0: i32) -> (i32, i32, i32) {
    %c0_i32 = arith.constant 0 : i32
    %c0_i32_0 = arith.constant 0 : i32
    %c0_i32_1 = arith.constant 0 : i32
    return %arg0, %c0_i32, %c0_i32_0 : i32, i32, i32
  }
  func.func @transform_1(%arg0: i32) -> (i32, i32, i32) {
    %c0_i32 = arith.constant 0 : i32
    %c0_i32_0 = arith.constant 0 : i32
    %c0_i32_1 = arith.constant 0 : i32
    return %arg0, %c0_i32, %c0_i32_0 : i32, i32, i32
  }
  func.func @transform_2(%arg0: i32) -> (i32, i32) {
    %c0_i32 = arith.constant 0 : i32
    %c0_i32_0 = arith.constant 0 : i32
    %c0_i32_1 = arith.constant 0 : i32
    return %c0_i32, %c0_i32_0 : i32, i32
  }
  func.func @transform_3(%arg0: i32) -> (i32, i32) {
    %c0_i32 = arith.constant 0 : i32
    %c0_i32_0 = arith.constant 0 : i32
    %c0_i32_1 = arith.constant 0 : i32
    return %c0_i32, %c0_i32_0 : i32, i32
  }
  func.func @transform_4(%arg0: i32) -> (i32, i32, i32) {
    %c0_i32 = arith.constant 0 : i32
    %c0_i32_0 = arith.constant 0 : i32
    %c0_i32_1 = arith.constant 0 : i32
    return %arg0, %c0_i32, %c0_i32_0 : i32, i32, i32
  }
}

module attributes {stable_mosaic.version = 11 : i64} {
  func.func @_conv_pool_relu_kernel(%arg0: i32, %arg1: memref<1x63x8xf32, #tpu.memory_space<vmem>>, %arg2: memref<1x63x8xf32, #tpu.memory_space<vmem>>, %arg3: memref<8x32xf32, #tpu.memory_space<vmem>>, %arg4: memref<1x32xf32, #tpu.memory_space<vmem>>, %arg5: memref<1x63x32xf32, #tpu.memory_space<vmem>>) attributes {dimension_semantics = [#tpu.dimension_semantics<parallel>], iteration_bounds = array<i64: 2>, scalar_prefetch = 0 : i64, scratch_operands = 0 : i64, tpu.core_type = #tpu.core_type<tc>, window_params = [{transform_indices = @transform_0, window_bounds = array<i64: 1, 63, 8>}, {transform_indices = @transform_1, window_bounds = array<i64: 1, 63, 8>}, {pipeline_mode = #tpu.pipeline_mode<synchronous>, transform_indices = @transform_2, window_bounds = array<i64: 8, 32>}, {pipeline_mode = #tpu.pipeline_mode<synchronous>, transform_indices = @transform_3, window_bounds = array<i64: 1, 32>}, {transform_indices = @transform_4, window_bounds = array<i64: 1, 63, 32>}]} {
    %c0 = arith.constant 0 : index
    %c0_0 = arith.constant 0 : index
    %0 = vector.load %arg3[%c0, %c0_0] : memref<8x32xf32, #tpu.memory_space<vmem>>, vector<8x32xf32>
    %c0_1 = arith.constant 0 : index
    %c0_2 = arith.constant 0 : index
    %1 = vector.load %arg4[%c0_1, %c0_2] : memref<1x32xf32, #tpu.memory_space<vmem>>, vector<1x32xf32>
    %c0_3 = arith.constant 0 : index
    %c0_4 = arith.constant 0 : index
    %c0_5 = arith.constant 0 : index
    %2 = vector.load %arg1[%c0_3, %c0_4, %c0_5] : memref<1x63x8xf32, #tpu.memory_space<vmem>>, vector<1x63x8xf32>
    %3 = vector.shape_cast %2 : vector<1x63x8xf32> to vector<63x8xf32>
    %cst = arith.constant dense<0.000000e+00> : vector<63x32xf32>
    %4 = tpu.matmul %3, %0, %cst {dimension_numbers = #tpu.dot_dimension_numbers<[1], [0], [0], [1], [0, 0, 1, 1], [], []>} : vector<63x8xf32>, vector<8x32xf32>, vector<63x32xf32> -> vector<63x32xf32>
    %5 = vector.broadcast %1 : vector<1x32xf32> to vector<63x32xf32>
    %6 = arith.addf %4, %5 : vector<63x32xf32>
    %c0_6 = arith.constant 0 : index
    %c0_7 = arith.constant 0 : index
    %c0_8 = arith.constant 0 : index
    %7 = vector.load %arg2[%c0_6, %c0_7, %c0_8] : memref<1x63x8xf32, #tpu.memory_space<vmem>>, vector<1x63x8xf32>
    %8 = vector.shape_cast %7 : vector<1x63x8xf32> to vector<63x8xf32>
    %cst_9 = arith.constant dense<0.000000e+00> : vector<63x32xf32>
    %9 = tpu.matmul %8, %0, %cst_9 {dimension_numbers = #tpu.dot_dimension_numbers<[1], [0], [0], [1], [0, 0, 1, 1], [], []>} : vector<63x8xf32>, vector<8x32xf32>, vector<63x32xf32> -> vector<63x32xf32>
    %10 = vector.broadcast %1 : vector<1x32xf32> to vector<63x32xf32>
    %11 = arith.addf %9, %10 : vector<63x32xf32>
    %12 = arith.maximumf %6, %11 : vector<63x32xf32>
    %cst_10 = arith.constant 0.000000e+00 : f32
    %13 = vector.broadcast %cst_10 : f32 to vector<63x32xf32>
    %14 = arith.maximumf %12, %13 : vector<63x32xf32>
    %c0_11 = arith.constant 0 : index
    %c0_12 = arith.constant 0 : index
    %c0_13 = arith.constant 0 : index
    %15 = vector.load %arg5[%c0_11, %c0_12, %c0_13] : memref<1x63x32xf32, #tpu.memory_space<vmem>>, vector<1x63x32xf32>
    %16 = vector.shape_cast %15 : vector<1x63x32xf32> to vector<63x32xf32>
    %17 = vector.shape_cast %14 : vector<63x32xf32> to vector<1x63x32xf32>
    tpu.vector_store %arg5[%c0_11, %c0_12, %c0_13], %17 {strides = array<i32>} : memref<1x63x32xf32, #tpu.memory_space<vmem>>, vector<1x63x32xf32>,
    return
  }
  func.func @transform_0(%arg0: i32) -> (i32, i32, i32) {
    %c0_i32 = arith.constant 0 : i32
    %c0_i32_0 = arith.constant 0 : i32
    %c0_i32_1 = arith.constant 0 : i32
    return %arg0, %c0_i32, %c0_i32_0 : i32, i32, i32
  }
  func.func @transform_1(%arg0: i32) -> (i32, i32, i32) {
    %c0_i32 = arith.constant 0 : i32
    %c0_i32_0 = arith.constant 0 : i32
    %c0_i32_1 = arith.constant 0 : i32
    return %arg0, %c0_i32, %c0_i32_0 : i32, i32, i32
  }
  func.func @transform_2(%arg0: i32) -> (i32, i32) {
    %c0_i32 = arith.constant 0 : i32
    %c0_i32_0 = arith.constant 0 : i32
    %c0_i32_1 = arith.constant 0 : i32
    return %c0_i32, %c0_i32_0 : i32, i32
  }
  func.func @transform_3(%arg0: i32) -> (i32, i32) {
    %c0_i32 = arith.constant 0 : i32
    %c0_i32_0 = arith.constant 0 : i32
    %c0_i32_1 = arith.constant 0 : i32
    return %c0_i32, %c0_i32_0 : i32, i32
  }
  func.func @transform_4(%arg0: i32) -> (i32, i32, i32) {
    %c0_i32 = arith.constant 0 : i32
    %c0_i32_0 = arith.constant 0 : i32
    %c0_i32_1 = arith.constant 0 : i32
    return %arg0, %c0_i32, %c0_i32_0 : i32, i32, i32
  }
}

module attributes {stable_mosaic.version = 11 : i64} {
  func.func @_encoder_layer_kernel(%arg0: i32, %arg1: memref<1x15x32xf32, #tpu.memory_space<vmem>>, %arg2: memref<32x96xf32, #tpu.memory_space<vmem>>, %arg3: memref<1x96xf32, #tpu.memory_space<vmem>>, %arg4: memref<32x32xf32, #tpu.memory_space<vmem>>, %arg5: memref<1x32xf32, #tpu.memory_space<vmem>>, %arg6: memref<1x32xf32, #tpu.memory_space<vmem>>, %arg7: memref<1x32xf32, #tpu.memory_space<vmem>>, %arg8: memref<32x16xf32, #tpu.memory_space<vmem>>, %arg9: memref<1x16xf32, #tpu.memory_space<vmem>>, %arg10: memref<16x32xf32, #tpu.memory_space<vmem>>, %arg11: memref<1x32xf32, #tpu.memory_space<vmem>>, %arg12: memref<1x32xf32, #tpu.memory_space<vmem>>, %arg13: memref<1x32xf32, #tpu.memory_space<vmem>>, %arg14: memref<1x15x32xf32, #tpu.memory_space<vmem>>) attributes {dimension_semantics = [#tpu.dimension_semantics<parallel>], iteration_bounds = array<i64: 2>, scalar_prefetch = 0 : i64, scratch_operands = 0 : i64, tpu.core_type = #tpu.core_type<tc>, window_params = [{transform_indices = @transform_0, window_bounds = array<i64: 1, 15, 32>}, {pipeline_mode = #tpu.pipeline_mode<synchronous>, transform_indices = @transform_1, window_bounds = array<i64: 32, 96>}, {pipeline_mode = #tpu.pipeline_mode<synchronous>, transform_indices = @transform_2, window_bounds = array<i64: 1, 96>}, {pipeline_mode = #tpu.pipeline_mode<synchronous>, transform_indices = @transform_3, window_bounds = array<i64: 32, 32>}, {pipeline_mode = #tpu.pipeline_mode<synchronous>, transform_indices = @transform_4, window_bounds = array<i64: 1, 32>}, {pipeline_mode = #tpu.pipeline_mode<synchronous>, transform_indices = @transform_5, window_bounds = array<i64: 1, 32>}, {pipeline_mode = #tpu.pipeline_mode<synchronous>, transform_indices = @transform_6, window_bounds = array<i64: 1, 32>}, {pipeline_mode = #tpu.pipeline_mode<synchronous>, transform_indices = @transform_7, window_bounds = array<i64: 32, 16>}, {pipeline_mode = #tpu.pipeline_mode<synchronous>, transform_indices = @transform_8, window_bounds = array<i64: 1, 16>}, {pipeline_mode = #tpu.pipeline_mode<synchronous>, transform_indices = @transform_9, window_bounds = array<i64: 16, 32>}, {pipeline_mode = #tpu.pipeline_mode<synchronous>, transform_indices = @transform_10, window_bounds = array<i64: 1, 32>}, {pipeline_mode = #tpu.pipeline_mode<synchronous>, transform_indices = @transform_11, window_bounds = array<i64: 1, 32>}, {pipeline_mode = #tpu.pipeline_mode<synchronous>, transform_indices = @transform_12, window_bounds = array<i64: 1, 32>}, {transform_indices = @transform_13, window_bounds = array<i64: 1, 15, 32>}]} {
    %c0 = arith.constant 0 : index
    %c0_0 = arith.constant 0 : index
    %c0_1 = arith.constant 0 : index
    %0 = vector.load %arg1[%c0, %c0_0, %c0_1] : memref<1x15x32xf32, #tpu.memory_space<vmem>>, vector<1x15x32xf32>
    %1 = vector.shape_cast %0 : vector<1x15x32xf32> to vector<15x32xf32>
    %c0_2 = arith.constant 0 : index
    %c0_3 = arith.constant 0 : index
    %2 = vector.load %arg2[%c0_2, %c0_3] : memref<32x96xf32, #tpu.memory_space<vmem>>, vector<32x96xf32>
    %cst = arith.constant dense<0.000000e+00> : vector<15x96xf32>
    %3 = tpu.matmul %1, %2, %cst {dimension_numbers = #tpu.dot_dimension_numbers<[1], [0], [0], [1], [0, 0, 1, 1], [], []>} : vector<15x32xf32>, vector<32x96xf32>, vector<15x96xf32> -> vector<15x96xf32>
    %c0_4 = arith.constant 0 : index
    %c0_5 = arith.constant 0 : index
    %4 = vector.load %arg3[%c0_4, %c0_5] : memref<1x96xf32, #tpu.memory_space<vmem>>, vector<1x96xf32>
    %5 = vector.broadcast %4 : vector<1x96xf32> to vector<15x96xf32>
    %6 = arith.addf %3, %5 : vector<15x96xf32>
    %cst_6 = arith.constant 0.000000e+00 : f32
    %7 = vector.broadcast %cst_6 : f32 to vector<15x32xf32>
    %8 = vector.extract_strided_slice %6 {offsets = [0, 0], sizes = [15, 8], strides = [1, 1]} : vector<15x96xf32> to vector<15x8xf32>
    %9 = vector.extract_strided_slice %6 {offsets = [0, 32], sizes = [15, 8], strides = [1, 1]} : vector<15x96xf32> to vector<15x8xf32>
    %10 = vector.extract_strided_slice %6 {offsets = [0, 64], sizes = [15, 8], strides = [1, 1]} : vector<15x96xf32> to vector<15x8xf32>
    %cst_7 = arith.constant dense<0.000000e+00> : vector<15x15xf32>
    %11 = tpu.matmul %8, %9, %cst_7 {dimension_numbers = #tpu.dot_dimension_numbers<[1], [1], [0], [0], [0, 0, 1, 0], [], []>} : vector<15x8xf32>, vector<15x8xf32>, vector<15x15xf32> -> vector<15x15xf32>
    %cst_8 = arith.constant 0.353553385 : f32
    %12 = vector.broadcast %cst_8 : f32 to vector<15x15xf32>
    %13 = arith.mulf %11, %12 : vector<15x15xf32>
    %cst_9 = arith.constant dense<0xFF800000> : vector<15xf32>
    %14 = vector.multi_reduction <maximumf>, %13, %cst_9 [1] : vector<15x15xf32> to vector<15xf32>
    %15 = vector.shape_cast %14 : vector<15xf32> to vector<15x1xf32>
    %16 = vector.broadcast %15 : vector<15x1xf32> to vector<15x15xf32>
    %17 = arith.subf %13, %16 : vector<15x15xf32>
    %18 = math.exp %17 : vector<15x15xf32>
    %cst_10 = arith.constant dense<0.000000e+00> : vector<15xf32>
    %19 = vector.multi_reduction <add>, %18, %cst_10 [1] : vector<15x15xf32> to vector<15xf32>
    %20 = vector.shape_cast %19 : vector<15xf32> to vector<15x1xf32>
    %21 = tpu.reciprocal %20 {approx = true} : vector<15x1xf32> -> vector<15x1xf32>
    %22 = vector.broadcast %21 : vector<15x1xf32> to vector<15x15xf32>
    %23 = arith.mulf %18, %22 : vector<15x15xf32>
    %cst_11 = arith.constant dense<0.000000e+00> : vector<15x8xf32>
    %24 = tpu.matmul %23, %10, %cst_11 {dimension_numbers = #tpu.dot_dimension_numbers<[1], [0], [0], [1], [0, 0, 1, 1], [], []>} : vector<15x15xf32>, vector<15x8xf32>, vector<15x8xf32> -> vector<15x8xf32>
    %c0_12 = arith.constant 0 : index
    %c0_13 = arith.constant 0 : index
    %25 = vector.load %arg4[%c0_12, %c0_13] : memref<32x32xf32, #tpu.memory_space<vmem>>, vector<8x32xf32>
    %cst_14 = arith.constant dense<0.000000e+00> : vector<15x32xf32>
    %26 = tpu.matmul %24, %25, %cst_14 {dimension_numbers = #tpu.dot_dimension_numbers<[1], [0], [0], [1], [0, 0, 1, 1], [], []>} : vector<15x8xf32>, vector<8x32xf32>, vector<15x32xf32> -> vector<15x32xf32>
    %27 = arith.addf %7, %26 : vector<15x32xf32>
    %28 = vector.extract_strided_slice %6 {offsets = [0, 8], sizes = [15, 8], strides = [1, 1]} : vector<15x96xf32> to vector<15x8xf32>
    %29 = vector.extract_strided_slice %6 {offsets = [0, 40], sizes = [15, 8], strides = [1, 1]} : vector<15x96xf32> to vector<15x8xf32>
    %30 = vector.extract_strided_slice %6 {offsets = [0, 72], sizes = [15, 8], strides = [1, 1]} : vector<15x96xf32> to vector<15x8xf32>
    %cst_15 = arith.constant dense<0.000000e+00> : vector<15x15xf32>
    %31 = tpu.matmul %28, %29, %cst_15 {dimension_numbers = #tpu.dot_dimension_numbers<[1], [1], [0], [0], [0, 0, 1, 0], [], []>} : vector<15x8xf32>, vector<15x8xf32>, vector<15x15xf32> -> vector<15x15xf32>
    %cst_16 = arith.constant 0.353553385 : f32
    %32 = vector.broadcast %cst_16 : f32 to vector<15x15xf32>
    %33 = arith.mulf %31, %32 : vector<15x15xf32>
    %cst_17 = arith.constant dense<0xFF800000> : vector<15xf32>
    %34 = vector.multi_reduction <maximumf>, %33, %cst_17 [1] : vector<15x15xf32> to vector<15xf32>
    %35 = vector.shape_cast %34 : vector<15xf32> to vector<15x1xf32>
    %36 = vector.broadcast %35 : vector<15x1xf32> to vector<15x15xf32>
    %37 = arith.subf %33, %36 : vector<15x15xf32>
    %38 = math.exp %37 : vector<15x15xf32>
    %cst_18 = arith.constant dense<0.000000e+00> : vector<15xf32>
    %39 = vector.multi_reduction <add>, %38, %cst_18 [1] : vector<15x15xf32> to vector<15xf32>
    %40 = vector.shape_cast %39 : vector<15xf32> to vector<15x1xf32>
    %41 = tpu.reciprocal %40 {approx = true} : vector<15x1xf32> -> vector<15x1xf32>
    %42 = vector.broadcast %41 : vector<15x1xf32> to vector<15x15xf32>
    %43 = arith.mulf %38, %42 : vector<15x15xf32>
    %cst_19 = arith.constant dense<0.000000e+00> : vector<15x8xf32>
    %44 = tpu.matmul %43, %30, %cst_19 {dimension_numbers = #tpu.dot_dimension_numbers<[1], [0], [0], [1], [0, 0, 1, 1], [], []>} : vector<15x15xf32>, vector<15x8xf32>, vector<15x8xf32> -> vector<15x8xf32>
    %c8 = arith.constant 8 : index
    %c0_20 = arith.constant 0 : index
    %45 = vector.load %arg4[%c8, %c0_20] : memref<32x32xf32, #tpu.memory_space<vmem>>, vector<8x32xf32>
    %cst_21 = arith.constant dense<0.000000e+00> : vector<15x32xf32>
    %46 = tpu.matmul %44, %45, %cst_21 {dimension_numbers = #tpu.dot_dimension_numbers<[1], [0], [0], [1], [0, 0, 1, 1], [], []>} : vector<15x8xf32>, vector<8x32xf32>, vector<15x32xf32> -> vector<15x32xf32>
    %47 = arith.addf %27, %46 : vector<15x32xf32>
    %48 = vector.extract_strided_slice %6 {offsets = [0, 16], sizes = [15, 8], strides = [1, 1]} : vector<15x96xf32> to vector<15x8xf32>
    %49 = vector.extract_strided_slice %6 {offsets = [0, 48], sizes = [15, 8], strides = [1, 1]} : vector<15x96xf32> to vector<15x8xf32>
    %50 = vector.extract_strided_slice %6 {offsets = [0, 80], sizes = [15, 8], strides = [1, 1]} : vector<15x96xf32> to vector<15x8xf32>
    %cst_22 = arith.constant dense<0.000000e+00> : vector<15x15xf32>
    %51 = tpu.matmul %48, %49, %cst_22 {dimension_numbers = #tpu.dot_dimension_numbers<[1], [1], [0], [0], [0, 0, 1, 0], [], []>} : vector<15x8xf32>, vector<15x8xf32>, vector<15x15xf32> -> vector<15x15xf32>
    %cst_23 = arith.constant 0.353553385 : f32
    %52 = vector.broadcast %cst_23 : f32 to vector<15x15xf32>
    %53 = arith.mulf %51, %52 : vector<15x15xf32>
    %cst_24 = arith.constant dense<0xFF800000> : vector<15xf32>
    %54 = vector.multi_reduction <maximumf>, %53, %cst_24 [1] : vector<15x15xf32> to vector<15xf32>
    %55 = vector.shape_cast %54 : vector<15xf32> to vector<15x1xf32>
    %56 = vector.broadcast %55 : vector<15x1xf32> to vector<15x15xf32>
    %57 = arith.subf %53, %56 : vector<15x15xf32>
    %58 = math.exp %57 : vector<15x15xf32>
    %cst_25 = arith.constant dense<0.000000e+00> : vector<15xf32>
    %59 = vector.multi_reduction <add>, %58, %cst_25 [1] : vector<15x15xf32> to vector<15xf32>
    %60 = vector.shape_cast %59 : vector<15xf32> to vector<15x1xf32>
    %61 = tpu.reciprocal %60 {approx = true} : vector<15x1xf32> -> vector<15x1xf32>
    %62 = vector.broadcast %61 : vector<15x1xf32> to vector<15x15xf32>
    %63 = arith.mulf %58, %62 : vector<15x15xf32>
    %cst_26 = arith.constant dense<0.000000e+00> : vector<15x8xf32>
    %64 = tpu.matmul %63, %50, %cst_26 {dimension_numbers = #tpu.dot_dimension_numbers<[1], [0], [0], [1], [0, 0, 1, 1], [], []>} : vector<15x15xf32>, vector<15x8xf32>, vector<15x8xf32> -> vector<15x8xf32>
    %c16 = arith.constant 16 : index
    %c0_27 = arith.constant 0 : index
    %65 = vector.load %arg4[%c16, %c0_27] : memref<32x32xf32, #tpu.memory_space<vmem>>, vector<8x32xf32>
    %cst_28 = arith.constant dense<0.000000e+00> : vector<15x32xf32>
    %66 = tpu.matmul %64, %65, %cst_28 {dimension_numbers = #tpu.dot_dimension_numbers<[1], [0], [0], [1], [0, 0, 1, 1], [], []>} : vector<15x8xf32>, vector<8x32xf32>, vector<15x32xf32> -> vector<15x32xf32>
    %67 = arith.addf %47, %66 : vector<15x32xf32>
    %68 = vector.extract_strided_slice %6 {offsets = [0, 24], sizes = [15, 8], strides = [1, 1]} : vector<15x96xf32> to vector<15x8xf32>
    %69 = vector.extract_strided_slice %6 {offsets = [0, 56], sizes = [15, 8], strides = [1, 1]} : vector<15x96xf32> to vector<15x8xf32>
    %70 = vector.extract_strided_slice %6 {offsets = [0, 88], sizes = [15, 8], strides = [1, 1]} : vector<15x96xf32> to vector<15x8xf32>
    %cst_29 = arith.constant dense<0.000000e+00> : vector<15x15xf32>
    %71 = tpu.matmul %68, %69, %cst_29 {dimension_numbers = #tpu.dot_dimension_numbers<[1], [1], [0], [0], [0, 0, 1, 0], [], []>} : vector<15x8xf32>, vector<15x8xf32>, vector<15x15xf32> -> vector<15x15xf32>
    %cst_30 = arith.constant 0.353553385 : f32
    %72 = vector.broadcast %cst_30 : f32 to vector<15x15xf32>
    %73 = arith.mulf %71, %72 : vector<15x15xf32>
    %cst_31 = arith.constant dense<0xFF800000> : vector<15xf32>
    %74 = vector.multi_reduction <maximumf>, %73, %cst_31 [1] : vector<15x15xf32> to vector<15xf32>
    %75 = vector.shape_cast %74 : vector<15xf32> to vector<15x1xf32>
    %76 = vector.broadcast %75 : vector<15x1xf32> to vector<15x15xf32>
    %77 = arith.subf %73, %76 : vector<15x15xf32>
    %78 = math.exp %77 : vector<15x15xf32>
    %cst_32 = arith.constant dense<0.000000e+00> : vector<15xf32>
    %79 = vector.multi_reduction <add>, %78, %cst_32 [1] : vector<15x15xf32> to vector<15xf32>
    %80 = vector.shape_cast %79 : vector<15xf32> to vector<15x1xf32>
    %81 = tpu.reciprocal %80 {approx = true} : vector<15x1xf32> -> vector<15x1xf32>
    %82 = vector.broadcast %81 : vector<15x1xf32> to vector<15x15xf32>
    %83 = arith.mulf %78, %82 : vector<15x15xf32>
    %cst_33 = arith.constant dense<0.000000e+00> : vector<15x8xf32>
    %84 = tpu.matmul %83, %70, %cst_33 {dimension_numbers = #tpu.dot_dimension_numbers<[1], [0], [0], [1], [0, 0, 1, 1], [], []>} : vector<15x15xf32>, vector<15x8xf32>, vector<15x8xf32> -> vector<15x8xf32>
    %c24 = arith.constant 24 : index
    %c0_34 = arith.constant 0 : index
    %85 = vector.load %arg4[%c24, %c0_34] : memref<32x32xf32, #tpu.memory_space<vmem>>, vector<8x32xf32>
    %cst_35 = arith.constant dense<0.000000e+00> : vector<15x32xf32>
    %86 = tpu.matmul %84, %85, %cst_35 {dimension_numbers = #tpu.dot_dimension_numbers<[1], [0], [0], [1], [0, 0, 1, 1], [], []>} : vector<15x8xf32>, vector<8x32xf32>, vector<15x32xf32> -> vector<15x32xf32>
    %87 = arith.addf %67, %86 : vector<15x32xf32>
    %c0_36 = arith.constant 0 : index
    %c0_37 = arith.constant 0 : index
    %88 = vector.load %arg5[%c0_36, %c0_37] : memref<1x32xf32, #tpu.memory_space<vmem>>, vector<1x32xf32>
    %89 = vector.broadcast %88 : vector<1x32xf32> to vector<15x32xf32>
    %90 = arith.addf %87, %89 : vector<15x32xf32>
    %91 = arith.addf %90, %1 : vector<15x32xf32>
    %c0_38 = arith.constant 0 : index
    %c0_39 = arith.constant 0 : index
    %92 = vector.load %arg6[%c0_38, %c0_39] : memref<1x32xf32, #tpu.memory_space<vmem>>, vector<1x32xf32>
    %c0_40 = arith.constant 0 : index
    %c0_41 = arith.constant 0 : index
    %93 = vector.load %arg7[%c0_40, %c0_41] : memref<1x32xf32, #tpu.memory_space<vmem>>, vector<1x32xf32>
    %cst_42 = arith.constant dense<0.000000e+00> : vector<15xf32>
    %94 = vector.multi_reduction <add>, %91, %cst_42 [1] : vector<15x32xf32> to vector<15xf32>
    %95 = vector.shape_cast %94 : vector<15xf32> to vector<15x1xf32>
    %cst_43 = arith.constant 3.200000e+01 : f32
    %96 = vector.broadcast %cst_43 : f32 to vector<15x1xf32>
    %97 = arith.divf %95, %96 : vector<15x1xf32>
    %98 = vector.broadcast %97 : vector<15x1xf32> to vector<15x32xf32>
    %99 = arith.subf %91, %98 : vector<15x32xf32>
    %100 = arith.mulf %99, %99 : vector<15x32xf32>
    %cst_44 = arith.constant dense<0.000000e+00> : vector<15xf32>
    %101 = vector.multi_reduction <add>, %100, %cst_44 [1] : vector<15x32xf32> to vector<15xf32>
    %102 = vector.shape_cast %101 : vector<15xf32> to vector<15x1xf32>
    %cst_45 = arith.constant 3.200000e+01 : f32
    %103 = vector.broadcast %cst_45 : f32 to vector<15x1xf32>
    %104 = arith.divf %102, %103 : vector<15x1xf32>
    %cst_46 = arith.constant 9.99999974E-6 : f32
    %105 = vector.broadcast %cst_46 : f32 to vector<15x1xf32>
    %106 = arith.addf %104, %105 : vector<15x1xf32>
    %107 = math.rsqrt %106 : vector<15x1xf32>
    %108 = vector.broadcast %107 : vector<15x1xf32> to vector<15x32xf32>
    %109 = arith.mulf %99, %108 : vector<15x32xf32>
    %110 = vector.broadcast %92 : vector<1x32xf32> to vector<15x32xf32>
    %111 = arith.mulf %109, %110 : vector<15x32xf32>
    %112 = vector.broadcast %93 : vector<1x32xf32> to vector<15x32xf32>
    %113 = arith.addf %111, %112 : vector<15x32xf32>
    %c0_47 = arith.constant 0 : index
    %c0_48 = arith.constant 0 : index
    %114 = vector.load %arg8[%c0_47, %c0_48] : memref<32x16xf32, #tpu.memory_space<vmem>>, vector<32x16xf32>
    %cst_49 = arith.constant dense<0.000000e+00> : vector<15x16xf32>
    %115 = tpu.matmul %113, %114, %cst_49 {dimension_numbers = #tpu.dot_dimension_numbers<[1], [0], [0], [1], [0, 0, 1, 1], [], []>} : vector<15x32xf32>, vector<32x16xf32>, vector<15x16xf32> -> vector<15x16xf32>
    %c0_50 = arith.constant 0 : index
    %c0_51 = arith.constant 0 : index
    %116 = vector.load %arg9[%c0_50, %c0_51] : memref<1x16xf32, #tpu.memory_space<vmem>>, vector<1x16xf32>
    %117 = vector.broadcast %116 : vector<1x16xf32> to vector<15x16xf32>
    %118 = arith.addf %115, %117 : vector<15x16xf32>
    %cst_52 = arith.constant 0.000000e+00 : f32
    %119 = vector.broadcast %cst_52 : f32 to vector<15x16xf32>
    %120 = arith.maximumf %118, %119 : vector<15x16xf32>
    %c0_53 = arith.constant 0 : index
    %c0_54 = arith.constant 0 : index
    %121 = vector.load %arg10[%c0_53, %c0_54] : memref<16x32xf32, #tpu.memory_space<vmem>>, vector<16x32xf32>
    %cst_55 = arith.constant dense<0.000000e+00> : vector<15x32xf32>
    %122 = tpu.matmul %120, %121, %cst_55 {dimension_numbers = #tpu.dot_dimension_numbers<[1], [0], [0], [1], [0, 0, 1, 1], [], []>} : vector<15x16xf32>, vector<16x32xf32>, vector<15x32xf32> -> vector<15x32xf32>
    %c0_56 = arith.constant 0 : index
    %c0_57 = arith.constant 0 : index
    %123 = vector.load %arg11[%c0_56, %c0_57] : memref<1x32xf32, #tpu.memory_space<vmem>>, vector<1x32xf32>
    %124 = vector.broadcast %123 : vector<1x32xf32> to vector<15x32xf32>
    %125 = arith.addf %122, %124 : vector<15x32xf32>
    %126 = arith.addf %125, %113 : vector<15x32xf32>
    %c0_58 = arith.constant 0 : index
    %c0_59 = arith.constant 0 : index
    %127 = vector.load %arg12[%c0_58, %c0_59] : memref<1x32xf32, #tpu.memory_space<vmem>>, vector<1x32xf32>
    %c0_60 = arith.constant 0 : index
    %c0_61 = arith.constant 0 : index
    %128 = vector.load %arg13[%c0_60, %c0_61] : memref<1x32xf32, #tpu.memory_space<vmem>>, vector<1x32xf32>
    %cst_62 = arith.constant dense<0.000000e+00> : vector<15xf32>
    %129 = vector.multi_reduction <add>, %126, %cst_62 [1] : vector<15x32xf32> to vector<15xf32>
    %130 = vector.shape_cast %129 : vector<15xf32> to vector<15x1xf32>
    %cst_63 = arith.constant 3.200000e+01 : f32
    %131 = vector.broadcast %cst_63 : f32 to vector<15x1xf32>
    %132 = arith.divf %130, %131 : vector<15x1xf32>
    %133 = vector.broadcast %132 : vector<15x1xf32> to vector<15x32xf32>
    %134 = arith.subf %126, %133 : vector<15x32xf32>
    %135 = arith.mulf %134, %134 : vector<15x32xf32>
    %cst_64 = arith.constant dense<0.000000e+00> : vector<15xf32>
    %136 = vector.multi_reduction <add>, %135, %cst_64 [1] : vector<15x32xf32> to vector<15xf32>
    %137 = vector.shape_cast %136 : vector<15xf32> to vector<15x1xf32>
    %cst_65 = arith.constant 3.200000e+01 : f32
    %138 = vector.broadcast %cst_65 : f32 to vector<15x1xf32>
    %139 = arith.divf %137, %138 : vector<15x1xf32>
    %cst_66 = arith.constant 9.99999974E-6 : f32
    %140 = vector.broadcast %cst_66 : f32 to vector<15x1xf32>
    %141 = arith.addf %139, %140 : vector<15x1xf32>
    %142 = math.rsqrt %141 : vector<15x1xf32>
    %143 = vector.broadcast %142 : vector<15x1xf32> to vector<15x32xf32>
    %144 = arith.mulf %134, %143 : vector<15x32xf32>
    %145 = vector.broadcast %127 : vector<1x32xf32> to vector<15x32xf32>
    %146 = arith.mulf %144, %145 : vector<15x32xf32>
    %147 = vector.broadcast %128 : vector<1x32xf32> to vector<15x32xf32>
    %148 = arith.addf %146, %147 : vector<15x32xf32>
    %c0_67 = arith.constant 0 : index
    %c0_68 = arith.constant 0 : index
    %c0_69 = arith.constant 0 : index
    %149 = vector.load %arg14[%c0_67, %c0_68, %c0_69] : memref<1x15x32xf32, #tpu.memory_space<vmem>>, vector<1x15x32xf32>
    %150 = vector.shape_cast %149 : vector<1x15x32xf32> to vector<15x32xf32>
    %151 = vector.shape_cast %148 : vector<15x32xf32> to vector<1x15x32xf32>
    tpu.vector_store %arg14[%c0_67, %c0_68, %c0_69], %151 {strides = array<i32>} : memref<1x15x32xf32, #tpu.memory_space<vmem>>, vector<1x15x32xf32>,
    return
  }
  func.func @transform_0(%arg0: i32) -> (i32, i32, i32) {
    %c0_i32 = arith.constant 0 : i32
    %c0_i32_0 = arith.constant 0 : i32
    %c0_i32_1 = arith.constant 0 : i32
    return %arg0, %c0_i32, %c0_i32_0 : i32, i32, i32
  }
  func.func @transform_1(%arg0: i32) -> (i32, i32) {
    %c0_i32 = arith.constant 0 : i32
    %c0_i32_0 = arith.constant 0 : i32
    %c0_i32_1 = arith.constant 0 : i32
    return %c0_i32, %c0_i32_0 : i32, i32
  }
  func.func @transform_2(%arg0: i32) -> (i32, i32) {
    %c0_i32 = arith.constant 0 : i32
    %c0_i32_0 = arith.constant 0 : i32
    %c0_i32_1 = arith.constant 0 : i32
    return %c0_i32, %c0_i32_0 : i32, i32
  }
  func.func @transform_3(%arg0: i32) -> (i32, i32) {
    %c0_i32 = arith.constant 0 : i32
    %c0_i32_0 = arith.constant 0 : i32
    %c0_i32_1 = arith.constant 0 : i32
    return %c0_i32, %c0_i32_0 : i32, i32
  }
  func.func @transform_4(%arg0: i32) -> (i32, i32) {
    %c0_i32 = arith.constant 0 : i32
    %c0_i32_0 = arith.constant 0 : i32
    %c0_i32_1 = arith.constant 0 : i32
    return %c0_i32, %c0_i32_0 : i32, i32
  }
  func.func @transform_5(%arg0: i32) -> (i32, i32) {
    %c0_i32 = arith.constant 0 : i32
    %c0_i32_0 = arith.constant 0 : i32
    %c0_i32_1 = arith.constant 0 : i32
    return %c0_i32, %c0_i32_0 : i32, i32
  }
  func.func @transform_6(%arg0: i32) -> (i32, i32) {
    %c0_i32 = arith.constant 0 : i32
    %c0_i32_0 = arith.constant 0 : i32
    %c0_i32_1 = arith.constant 0 : i32
    return %c0_i32, %c0_i32_0 : i32, i32
  }
  func.func @transform_7(%arg0: i32) -> (i32, i32) {
    %c0_i32 = arith.constant 0 : i32
    %c0_i32_0 = arith.constant 0 : i32
    %c0_i32_1 = arith.constant 0 : i32
    return %c0_i32, %c0_i32_0 : i32, i32
  }
  func.func @transform_8(%arg0: i32) -> (i32, i32) {
    %c0_i32 = arith.constant 0 : i32
    %c0_i32_0 = arith.constant 0 : i32
    %c0_i32_1 = arith.constant 0 : i32
    return %c0_i32, %c0_i32_0 : i32, i32
  }
  func.func @transform_9(%arg0: i32) -> (i32, i32) {
    %c0_i32 = arith.constant 0 : i32
    %c0_i32_0 = arith.constant 0 : i32
    %c0_i32_1 = arith.constant 0 : i32
    return %c0_i32, %c0_i32_0 : i32, i32
  }
  func.func @transform_10(%arg0: i32) -> (i32, i32) {
    %c0_i32 = arith.constant 0 : i32
    %c0_i32_0 = arith.constant 0 : i32
    %c0_i32_1 = arith.constant 0 : i32
    return %c0_i32, %c0_i32_0 : i32, i32
  }
  func.func @transform_11(%arg0: i32) -> (i32, i32) {
    %c0_i32 = arith.constant 0 : i32
    %c0_i32_0 = arith.constant 0 : i32
    %c0_i32_1 = arith.constant 0 : i32
    return %c0_i32, %c0_i32_0 : i32, i32
  }
  func.func @transform_12(%arg0: i32) -> (i32, i32) {
    %c0_i32 = arith.constant 0 : i32
    %c0_i32_0 = arith.constant 0 : i32
    %c0_i32_1 = arith.constant 0 : i32
    return %c0_i32, %c0_i32_0 : i32, i32
  }
  func.func @transform_13(%arg0: i32) -> (i32, i32, i32) {
    %c0_i32 = arith.constant 0 : i32
    %c0_i32_0 = arith.constant 0 : i32
    %c0_i32_1 = arith.constant 0 : i32
    return %arg0, %c0_i32, %c0_i32_0 : i32, i32, i32
  }
}

module attributes {stable_mosaic.version = 11 : i64} {
  func.func @_task_head_kernel(%arg0: i32, %arg1: memref<1x15x32xf32, #tpu.memory_space<vmem>>, %arg2: memref<1x32xf32, #tpu.memory_space<vmem>>, %arg3: memref<32x64xf32, #tpu.memory_space<vmem>>, %arg4: memref<1x64xf32, #tpu.memory_space<vmem>>, %arg5: memref<32x32xf32, #tpu.memory_space<vmem>>, %arg6: memref<1x32xf32, #tpu.memory_space<vmem>>, %arg7: memref<1x32xf32, #tpu.memory_space<vmem>>, %arg8: memref<1x32xf32, #tpu.memory_space<vmem>>, %arg9: memref<32x200xf32, #tpu.memory_space<vmem>>, %arg10: memref<1x200xf32, #tpu.memory_space<vmem>>, %arg11: memref<200x200xf32, #tpu.memory_space<vmem>>, %arg12: memref<1x200xf32, #tpu.memory_space<vmem>>, %arg13: memref<200x5xf32, #tpu.memory_space<vmem>>, %arg14: memref<1x5xf32, #tpu.memory_space<vmem>>, %arg15: memref<1x1x5xf32, #tpu.memory_space<vmem>>) attributes {dimension_semantics = [#tpu.dimension_semantics<parallel>], iteration_bounds = array<i64: 2>, scalar_prefetch = 0 : i64, scratch_operands = 0 : i64, tpu.core_type = #tpu.core_type<tc>, window_params = [{transform_indices = @transform_0, window_bounds = array<i64: 1, 15, 32>}, {pipeline_mode = #tpu.pipeline_mode<synchronous>, transform_indices = @transform_1, window_bounds = array<i64: 1, 32>}, {pipeline_mode = #tpu.pipeline_mode<synchronous>, transform_indices = @transform_2, window_bounds = array<i64: 32, 64>}, {pipeline_mode = #tpu.pipeline_mode<synchronous>, transform_indices = @transform_3, window_bounds = array<i64: 1, 64>}, {pipeline_mode = #tpu.pipeline_mode<synchronous>, transform_indices = @transform_4, window_bounds = array<i64: 32, 32>}, {pipeline_mode = #tpu.pipeline_mode<synchronous>, transform_indices = @transform_5, window_bounds = array<i64: 1, 32>}, {pipeline_mode = #tpu.pipeline_mode<synchronous>, transform_indices = @transform_6, window_bounds = array<i64: 1, 32>}, {pipeline_mode = #tpu.pipeline_mode<synchronous>, transform_indices = @transform_7, window_bounds = array<i64: 1, 32>}, {pipeline_mode = #tpu.pipeline_mode<synchronous>, transform_indices = @transform_8, window_bounds = array<i64: 32, 200>}, {pipeline_mode = #tpu.pipeline_mode<synchronous>, transform_indices = @transform_9, window_bounds = array<i64: 1, 200>}, {pipeline_mode = #tpu.pipeline_mode<synchronous>, transform_indices = @transform_10, window_bounds = array<i64: 200, 200>}, {pipeline_mode = #tpu.pipeline_mode<synchronous>, transform_indices = @transform_11, window_bounds = array<i64: 1, 200>}, {pipeline_mode = #tpu.pipeline_mode<synchronous>, transform_indices = @transform_12, window_bounds = array<i64: 200, 5>}, {pipeline_mode = #tpu.pipeline_mode<synchronous>, transform_indices = @transform_13, window_bounds = array<i64: 1, 5>}, {transform_indices = @transform_14, window_bounds = array<i64: 1, 1, 5>}]} {
    %c0 = arith.constant 0 : index
    %c0_0 = arith.constant 0 : index
    %c0_1 = arith.constant 0 : index
    %0 = vector.load %arg1[%c0, %c0_0, %c0_1] : memref<1x15x32xf32, #tpu.memory_space<vmem>>, vector<1x15x32xf32>
    %1 = vector.shape_cast %0 : vector<1x15x32xf32> to vector<15x32xf32>
    %c0_2 = arith.constant 0 : index
    %c0_3 = arith.constant 0 : index
    %2 = vector.load %arg3[%c0_2, %c0_3] : memref<32x64xf32, #tpu.memory_space<vmem>>, vector<32x64xf32>
    %cst = arith.constant dense<0.000000e+00> : vector<15x64xf32>
    %3 = tpu.matmul %1, %2, %cst {dimension_numbers = #tpu.dot_dimension_numbers<[1], [0], [0], [1], [0, 0, 1, 1], [], []>} : vector<15x32xf32>, vector<32x64xf32>, vector<15x64xf32> -> vector<15x64xf32>
    %c0_4 = arith.constant 0 : index
    %c0_5 = arith.constant 0 : index
    %4 = vector.load %arg4[%c0_4, %c0_5] : memref<1x64xf32, #tpu.memory_space<vmem>>, vector<1x64xf32>
    %5 = vector.broadcast %4 : vector<1x64xf32> to vector<15x64xf32>
    %6 = arith.addf %3, %5 : vector<15x64xf32>
    %c0_6 = arith.constant 0 : index
    %c0_7 = arith.constant 0 : index
    %7 = vector.load %arg2[%c0_6, %c0_7] : memref<1x32xf32, #tpu.memory_space<vmem>>, vector<1x32xf32>
    %cst_8 = arith.constant 0.000000e+00 : f32
    %8 = vector.broadcast %cst_8 : f32 to vector<1x32xf32>
    %9 = vector.extract_strided_slice %7 {offsets = [0, 0], sizes = [1, 8], strides = [1, 1]} : vector<1x32xf32> to vector<1x8xf32>
    %10 = vector.extract_strided_slice %6 {offsets = [0, 0], sizes = [15, 8], strides = [1, 1]} : vector<15x64xf32> to vector<15x8xf32>
    %11 = vector.extract_strided_slice %6 {offsets = [0, 32], sizes = [15, 8], strides = [1, 1]} : vector<15x64xf32> to vector<15x8xf32>
    %cst_9 = arith.constant dense<0.000000e+00> : vector<1x15xf32>
    %12 = tpu.matmul %9, %10, %cst_9 {dimension_numbers = #tpu.dot_dimension_numbers<[1], [1], [0], [0], [0, 0, 1, 0], [], []>} : vector<1x8xf32>, vector<15x8xf32>, vector<1x15xf32> -> vector<1x15xf32>
    %cst_10 = arith.constant 0.353553385 : f32
    %13 = vector.broadcast %cst_10 : f32 to vector<1x15xf32>
    %14 = arith.mulf %12, %13 : vector<1x15xf32>
    %cst_11 = arith.constant dense<0xFF800000> : vector<1xf32>
    %15 = vector.multi_reduction <maximumf>, %14, %cst_11 [1] : vector<1x15xf32> to vector<1xf32>
    %16 = vector.shape_cast %15 : vector<1xf32> to vector<1x1xf32>
    %17 = vector.broadcast %16 : vector<1x1xf32> to vector<1x15xf32>
    %18 = arith.subf %14, %17 : vector<1x15xf32>
    %19 = math.exp %18 : vector<1x15xf32>
    %cst_12 = arith.constant dense<0.000000e+00> : vector<1xf32>
    %20 = vector.multi_reduction <add>, %19, %cst_12 [1] : vector<1x15xf32> to vector<1xf32>
    %21 = vector.shape_cast %20 : vector<1xf32> to vector<1x1xf32>
    %22 = tpu.reciprocal %21 {approx = true} : vector<1x1xf32> -> vector<1x1xf32>
    %23 = vector.broadcast %22 : vector<1x1xf32> to vector<1x15xf32>
    %24 = arith.mulf %19, %23 : vector<1x15xf32>
    %cst_13 = arith.constant dense<0.000000e+00> : vector<1x8xf32>
    %25 = tpu.matmul %24, %11, %cst_13 {dimension_numbers = #tpu.dot_dimension_numbers<[1], [0], [0], [1], [0, 0, 1, 1], [], []>} : vector<1x15xf32>, vector<15x8xf32>, vector<1x8xf32> -> vector<1x8xf32>
    %c0_14 = arith.constant 0 : index
    %c0_15 = arith.constant 0 : index
    %26 = vector.load %arg5[%c0_14, %c0_15] : memref<32x32xf32, #tpu.memory_space<vmem>>, vector<8x32xf32>
    %cst_16 = arith.constant dense<0.000000e+00> : vector<1x32xf32>
    %27 = tpu.matmul %25, %26, %cst_16 {dimension_numbers = #tpu.dot_dimension_numbers<[1], [0], [0], [1], [0, 0, 1, 1], [], []>} : vector<1x8xf32>, vector<8x32xf32>, vector<1x32xf32> -> vector<1x32xf32>
    %28 = arith.addf %8, %27 : vector<1x32xf32>
    %29 = vector.extract_strided_slice %7 {offsets = [0, 8], sizes = [1, 8], strides = [1, 1]} : vector<1x32xf32> to vector<1x8xf32>
    %30 = vector.extract_strided_slice %6 {offsets = [0, 8], sizes = [15, 8], strides = [1, 1]} : vector<15x64xf32> to vector<15x8xf32>
    %31 = vector.extract_strided_slice %6 {offsets = [0, 40], sizes = [15, 8], strides = [1, 1]} : vector<15x64xf32> to vector<15x8xf32>
    %cst_17 = arith.constant dense<0.000000e+00> : vector<1x15xf32>
    %32 = tpu.matmul %29, %30, %cst_17 {dimension_numbers = #tpu.dot_dimension_numbers<[1], [1], [0], [0], [0, 0, 1, 0], [], []>} : vector<1x8xf32>, vector<15x8xf32>, vector<1x15xf32> -> vector<1x15xf32>
    %cst_18 = arith.constant 0.353553385 : f32
    %33 = vector.broadcast %cst_18 : f32 to vector<1x15xf32>
    %34 = arith.mulf %32, %33 : vector<1x15xf32>
    %cst_19 = arith.constant dense<0xFF800000> : vector<1xf32>
    %35 = vector.multi_reduction <maximumf>, %34, %cst_19 [1] : vector<1x15xf32> to vector<1xf32>
    %36 = vector.shape_cast %35 : vector<1xf32> to vector<1x1xf32>
    %37 = vector.broadcast %36 : vector<1x1xf32> to vector<1x15xf32>
    %38 = arith.subf %34, %37 : vector<1x15xf32>
    %39 = math.exp %38 : vector<1x15xf32>
    %cst_20 = arith.constant dense<0.000000e+00> : vector<1xf32>
    %40 = vector.multi_reduction <add>, %39, %cst_20 [1] : vector<1x15xf32> to vector<1xf32>
    %41 = vector.shape_cast %40 : vector<1xf32> to vector<1x1xf32>
    %42 = tpu.reciprocal %41 {approx = true} : vector<1x1xf32> -> vector<1x1xf32>
    %43 = vector.broadcast %42 : vector<1x1xf32> to vector<1x15xf32>
    %44 = arith.mulf %39, %43 : vector<1x15xf32>
    %cst_21 = arith.constant dense<0.000000e+00> : vector<1x8xf32>
    %45 = tpu.matmul %44, %31, %cst_21 {dimension_numbers = #tpu.dot_dimension_numbers<[1], [0], [0], [1], [0, 0, 1, 1], [], []>} : vector<1x15xf32>, vector<15x8xf32>, vector<1x8xf32> -> vector<1x8xf32>
    %c8 = arith.constant 8 : index
    %c0_22 = arith.constant 0 : index
    %46 = vector.load %arg5[%c8, %c0_22] : memref<32x32xf32, #tpu.memory_space<vmem>>, vector<8x32xf32>
    %cst_23 = arith.constant dense<0.000000e+00> : vector<1x32xf32>
    %47 = tpu.matmul %45, %46, %cst_23 {dimension_numbers = #tpu.dot_dimension_numbers<[1], [0], [0], [1], [0, 0, 1, 1], [], []>} : vector<1x8xf32>, vector<8x32xf32>, vector<1x32xf32> -> vector<1x32xf32>
    %48 = arith.addf %28, %47 : vector<1x32xf32>
    %49 = vector.extract_strided_slice %7 {offsets = [0, 16], sizes = [1, 8], strides = [1, 1]} : vector<1x32xf32> to vector<1x8xf32>
    %50 = vector.extract_strided_slice %6 {offsets = [0, 16], sizes = [15, 8], strides = [1, 1]} : vector<15x64xf32> to vector<15x8xf32>
    %51 = vector.extract_strided_slice %6 {offsets = [0, 48], sizes = [15, 8], strides = [1, 1]} : vector<15x64xf32> to vector<15x8xf32>
    %cst_24 = arith.constant dense<0.000000e+00> : vector<1x15xf32>
    %52 = tpu.matmul %49, %50, %cst_24 {dimension_numbers = #tpu.dot_dimension_numbers<[1], [1], [0], [0], [0, 0, 1, 0], [], []>} : vector<1x8xf32>, vector<15x8xf32>, vector<1x15xf32> -> vector<1x15xf32>
    %cst_25 = arith.constant 0.353553385 : f32
    %53 = vector.broadcast %cst_25 : f32 to vector<1x15xf32>
    %54 = arith.mulf %52, %53 : vector<1x15xf32>
    %cst_26 = arith.constant dense<0xFF800000> : vector<1xf32>
    %55 = vector.multi_reduction <maximumf>, %54, %cst_26 [1] : vector<1x15xf32> to vector<1xf32>
    %56 = vector.shape_cast %55 : vector<1xf32> to vector<1x1xf32>
    %57 = vector.broadcast %56 : vector<1x1xf32> to vector<1x15xf32>
    %58 = arith.subf %54, %57 : vector<1x15xf32>
    %59 = math.exp %58 : vector<1x15xf32>
    %cst_27 = arith.constant dense<0.000000e+00> : vector<1xf32>
    %60 = vector.multi_reduction <add>, %59, %cst_27 [1] : vector<1x15xf32> to vector<1xf32>
    %61 = vector.shape_cast %60 : vector<1xf32> to vector<1x1xf32>
    %62 = tpu.reciprocal %61 {approx = true} : vector<1x1xf32> -> vector<1x1xf32>
    %63 = vector.broadcast %62 : vector<1x1xf32> to vector<1x15xf32>
    %64 = arith.mulf %59, %63 : vector<1x15xf32>
    %cst_28 = arith.constant dense<0.000000e+00> : vector<1x8xf32>
    %65 = tpu.matmul %64, %51, %cst_28 {dimension_numbers = #tpu.dot_dimension_numbers<[1], [0], [0], [1], [0, 0, 1, 1], [], []>} : vector<1x15xf32>, vector<15x8xf32>, vector<1x8xf32> -> vector<1x8xf32>
    %c16 = arith.constant 16 : index
    %c0_29 = arith.constant 0 : index
    %66 = vector.load %arg5[%c16, %c0_29] : memref<32x32xf32, #tpu.memory_space<vmem>>, vector<8x32xf32>
    %cst_30 = arith.constant dense<0.000000e+00> : vector<1x32xf32>
    %67 = tpu.matmul %65, %66, %cst_30 {dimension_numbers = #tpu.dot_dimension_numbers<[1], [0], [0], [1], [0, 0, 1, 1], [], []>} : vector<1x8xf32>, vector<8x32xf32>, vector<1x32xf32> -> vector<1x32xf32>
    %68 = arith.addf %48, %67 : vector<1x32xf32>
    %69 = vector.extract_strided_slice %7 {offsets = [0, 24], sizes = [1, 8], strides = [1, 1]} : vector<1x32xf32> to vector<1x8xf32>
    %70 = vector.extract_strided_slice %6 {offsets = [0, 24], sizes = [15, 8], strides = [1, 1]} : vector<15x64xf32> to vector<15x8xf32>
    %71 = vector.extract_strided_slice %6 {offsets = [0, 56], sizes = [15, 8], strides = [1, 1]} : vector<15x64xf32> to vector<15x8xf32>
    %cst_31 = arith.constant dense<0.000000e+00> : vector<1x15xf32>
    %72 = tpu.matmul %69, %70, %cst_31 {dimension_numbers = #tpu.dot_dimension_numbers<[1], [1], [0], [0], [0, 0, 1, 0], [], []>} : vector<1x8xf32>, vector<15x8xf32>, vector<1x15xf32> -> vector<1x15xf32>
    %cst_32 = arith.constant 0.353553385 : f32
    %73 = vector.broadcast %cst_32 : f32 to vector<1x15xf32>
    %74 = arith.mulf %72, %73 : vector<1x15xf32>
    %cst_33 = arith.constant dense<0xFF800000> : vector<1xf32>
    %75 = vector.multi_reduction <maximumf>, %74, %cst_33 [1] : vector<1x15xf32> to vector<1xf32>
    %76 = vector.shape_cast %75 : vector<1xf32> to vector<1x1xf32>
    %77 = vector.broadcast %76 : vector<1x1xf32> to vector<1x15xf32>
    %78 = arith.subf %74, %77 : vector<1x15xf32>
    %79 = math.exp %78 : vector<1x15xf32>
    %cst_34 = arith.constant dense<0.000000e+00> : vector<1xf32>
    %80 = vector.multi_reduction <add>, %79, %cst_34 [1] : vector<1x15xf32> to vector<1xf32>
    %81 = vector.shape_cast %80 : vector<1xf32> to vector<1x1xf32>
    %82 = tpu.reciprocal %81 {approx = true} : vector<1x1xf32> -> vector<1x1xf32>
    %83 = vector.broadcast %82 : vector<1x1xf32> to vector<1x15xf32>
    %84 = arith.mulf %79, %83 : vector<1x15xf32>
    %cst_35 = arith.constant dense<0.000000e+00> : vector<1x8xf32>
    %85 = tpu.matmul %84, %71, %cst_35 {dimension_numbers = #tpu.dot_dimension_numbers<[1], [0], [0], [1], [0, 0, 1, 1], [], []>} : vector<1x15xf32>, vector<15x8xf32>, vector<1x8xf32> -> vector<1x8xf32>
    %c24 = arith.constant 24 : index
    %c0_36 = arith.constant 0 : index
    %86 = vector.load %arg5[%c24, %c0_36] : memref<32x32xf32, #tpu.memory_space<vmem>>, vector<8x32xf32>
    %cst_37 = arith.constant dense<0.000000e+00> : vector<1x32xf32>
    %87 = tpu.matmul %85, %86, %cst_37 {dimension_numbers = #tpu.dot_dimension_numbers<[1], [0], [0], [1], [0, 0, 1, 1], [], []>} : vector<1x8xf32>, vector<8x32xf32>, vector<1x32xf32> -> vector<1x32xf32>
    %88 = arith.addf %68, %87 : vector<1x32xf32>
    %c0_38 = arith.constant 0 : index
    %c0_39 = arith.constant 0 : index
    %89 = vector.load %arg6[%c0_38, %c0_39] : memref<1x32xf32, #tpu.memory_space<vmem>>, vector<1x32xf32>
    %90 = arith.addf %88, %89 : vector<1x32xf32>
    %c0_40 = arith.constant 0 : index
    %c0_41 = arith.constant 0 : index
    %91 = vector.load %arg7[%c0_40, %c0_41] : memref<1x32xf32, #tpu.memory_space<vmem>>, vector<1x32xf32>
    %c0_42 = arith.constant 0 : index
    %c0_43 = arith.constant 0 : index
    %92 = vector.load %arg8[%c0_42, %c0_43] : memref<1x32xf32, #tpu.memory_space<vmem>>, vector<1x32xf32>
    %cst_44 = arith.constant dense<0.000000e+00> : vector<1xf32>
    %93 = vector.multi_reduction <add>, %90, %cst_44 [1] : vector<1x32xf32> to vector<1xf32>
    %94 = vector.shape_cast %93 : vector<1xf32> to vector<1x1xf32>
    %cst_45 = arith.constant 3.200000e+01 : f32
    %95 = vector.broadcast %cst_45 : f32 to vector<1x1xf32>
    %96 = arith.divf %94, %95 : vector<1x1xf32>
    %97 = vector.broadcast %96 : vector<1x1xf32> to vector<1x32xf32>
    %98 = arith.subf %90, %97 : vector<1x32xf32>
    %99 = arith.mulf %98, %98 : vector<1x32xf32>
    %cst_46 = arith.constant dense<0.000000e+00> : vector<1xf32>
    %100 = vector.multi_reduction <add>, %99, %cst_46 [1] : vector<1x32xf32> to vector<1xf32>
    %101 = vector.shape_cast %100 : vector<1xf32> to vector<1x1xf32>
    %cst_47 = arith.constant 3.200000e+01 : f32
    %102 = vector.broadcast %cst_47 : f32 to vector<1x1xf32>
    %103 = arith.divf %101, %102 : vector<1x1xf32>
    %cst_48 = arith.constant 9.99999974E-6 : f32
    %104 = vector.broadcast %cst_48 : f32 to vector<1x1xf32>
    %105 = arith.addf %103, %104 : vector<1x1xf32>
    %106 = math.rsqrt %105 : vector<1x1xf32>
    %107 = vector.broadcast %106 : vector<1x1xf32> to vector<1x32xf32>
    %108 = arith.mulf %98, %107 : vector<1x32xf32>
    %109 = arith.mulf %108, %91 : vector<1x32xf32>
    %110 = arith.addf %109, %92 : vector<1x32xf32>
    %c0_49 = arith.constant 0 : index
    %c0_50 = arith.constant 0 : index
    %111 = vector.load %arg9[%c0_49, %c0_50] : memref<32x200xf32, #tpu.memory_space<vmem>>, vector<32x200xf32>
    %cst_51 = arith.constant dense<0.000000e+00> : vector<1x200xf32>
    %112 = tpu.matmul %110, %111, %cst_51 {dimension_numbers = #tpu.dot_dimension_numbers<[1], [0], [0], [1], [0, 0, 1, 1], [], []>} : vector<1x32xf32>, vector<32x200xf32>, vector<1x200xf32> -> vector<1x200xf32>
    %c0_52 = arith.constant 0 : index
    %c0_53 = arith.constant 0 : index
    %113 = vector.load %arg10[%c0_52, %c0_53] : memref<1x200xf32, #tpu.memory_space<vmem>>, vector<1x200xf32>
    %114 = arith.addf %112, %113 : vector<1x200xf32>
    %cst_54 = arith.constant 0.000000e+00 : f32
    %115 = vector.broadcast %cst_54 : f32 to vector<1x200xf32>
    %116 = arith.maximumf %114, %115 : vector<1x200xf32>
    %c0_55 = arith.constant 0 : index
    %c0_56 = arith.constant 0 : index
    %117 = vector.load %arg11[%c0_55, %c0_56] : memref<200x200xf32, #tpu.memory_space<vmem>>, vector<200x200xf32>
    %cst_57 = arith.constant dense<0.000000e+00> : vector<1x200xf32>
    %118 = tpu.matmul %116, %117, %cst_57 {dimension_numbers = #tpu.dot_dimension_numbers<[1], [0], [0], [1], [0, 0, 1, 1], [], []>} : vector<1x200xf32>, vector<200x200xf32>, vector<1x200xf32> -> vector<1x200xf32>
    %c0_58 = arith.constant 0 : index
    %c0_59 = arith.constant 0 : index
    %119 = vector.load %arg12[%c0_58, %c0_59] : memref<1x200xf32, #tpu.memory_space<vmem>>, vector<1x200xf32>
    %120 = arith.addf %118, %119 : vector<1x200xf32>
    %cst_60 = arith.constant 0.000000e+00 : f32
    %121 = vector.broadcast %cst_60 : f32 to vector<1x200xf32>
    %122 = arith.maximumf %120, %121 : vector<1x200xf32>
    %c0_61 = arith.constant 0 : index
    %c0_62 = arith.constant 0 : index
    %123 = vector.load %arg13[%c0_61, %c0_62] : memref<200x5xf32, #tpu.memory_space<vmem>>, vector<200x5xf32>
    %cst_63 = arith.constant dense<0.000000e+00> : vector<1x5xf32>
    %124 = tpu.matmul %122, %123, %cst_63 {dimension_numbers = #tpu.dot_dimension_numbers<[1], [0], [0], [1], [0, 0, 1, 1], [], []>} : vector<1x200xf32>, vector<200x5xf32>, vector<1x5xf32> -> vector<1x5xf32>
    %c0_64 = arith.constant 0 : index
    %c0_65 = arith.constant 0 : index
    %125 = vector.load %arg14[%c0_64, %c0_65] : memref<1x5xf32, #tpu.memory_space<vmem>>, vector<1x5xf32>
    %126 = arith.addf %124, %125 : vector<1x5xf32>
    %c0_66 = arith.constant 0 : index
    %c0_67 = arith.constant 0 : index
    %c0_68 = arith.constant 0 : index
    %127 = vector.load %arg15[%c0_66, %c0_67, %c0_68] : memref<1x1x5xf32, #tpu.memory_space<vmem>>, vector<1x1x5xf32>
    %128 = vector.shape_cast %127 : vector<1x1x5xf32> to vector<1x5xf32>
    %129 = vector.shape_cast %126 : vector<1x5xf32> to vector<1x1x5xf32>
    tpu.vector_store %arg15[%c0_66, %c0_67, %c0_68], %129 {strides = array<i32>} : memref<1x1x5xf32, #tpu.memory_space<vmem>>, vector<1x1x5xf32>,
    return
  }
  func.func @transform_0(%arg0: i32) -> (i32, i32, i32) {
    %c0_i32 = arith.constant 0 : i32
    %c0_i32_0 = arith.constant 0 : i32
    %c0_i32_1 = arith.constant 0 : i32
    return %arg0, %c0_i32, %c0_i32_0 : i32, i32, i32
  }
  func.func @transform_1(%arg0: i32) -> (i32, i32) {
    %c0_i32 = arith.constant 0 : i32
    %c0_i32_0 = arith.constant 0 : i32
    %c0_i32_1 = arith.constant 0 : i32
    return %c0_i32, %c0_i32_0 : i32, i32
  }
  func.func @transform_2(%arg0: i32) -> (i32, i32) {
    %c0_i32 = arith.constant 0 : i32
    %c0_i32_0 = arith.constant 0 : i32
    %c0_i32_1 = arith.constant 0 : i32
    return %c0_i32, %c0_i32_0 : i32, i32
  }
  func.func @transform_3(%arg0: i32) -> (i32, i32) {
    %c0_i32 = arith.constant 0 : i32
    %c0_i32_0 = arith.constant 0 : i32
    %c0_i32_1 = arith.constant 0 : i32
    return %c0_i32, %c0_i32_0 : i32, i32
  }
  func.func @transform_4(%arg0: i32) -> (i32, i32) {
    %c0_i32 = arith.constant 0 : i32
    %c0_i32_0 = arith.constant 0 : i32
    %c0_i32_1 = arith.constant 0 : i32
    return %c0_i32, %c0_i32_0 : i32, i32
  }
  func.func @transform_5(%arg0: i32) -> (i32, i32) {
    %c0_i32 = arith.constant 0 : i32
    %c0_i32_0 = arith.constant 0 : i32
    %c0_i32_1 = arith.constant 0 : i32
    return %c0_i32, %c0_i32_0 : i32, i32
  }
  func.func @transform_6(%arg0: i32) -> (i32, i32) {
    %c0_i32 = arith.constant 0 : i32
    %c0_i32_0 = arith.constant 0 : i32
    %c0_i32_1 = arith.constant 0 : i32
    return %c0_i32, %c0_i32_0 : i32, i32
  }
  func.func @transform_7(%arg0: i32) -> (i32, i32) {
    %c0_i32 = arith.constant 0 : i32
    %c0_i32_0 = arith.constant 0 : i32
    %c0_i32_1 = arith.constant 0 : i32
    return %c0_i32, %c0_i32_0 : i32, i32
  }
  func.func @transform_8(%arg0: i32) -> (i32, i32) {
    %c0_i32 = arith.constant 0 : i32
    %c0_i32_0 = arith.constant 0 : i32
    %c0_i32_1 = arith.constant 0 : i32
    return %c0_i32, %c0_i32_0 : i32, i32
  }
  func.func @transform_9(%arg0: i32) -> (i32, i32) {
    %c0_i32 = arith.constant 0 : i32
    %c0_i32_0 = arith.constant 0 : i32
    %c0_i32_1 = arith.constant 0 : i32
    return %c0_i32, %c0_i32_0 : i32, i32
  }
  func.func @transform_10(%arg0: i32) -> (i32, i32) {
    %c0_i32 = arith.constant 0 : i32
    %c0_i32_0 = arith.constant 0 : i32
    %c0_i32_1 = arith.constant 0 : i32
    return %c0_i32, %c0_i32_0 : i32, i32
  }
  func.func @transform_11(%arg0: i32) -> (i32, i32) {
    %c0_i32 = arith.constant 0 : i32
    %c0_i32_0 = arith.constant 0 : i32
    %c0_i32_1 = arith.constant 0 : i32
    return %c0_i32, %c0_i32_0 : i32, i32
  }
  func.func @transform_12(%arg0: i32) -> (i32, i32) {
    %c0_i32 = arith.constant 0 : i32
    %c0_i32_0 = arith.constant 0 : i32
    %c0_i32_1 = arith.constant 0 : i32
    return %c0_i32, %c0_i32_0 : i32, i32
  }
  func.func @transform_13(%arg0: i32) -> (i32, i32) {
    %c0_i32 = arith.constant 0 : i32
    %c0_i32_0 = arith.constant 0 : i32
    %c0_i32_1 = arith.constant 0 : i32
    return %c0_i32, %c0_i32_0 : i32, i32
  }
  func.func @transform_14(%arg0: i32) -> (i32, i32, i32) {
    %c0_i32 = arith.constant 0 : i32
    %c0_i32_0 = arith.constant 0 : i32
    %c0_i32_1 = arith.constant 0 : i32
    return %arg0, %c0_i32, %c0_i32_0 : i32, i32, i32
  }
}

</mosaic_0001>

<llo_original>
// kernel: _lambda_.6
$region0: #{_lambda_.6}
  #allocation0 [shape = 'u32[]', space=smem, size = 0x4, offset = 0x4, fixed_abs, tag = 'smem constant byte address 0x4 - core index']
  #allocation1 [shape = 'u32[72,128]{1,0:T(1,128)}', space=vmem, size = 0x9000, scoped, tag = 'internal scratch']
  %s0 = inlined_call_operand.vmem [shape: f32[2,63,8], index: 0, kind: input, shape index: {}]
  %s1 = inlined_call_operand.vmem [shape: f32[2,63,8], index: 1, kind: input, shape index: {}]
  %s2 = inlined_call_operand.vmem [shape: f32[8,32], index: 2, kind: input, shape index: {}]
  %s3 = inlined_call_operand.vmem [shape: f32[1,32], index: 3, kind: input, shape index: {}]
  %s4 = inlined_call_operand.vmem [shape: f32[2,63,32], index: 4, kind: output, shape index: {}]
  %s5 = sld [smem:[#allocation0]]
  $region49: #{_lambda_.6} parent=0
    _
  %s7 = ssub.s32 1, %s5
  %s8 = scalar_select 0, %s7, %s5
  loop: start=0, step=1, limit=4
  $region2: #{_lambda_.6} parent=0 // loop_pre_header
    _
  $region3: #{_lambda_.6} parent=0 // loop_header
    %s10 = sphi 0, %s14
    %p11 = scmp.ge.s32.totalorder %s10, 4
    %s20 = sphi 0, %s22
    %s23 = sphi 0, %s20
    %s24 = sphi 0, %s23
    %s40 = sphi 0, %s24
    %s46 = sphi 0, %s48
    %s49 = sphi 0, %s46
    %s50 = sphi 0, %s49
    %s66 = sphi 0, %s50
    %s70 = sphi 0, %s70
    %s72 = sphi 0, %s70
    %s73 = sphi 0, %s72
    %s87 = sphi 0, %s73
    %s91 = sphi 0, %s91
    %s93 = sphi 0, %s91
    %s94 = sphi 0, %s93
    %s108 = sphi 0, %s94
    %s114 = sphi 0, %s116
    %s117 = sphi 0, %s114
    %s118 = sphi 0, %s117
    %s134 = sphi 0, %s118
  $region4: #{_lambda_.6} parent=0 // loop_header_branch
    %13 = sbr.rel (%p11) target = $region8
  $region5: #{_lambda_.6} parent=0 // loop_body
    %s15 = ssub.s32 %s10, 1
    %s16 = ssub.s32 %s10, 2
    %s17 = sadd.s32 %s10, 1
    %s18 = ssub.s32 %s10, %s17
    %p19 = scmp.eq.s32.totalorder %s18, 0
    %s21 = sadd.s32 %s20, 1
    %s22 = scalar_select %p19, %s20, %s21
    %p25 = pneg %p19
    %p26 = scmp.eq.s32.totalorder %s10, 1
    %p27 = por %p25, %p26
    %p28 = scmp.ne.s32.totalorder %s20, %s23
    %p29 = scmp.eq.s32.totalorder %s10, 0
    %p30 = por %p28, %p29
    %p31 = scmp.ne.s32.totalorder %s20, %s23
    %p32 = scmp.eq.s32.totalorder %s15, 1
    %p33 = por %p31, %p32
    %p34 = scmp.ne.s32.totalorder %s23, %s24
    %p35 = scmp.eq.s32.totalorder %s15, 0
    %p36 = por %p34, %p35
    %p37 = scmp.ne.s32.totalorder %s23, %s24
    %p38 = scmp.eq.s32.totalorder %s16, 1
    %p39 = por %p37, %p38
    %p41 = scmp.ne.s32.totalorder %s24, %s40
    %p42 = scmp.eq.s32.totalorder %s16, 0
    %p43 = por %p41, %p42
    %s44 = ssub.s32 %s10, %s17
    %p45 = scmp.eq.s32.totalorder %s44, 0
    %s47 = sadd.s32 %s46, 1
    %s48 = scalar_select %p45, %s46, %s47
    %p51 = pneg %p45
    %p52 = scmp.eq.s32.totalorder %s10, 1
    %p53 = por %p51, %p52
    %p54 = scmp.ne.s32.totalorder %s46, %s49
    %p55 = scmp.eq.s32.totalorder %s10, 0
    %p56 = por %p54, %p55
    %p57 = scmp.ne.s32.totalorder %s46, %s49
    %p58 = scmp.eq.s32.totalorder %s15, 1
    %p59 = por %p57, %p58
    %p60 = scmp.ne.s32.totalorder %s49, %s50
    %p61 = scmp.eq.s32.totalorder %s15, 0
    %p62 = por %p60, %p61
    %p63 = scmp.ne.s32.totalorder %s49, %s50
    %p64 = scmp.eq.s32.totalorder %s16, 1
    %p65 = por %p63, %p64
    %p67 = scmp.ne.s32.totalorder %s50, %s66
    %p68 = scmp.eq.s32.totalorder %s16, 0
    %p69 = por %p67, %p68
    %s71 = sadd.s32 %s70, 1
    %p74 = scmp.eq.s32.totalorder %s10, 1
    %p75 = scmp.ne.s32.totalorder %s70, %s72
    %p76 = scmp.eq.s32.totalorder %s10, 0
    %p77 = por %p75, %p76
    %p78 = scmp.ne.s32.totalorder %s70, %s72
    %p79 = scmp.eq.s32.totalorder %s15, 1
    %p80 = por %p78, %p79
    %p81 = scmp.ne.s32.totalorder %s72, %s73
    %p82 = scmp.eq.s32.totalorder %s15, 0
    %p83 = por %p81, %p82
    %p84 = scmp.ne.s32.totalorder %s72, %s73
    %p85 = scmp.eq.s32.totalorder %s16, 1
    %p86 = por %p84, %p85
    %p88 = scmp.ne.s32.totalorder %s73, %s87
    %p89 = scmp.eq.s32.totalorder %s16, 0
    %p90 = por %p88, %p89
    %s92 = sadd.s32 %s91, 1
    %p95 = scmp.eq.s32.totalorder %s10, 1
    %p96 = scmp.ne.s32.totalorder %s91, %s93
    %p97 = scmp.eq.s32.totalorder %s10, 0
    %p98 = por %p96, %p97
    %p99 = scmp.ne.s32.totalorder %s91, %s93
    %p100 = scmp.eq.s32.totalorder %s15, 1
    %p101 = por %p99, %p100
    %p102 = scmp.ne.s32.totalorder %s93, %s94
    %p103 = scmp.eq.s32.totalorder %s15, 0
    %p104 = por %p102, %p103
    %p105 = scmp.ne.s32.totalorder %s93, %s94
    %p106 = scmp.eq.s32.totalorder %s16, 1
    %p107 = por %p105, %p106
    %p109 = scmp.ne.s32.totalorder %s94, %s108
    %p110 = scmp.eq.s32.totalorder %s16, 0
    %p111 = por %p109, %p110
    %s112 = ssub.s32 %s10, %s17
    %p113 = scmp.eq.s32.totalorder %s112, 0
    %s115 = sadd.s32 %s114, 1
    %s116 = scalar_select %p113, %s114, %s115
    %p119 = pneg %p113
    %p120 = scmp.eq.s32.totalorder %s10, 1
    %p121 = por %p119, %p120
    %p122 = scmp.ne.s32.totalorder %s114, %s117
    %p123 = scmp.eq.s32.totalorder %s10, 0
    %p124 = por %p122, %p123
    %p125 = scmp.ne.s32.totalorder %s114, %s117
    %p126 = scmp.eq.s32.totalorder %s15, 1
    %p127 = por %p125, %p126
    %p128 = scmp.ne.s32.totalorder %s117, %s118
    %p129 = scmp.eq.s32.totalorder %s15, 0
    %p130 = por %p128, %p129
    %p131 = scmp.ne.s32.totalorder %s117, %s118
    %p132 = scmp.eq.s32.totalorder %s16, 1
    %p133 = por %p131, %p132
    %p135 = scmp.ne.s32.totalorder %s118, %s134
    %p136 = scmp.eq.s32.totalorder %s16, 0
    %p137 = por %p135, %p136
    %p138 = scmp.le.s32.totalorder 1, %s10
    %p139 = scmp.lt.s32.totalorder %s10, 3
    %p140 = pnand %p138, %p139
    %p141 = pneg %p140
    // Predicated region
    $region9: #{_lambda_.6} parent=5 // pred_check
      _
    $region10: #{_lambda_.6} parent=5 // pred_check_branch
      %143 = sbr.rel (%p140) target = $region12
    $region11: #{_lambda_.6} parent=5 // pred_region
      %s144 = ssub.s32 %s10, 1
      // Predicated region
      $region13: #{_lambda_.6} parent=11 // pred_check
        %p145 = pneg %p83
      $region14: #{_lambda_.6} parent=11 // pred_check_branch
        %147 = sbr.rel (%p145) target = $region16
      $region15: #{_lambda_.6} parent=11 // pred_region
        _
      $region16: #{_lambda_.6} parent=11 // pred_fallthru
        _
      // Predicated region
      $region17: #{_lambda_.6} parent=11 // pred_check
        %p148 = pneg %p104
      $region18: #{_lambda_.6} parent=11 // pred_check_branch
        %150 = sbr.rel (%p148) target = $region20
      $region19: #{_lambda_.6} parent=11 // pred_region
        _
      $region20: #{_lambda_.6} parent=11 // pred_fallthru
        _
    $region12: #{_lambda_.6} parent=5 // pred_fallthru
      _
    %p151 = scmp.lt.s32.totalorder %s10, 2
    // Predicated region
    $region21: #{_lambda_.6} parent=5 // pred_check
      %p152 = pneg %p151
    $region22: #{_lambda_.6} parent=5 // pred_check_branch
      %154 = sbr.rel (%p152) target = $region24
    $region23: #{_lambda_.6} parent=5 // pred_region
      // Predicated region
      $region25: #{_lambda_.6} parent=23 // pred_check
        %p155 = pneg %p30
      $region26: #{_lambda_.6} parent=23 // pred_check_branch
        %157 = sbr.rel (%p155) target = $region28
      $region27: #{_lambda_.6} parent=23 // pred_region
        %p158 = scmp.lt.s32.totalorder %s10, 1
        %s159 = scalar_select %p158, %s10, 1
        %s160 = smul.addr %s159, 8
        %s161 = smul.addr %s160, 8
        %s162 = scalar_lea.vmem %s0, %s161
      $region28: #{_lambda_.6} parent=23 // pred_fallthru
        _
      // Predicated region
      $region29: #{_lambda_.6} parent=23 // pred_check
        %p163 = pneg %p56
      $region30: #{_lambda_.6} parent=23 // pred_check_branch
        %165 = sbr.rel (%p163) target = $region32
      $region31: #{_lambda_.6} parent=23 // pred_region
        %p166 = scmp.lt.s32.totalorder %s10, 1
        %s167 = scalar_select %p166, %s10, 1
        %s168 = smul.addr %s167, 8
        %s169 = smul.addr %s168, 8
        %s170 = scalar_lea.vmem %s1, %s169
      $region32: #{_lambda_.6} parent=23 // pred_fallthru
        _
    $region24: #{_lambda_.6} parent=5 // pred_fallthru
      _
    %p171 = scmp.le.s32.totalorder 1, %s10
    %p172 = scmp.lt.s32.totalorder %s10, 3
    %p173 = pnand %p171, %p172
    %p174 = pneg %p173
    // Predicated region
    $region33: #{_lambda_.6} parent=5 // pred_check
      _
    $region34: #{_lambda_.6} parent=5 // pred_check_branch
      %176 = sbr.rel (%p173) target = $region36
    $region35: #{_lambda_.6} parent=5 // pred_region
      %s177 = ssub.s32 %s10, 1
      %p178 = scmp.lt.s32.totalorder %s15, 1
      %s179 = scalar_select %p178, %s15, 1
      %s180 = smul.addr %s179, 8
      %s181 = smul.addr %s180, 8
      %s182 = scalar_lea.vmem %s0, %s181
      %p183 = pneg %p36
      %p184 = pneg %p33
      %p185 = scmp.lt.s32.totalorder %s15, 1
      %s186 = scalar_select %p185, %s15, 1
      %s187 = smul.addr %s186, 8
      %s188 = smul.addr %s187, 8
      %s189 = scalar_lea.vmem %s1, %s188
      %p190 = pneg %p62
      %p191 = pneg %p59
      %p192 = pneg %p83
      %p193 = pneg %p80
      %p194 = pneg %p104
      %p195 = pneg %p101
      %p196 = pneg %p130
      %p197 = pneg %p127
      %p198 = scmp.lt.s32.totalorder %s15, 1
      %s199 = scalar_select %p198, %s15, 1
      %s200 = smul.addr %s199, 8
      %s201 = smul.addr %s200, 8
      %s202 = scalar_lea.vmem %s4, %s201
      %p203 = scmp.lt.s32.totalorder %s15, 1
      %s204 = scalar_select %p203, %s15, 1
      %s205 = smul.addr %s204, 8
      %s206 = smul.addr %s205, 8
      %s207 = scalar_lea.vmem %s0, %s206
      %p208 = scmp.lt.s32.totalorder %s15, 1
      %s209 = scalar_select %p208, %s15, 1
      %s210 = smul.addr %s209, 8
      %s211 = smul.addr %s210, 8
      %s212 = scalar_lea.vmem %s1, %s211
      %p213 = scmp.lt.s32.totalorder %s15, 1
      %s214 = scalar_select %p213, %s15, 1
      %s215 = smul.addr %s214, 8
      %s216 = smul.addr %s215, 8
      %s217 = scalar_lea.vmem %s4, %s216
      %v218 = vld [vmem:[%s2] sm:$0xff]
      %v219 = vld [vmem:[%s3] sm:$0x1]
      %v220 = vld [vmem:[%s207] sm:$0xff]
      %v221 = vld [vmem:[%s207 + $0x8] sm:$0xff]
      %v222 = vld [vmem:[%s207 + $0x10] sm:$0xff]
      %v223 = vld [vmem:[%s207 + $0x18] sm:$0xff]
      %v224 = vld [vmem:[%s207 + $0x20] sm:$0xff]
      %v225 = vld [vmem:[%s207 + $0x28] sm:$0xff]
      %v226 = vld [vmem:[%s207 + $0x30] sm:$0xff]
      %v227 = vld [vmem:[%s207 + $0x38] sm:$0x7f]
      %v229 = vperm.slane %v219, 0
      %vm231 = vcmask 64512
      %v233 = vsel %vm231, %v220, 0
      %v236 = vsel %vm231, %v221, 0
      %v239 = vsel %vm231, %v222, 0
      %v242 = vsel %vm231, %v223, 0
      %v245 = vsel %vm231, %v224, 0
      %v248 = vsel %vm231, %v225, 0
      %v251 = vsel %vm231, %v226, 0
      %v254 = vsel %vm231, %v227, 0
      %256 = vmatpush.msra.mxu0 0.0
      %257 = vmatpush.msra.mxu0 0.0
      %258 = vmatpush.msra.mxu0 0.0
      %259 = vmatpush.msra.mxu0 0.0
      %260 = vmatpush.msra.mxu0 0.0
      %261 = vmatpush.msra.mxu0 0.0
      %262 = vmatpush.msra.mxu0 0.0
      %263 = vmatpush.msra.mxu0 0.0
      %264 = vmatpush.msra.mxu0 0.0
      %265 = vmatpush.msra.mxu0 0.0
      %266 = vmatpush.msra.mxu0 0.0
      %267 = vmatpush.msra.mxu0 0.0
      %268 = vmatpush.msra.mxu0 0.0
      %269 = vmatpush.msra.mxu0 0.0
      %270 = vmatpush.msra.mxu0 0.0
      %271 = vmatpush.msra.mxu0 %v218
      %272 = vmatmul.f32.gmra.mxu0 %v233
      %v273 = vpop.f32.mrf.mxu0
      %v274 = vadd.f32 %v229, %v273
      %275 = vmatmul.f32.gmra.mxu0 %v236
      %v276 = vpop.f32.mrf.mxu0
      %v277 = vadd.f32 %v229, %v276
      %278 = vmatmul.f32.gmra.mxu0 %v239
      %v279 = vpop.f32.mrf.mxu0
      %v280 = vadd.f32 %v229, %v279
      %281 = vmatmul.f32.gmra.mxu0 %v242
      %v282 = vpop.f32.mrf.mxu0
      %v283 = vadd.f32 %v229, %v282
      %284 = vmatmul.f32.gmra.mxu0 %v245
      %v285 = vpop.f32.mrf.mxu0
      %v286 = vadd.f32 %v229, %v285
      %287 = vmatmul.f32.gmra.mxu0 %v248
      %v288 = vpop.f32.mrf.mxu0
      %v289 = vadd.f32 %v229, %v288
      %290 = vmatmul.f32.gmra.mxu0 %v251
      %v291 = vpop.f32.mrf.mxu0
      %v292 = vadd.f32 %v229, %v291
      %293 = vmatmul.f32.gmra.mxu0 %v254
      %v294 = vpop.f32.mrf.mxu0
      %v295 = vadd.f32 %v229, %v294
      %296 = vdwg.mxu0
      %v297 = vld [vmem:[%s212] sm:$0xff]
      %v298 = vld [vmem:[%s212 + $0x8] sm:$0xff]
      %v299 = vld [vmem:[%s212 + $0x10] sm:$0xff]
      %v300 = vld [vmem:[%s212 + $0x18] sm:$0xff]
      %v301 = vld [vmem:[%s212 + $0x20] sm:$0xff]
      %v302 = vld [vmem:[%s212 + $0x28] sm:$0xff]
      %v303 = vld [vmem:[%s212 + $0x30] sm:$0xff]
      %v304 = vld [vmem:[%s212 + $0x38] sm:$0x7f]
      %v306 = vsel %vm231, %v297, 0
      %v309 = vsel %vm231, %v298, 0
      %v312 = vsel %vm231, %v299, 0
      %v315 = vsel %vm231, %v300, 0
      %v318 = vsel %vm231, %v301, 0
      %v321 = vsel %vm231, %v302, 0
      %v324 = vsel %vm231, %v303, 0
      %v327 = vsel %vm231, %v304, 0
      %329 = vmatpush.msra.mxu0 0.0
      %330 = vmatpush.msra.mxu0 0.0
      %331 = vmatpush.msra.mxu0 0.0
      %332 = vmatpush.msra.mxu0 0.0
      %333 = vmatpush.msra.mxu0 0.0
      %334 = vmatpush.msra.mxu0 0.0
      %335 = vmatpush.msra.mxu0 0.0
      %336 = vmatpush.msra.mxu0 0.0
      %337 = vmatpush.msra.mxu0 0.0
      %338 = vmatpush.msra.mxu0 0.0
      %339 = vmatpush.msra.mxu0 0.0
      %340 = vmatpush.msra.mxu0 0.0
      %341 = vmatpush.msra.mxu0 0.0
      %342 = vmatpush.msra.mxu0 0.0
      %343 = vmatpush.msra.mxu0 0.0
      %344 = vmatpush.msra.mxu0 %v218
      %345 = vmatmul.f32.gmra.mxu0 %v306
      %v346 = vpop.f32.mrf.mxu0
      %v347 = vadd.f32 %v229, %v346
      %348 = vmatmul.f32.gmra.mxu0 %v309
      %v349 = vpop.f32.mrf.mxu0
      %v350 = vadd.f32 %v229, %v349
      %351 = vmatmul.f32.gmra.mxu0 %v312
      %v352 = vpop.f32.mrf.mxu0
      %v353 = vadd.f32 %v229, %v352
      %354 = vmatmul.f32.gmra.mxu0 %v315
      %v355 = vpop.f32.mrf.mxu0
      %v356 = vadd.f32 %v229, %v355
      %357 = vmatmul.f32.gmra.mxu0 %v318
      %v358 = vpop.f32.mrf.mxu0
      %v359 = vadd.f32 %v229, %v358
      %360 = vmatmul.f32.gmra.mxu0 %v321
      %v361 = vpop.f32.mrf.mxu0
      %v362 = vadd.f32 %v229, %v361
      %363 = vmatmul.f32.gmra.mxu0 %v324
      %v364 = vpop.f32.mrf.mxu0
      %v365 = vadd.f32 %v229, %v364
      %366 = vmatmul.f32.gmra.mxu0 %v327
      %v367 = vpop.f32.mrf.mxu0
      %v368 = vadd.f32 %v229, %v367
      %369 = vdwg.mxu0
      %v370 = vmax.f32 %v274, %v347
      %v371 = vmax.f32 %v277, %v350
      %v372 = vmax.f32 %v280, %v353
      %v373 = vmax.f32 %v283, %v356
      %v374 = vmax.f32 %v286, %v359
      %v375 = vmax.f32 %v289, %v362
      %v376 = vmax.f32 %v292, %v365
      %v377 = vmax.f32 %v295, %v368
      %v378 = vmax.f32 %v370, 0.0
      %v379 = vmax.f32 %v371, 0.0
      %v380 = vmax.f32 %v372, 0.0
      %v381 = vmax.f32 %v373, 0.0
      %v382 = vmax.f32 %v374, 0.0
      %v383 = vmax.f32 %v375, 0.0
      %v384 = vmax.f32 %v376, 0.0
      %v385 = vmax.f32 %v377, 0.0
      %vm386 = vcmask 261120
      %387 = vst.msk [vmem:[%s217] sm:$0xff] %vm386, %v378
      %388 = vst.msk [vmem:[%s217 + $0x8] sm:$0xff] %vm386, %v379
      %389 = vst.msk [vmem:[%s217 + $0x10] sm:$0xff] %vm386, %v380
      %390 = vst.msk [vmem:[%s217 + $0x18] sm:$0xff] %vm386, %v381
      %391 = vst.msk [vmem:[%s217 + $0x20] sm:$0xff] %vm386, %v382
      %392 = vst.msk [vmem:[%s217 + $0x28] sm:$0xff] %vm386, %v383
      %393 = vst.msk [vmem:[%s217 + $0x30] sm:$0xff] %vm386, %v384
      %vm394 = vcmask 260096
      %395 = vst.msk [vmem:[%s217 + $0x38] sm:$0x7f] %vm394, %v385
      %p396 = scmp.lt.s32.totalorder %s15, 1
      %s397 = scalar_select %p396, %s15, 1
      %s398 = smul.addr %s397, 8
      %s399 = smul.addr %s398, 8
      %s400 = scalar_lea.vmem %s4, %s399
      // Predicated region
      $region37: #{_lambda_.6} parent=35 // pred_check
        %p401 = pneg %p127
      $region38: #{_lambda_.6} parent=35 // pred_check_branch
        %403 = sbr.rel (%p401) target = $region40
      $region39: #{_lambda_.6} parent=35 // pred_region
        _
      $region40: #{_lambda_.6} parent=35 // pred_fallthru
        _
    $region36: #{_lambda_.6} parent=5 // pred_fallthru
      _
    %p404 = scmp.le.s32.totalorder 2, %s10
    // Predicated region
    $region41: #{_lambda_.6} parent=5 // pred_check
      %p405 = pneg %p404
    $region42: #{_lambda_.6} parent=5 // pred_check_branch
      %407 = sbr.rel (%p405) target = $region44
    $region43: #{_lambda_.6} parent=5 // pred_region
      %s408 = ssub.s32 %s10, 2
      // Predicated region
      $region45: #{_lambda_.6} parent=43 // pred_check
        %p409 = pneg %p133
      $region46: #{_lambda_.6} parent=43 // pred_check_branch
        %411 = sbr.rel (%p409) target = $region48
      $region47: #{_lambda_.6} parent=43 // pred_region
        %p412 = scmp.lt.s32.totalorder %s16, 1
        %s413 = scalar_select %p412, %s16, 1
        %s414 = smul.addr %s413, 8
        %s415 = smul.addr %s414, 8
        %s416 = scalar_lea.vmem %s4, %s415
      $region48: #{_lambda_.6} parent=43 // pred_fallthru
        _
    $region44: #{_lambda_.6} parent=5 // pred_fallthru
      _
  $region6: #{_lambda_.6} parent=0 // loop_footer
    %s14 = sadd.s32 1, %s10
  $region7: #{_lambda_.6} parent=0 // loop_footer_branch
    %9 = sbr.rel target = $region3
  $region8: #{_lambda_.6} parent=0 // loop_exit
    _

// kernel: _lambda_.7
$region0: #{_lambda_.7}
  #allocation0 [shape = 'u32[]', space=smem, size = 0x4, offset = 0x4, fixed_abs, tag = 'smem constant byte address 0x4 - core index']
  #allocation1 [shape = 'u32[72,128]{1,0:T(1,128)}', space=vmem, size = 0x9000, scoped, tag = 'internal scratch']
  %s0 = inlined_call_operand.vmem [shape: f32[2,31,64], index: 0, kind: input, shape index: {}]
  %s1 = inlined_call_operand.vmem [shape: f32[2,31,64], index: 1, kind: input, shape index: {}]
  %s2 = inlined_call_operand.vmem [shape: f32[64,32], index: 2, kind: input, shape index: {}]
  %s3 = inlined_call_operand.vmem [shape: f32[1,32], index: 3, kind: input, shape index: {}]
  %s4 = inlined_call_operand.vmem [shape: f32[2,31,32], index: 4, kind: output, shape index: {}]
  %s5 = sld [smem:[#allocation0]]
  $region49: #{_lambda_.7} parent=0
    _
  %s7 = ssub.s32 1, %s5
  %s8 = scalar_select 0, %s7, %s5
  loop: start=0, step=1, limit=4
  $region2: #{_lambda_.7} parent=0 // loop_pre_header
    _
  $region3: #{_lambda_.7} parent=0 // loop_header
    %s10 = sphi 0, %s14
    %p11 = scmp.ge.s32.totalorder %s10, 4
    %s20 = sphi 0, %s22
    %s23 = sphi 0, %s20
    %s24 = sphi 0, %s23
    %s40 = sphi 0, %s24
    %s46 = sphi 0, %s48
    %s49 = sphi 0, %s46
    %s50 = sphi 0, %s49
    %s66 = sphi 0, %s50
    %s70 = sphi 0, %s70
    %s72 = sphi 0, %s70
    %s73 = sphi 0, %s72
    %s87 = sphi 0, %s73
    %s91 = sphi 0, %s91
    %s93 = sphi 0, %s91
    %s94 = sphi 0, %s93
    %s108 = sphi 0, %s94
    %s114 = sphi 0, %s116
    %s117 = sphi 0, %s114
    %s118 = sphi 0, %s117
    %s134 = sphi 0, %s118
  $region4: #{_lambda_.7} parent=0 // loop_header_branch
    %13 = sbr.rel (%p11) target = $region8
  $region5: #{_lambda_.7} parent=0 // loop_body
    %s15 = ssub.s32 %s10, 1
    %s16 = ssub.s32 %s10, 2
    %s17 = sadd.s32 %s10, 1
    %s18 = ssub.s32 %s10, %s17
    %p19 = scmp.eq.s32.totalorder %s18, 0
    %s21 = sadd.s32 %s20, 1
    %s22 = scalar_select %p19, %s20, %s21
    %p25 = pneg %p19
    %p26 = scmp.eq.s32.totalorder %s10, 1
    %p27 = por %p25, %p26
    %p28 = scmp.ne.s32.totalorder %s20, %s23
    %p29 = scmp.eq.s32.totalorder %s10, 0
    %p30 = por %p28, %p29
    %p31 = scmp.ne.s32.totalorder %s20, %s23
    %p32 = scmp.eq.s32.totalorder %s15, 1
    %p33 = por %p31, %p32
    %p34 = scmp.ne.s32.totalorder %s23, %s24
    %p35 = scmp.eq.s32.totalorder %s15, 0
    %p36 = por %p34, %p35
    %p37 = scmp.ne.s32.totalorder %s23, %s24
    %p38 = scmp.eq.s32.totalorder %s16, 1
    %p39 = por %p37, %p38
    %p41 = scmp.ne.s32.totalorder %s24, %s40
    %p42 = scmp.eq.s32.totalorder %s16, 0
    %p43 = por %p41, %p42
    %s44 = ssub.s32 %s10, %s17
    %p45 = scmp.eq.s32.totalorder %s44, 0
    %s47 = sadd.s32 %s46, 1
    %s48 = scalar_select %p45, %s46, %s47
    %p51 = pneg %p45
    %p52 = scmp.eq.s32.totalorder %s10, 1
    %p53 = por %p51, %p52
    %p54 = scmp.ne.s32.totalorder %s46, %s49
    %p55 = scmp.eq.s32.totalorder %s10, 0
    %p56 = por %p54, %p55
    %p57 = scmp.ne.s32.totalorder %s46, %s49
    %p58 = scmp.eq.s32.totalorder %s15, 1
    %p59 = por %p57, %p58
    %p60 = scmp.ne.s32.totalorder %s49, %s50
    %p61 = scmp.eq.s32.totalorder %s15, 0
    %p62 = por %p60, %p61
    %p63 = scmp.ne.s32.totalorder %s49, %s50
    %p64 = scmp.eq.s32.totalorder %s16, 1
    %p65 = por %p63, %p64
    %p67 = scmp.ne.s32.totalorder %s50, %s66
    %p68 = scmp.eq.s32.totalorder %s16, 0
    %p69 = por %p67, %p68
    %s71 = sadd.s32 %s70, 1
    %p74 = scmp.eq.s32.totalorder %s10, 1
    %p75 = scmp.ne.s32.totalorder %s70, %s72
    %p76 = scmp.eq.s32.totalorder %s10, 0
    %p77 = por %p75, %p76
    %p78 = scmp.ne.s32.totalorder %s70, %s72
    %p79 = scmp.eq.s32.totalorder %s15, 1
    %p80 = por %p78, %p79
    %p81 = scmp.ne.s32.totalorder %s72, %s73
    %p82 = scmp.eq.s32.totalorder %s15, 0
    %p83 = por %p81, %p82
    %p84 = scmp.ne.s32.totalorder %s72, %s73
    %p85 = scmp.eq.s32.totalorder %s16, 1
    %p86 = por %p84, %p85
    %p88 = scmp.ne.s32.totalorder %s73, %s87
    %p89 = scmp.eq.s32.totalorder %s16, 0
    %p90 = por %p88, %p89
    %s92 = sadd.s32 %s91, 1
    %p95 = scmp.eq.s32.totalorder %s10, 1
    %p96 = scmp.ne.s32.totalorder %s91, %s93
    %p97 = scmp.eq.s32.totalorder %s10, 0
    %p98 = por %p96, %p97
    %p99 = scmp.ne.s32.totalorder %s91, %s93
    %p100 = scmp.eq.s32.totalorder %s15, 1
    %p101 = por %p99, %p100
    %p102 = scmp.ne.s32.totalorder %s93, %s94
    %p103 = scmp.eq.s32.totalorder %s15, 0
    %p104 = por %p102, %p103
    %p105 = scmp.ne.s32.totalorder %s93, %s94
    %p106 = scmp.eq.s32.totalorder %s16, 1
    %p107 = por %p105, %p106
    %p109 = scmp.ne.s32.totalorder %s94, %s108
    %p110 = scmp.eq.s32.totalorder %s16, 0
    %p111 = por %p109, %p110
    %s112 = ssub.s32 %s10, %s17
    %p113 = scmp.eq.s32.totalorder %s112, 0
    %s115 = sadd.s32 %s114, 1
    %s116 = scalar_select %p113, %s114, %s115
    %p119 = pneg %p113
    %p120 = scmp.eq.s32.totalorder %s10, 1
    %p121 = por %p119, %p120
    %p122 = scmp.ne.s32.totalorder %s114, %s117
    %p123 = scmp.eq.s32.totalorder %s10, 0
    %p124 = por %p122, %p123
    %p125 = scmp.ne.s32.totalorder %s114, %s117
    %p126 = scmp.eq.s32.totalorder %s15, 1
    %p127 = por %p125, %p126
    %p128 = scmp.ne.s32.totalorder %s117, %s118
    %p129 = scmp.eq.s32.totalorder %s15, 0
    %p130 = por %p128, %p129
    %p131 = scmp.ne.s32.totalorder %s117, %s118
    %p132 = scmp.eq.s32.totalorder %s16, 1
    %p133 = por %p131, %p132
    %p135 = scmp.ne.s32.totalorder %s118, %s134
    %p136 = scmp.eq.s32.totalorder %s16, 0
    %p137 = por %p135, %p136
    %p138 = scmp.le.s32.totalorder 1, %s10
    %p139 = scmp.lt.s32.totalorder %s10, 3
    %p140 = pnand %p138, %p139
    %p141 = pneg %p140
    // Predicated region
    $region9: #{_lambda_.7} parent=5 // pred_check
      _
    $region10: #{_lambda_.7} parent=5 // pred_check_branch
      %143 = sbr.rel (%p140) target = $region12
    $region11: #{_lambda_.7} parent=5 // pred_region
      %s144 = ssub.s32 %s10, 1
      // Predicated region
      $region13: #{_lambda_.7} parent=11 // pred_check
        %p145 = pneg %p83
      $region14: #{_lambda_.7} parent=11 // pred_check_branch
        %147 = sbr.rel (%p145) target = $region16
      $region15: #{_lambda_.7} parent=11 // pred_region
        _
      $region16: #{_lambda_.7} parent=11 // pred_fallthru
        _
      // Predicated region
      $region17: #{_lambda_.7} parent=11 // pred_check
        %p148 = pneg %p104
      $region18: #{_lambda_.7} parent=11 // pred_check_branch
        %150 = sbr.rel (%p148) target = $region20
      $region19: #{_lambda_.7} parent=11 // pred_region
        _
      $region20: #{_lambda_.7} parent=11 // pred_fallthru
        _
    $region12: #{_lambda_.7} parent=5 // pred_fallthru
      _
    %p151 = scmp.lt.s32.totalorder %s10, 2
    // Predicated region
    $region21: #{_lambda_.7} parent=5 // pred_check
      %p152 = pneg %p151
    $region22: #{_lambda_.7} parent=5 // pred_check_branch
      %154 = sbr.rel (%p152) target = $region24
    $region23: #{_lambda_.7} parent=5 // pred_region
      // Predicated region
      $region25: #{_lambda_.7} parent=23 // pred_check
        %p155 = pneg %p30
      $region26: #{_lambda_.7} parent=23 // pred_check_branch
        %157 = sbr.rel (%p155) target = $region28
      $region27: #{_lambda_.7} parent=23 // pred_region
        %p158 = scmp.lt.s32.totalorder %s10, 1
        %s159 = scalar_select %p158, %s10, 1
        %s160 = smul.addr %s159, 4
        %s161 = smul.addr %s160, 8
        %s162 = scalar_lea.vmem %s0, %s161
      $region28: #{_lambda_.7} parent=23 // pred_fallthru
        _
      // Predicated region
      $region29: #{_lambda_.7} parent=23 // pred_check
        %p163 = pneg %p56
      $region30: #{_lambda_.7} parent=23 // pred_check_branch
        %165 = sbr.rel (%p163) target = $region32
      $region31: #{_lambda_.7} parent=23 // pred_region
        %p166 = scmp.lt.s32.totalorder %s10, 1
        %s167 = scalar_select %p166, %s10, 1
        %s168 = smul.addr %s167, 4
        %s169 = smul.addr %s168, 8
        %s170 = scalar_lea.vmem %s1, %s169
      $region32: #{_lambda_.7} parent=23 // pred_fallthru
        _
    $region24: #{_lambda_.7} parent=5 // pred_fallthru
      _
    %p171 = scmp.le.s32.totalorder 1, %s10
    %p172 = scmp.lt.s32.totalorder %s10, 3
    %p173 = pnand %p171, %p172
    %p174 = pneg %p173
    // Predicated region
    $region33: #{_lambda_.7} parent=5 // pred_check
      _
    $region34: #{_lambda_.7} parent=5 // pred_check_branch
      %176 = sbr.rel (%p173) target = $region36
    $region35: #{_lambda_.7} parent=5 // pred_region
      %s177 = ssub.s32 %s10, 1
      %p178 = scmp.lt.s32.totalorder %s15, 1
      %s179 = scalar_select %p178, %s15, 1
      %s180 = smul.addr %s179, 4
      %s181 = smul.addr %s180, 8
      %s182 = scalar_lea.vmem %s0, %s181
      %p183 = pneg %p36
      %p184 = pneg %p33
      %p185 = scmp.lt.s32.totalorder %s15, 1
      %s186 = scalar_select %p185, %s15, 1
      %s187 = smul.addr %s186, 4
      %s188 = smul.addr %s187, 8
      %s189 = scalar_lea.vmem %s1, %s188
      %p190 = pneg %p62
      %p191 = pneg %p59
      %p192 = pneg %p83
      %p193 = pneg %p80
      %p194 = pneg %p104
      %p195 = pneg %p101
      %p196 = pneg %p130
      %p197 = pneg %p127
      %p198 = scmp.lt.s32.totalorder %s15, 1
      %s199 = scalar_select %p198, %s15, 1
      %s200 = smul.addr %s199, 4
      %s201 = smul.addr %s200, 8
      %s202 = scalar_lea.vmem %s4, %s201
      %p203 = scmp.lt.s32.totalorder %s15, 1
      %s204 = scalar_select %p203, %s15, 1
      %s205 = smul.addr %s204, 4
      %s206 = smul.addr %s205, 8
      %s207 = scalar_lea.vmem %s0, %s206
      %p208 = scmp.lt.s32.totalorder %s15, 1
      %s209 = scalar_select %p208, %s15, 1
      %s210 = smul.addr %s209, 4
      %s211 = smul.addr %s210, 8
      %s212 = scalar_lea.vmem %s1, %s211
      %p213 = scmp.lt.s32.totalorder %s15, 1
      %s214 = scalar_select %p213, %s15, 1
      %s215 = smul.addr %s214, 4
      %s216 = smul.addr %s215, 8
      %s217 = scalar_lea.vmem %s4, %s216
      %v218 = vld [vmem:[%s2] sm:$0xff]
      %v219 = vld [vmem:[%s2 + $0x8] sm:$0xff]
      %v220 = vld [vmem:[%s2 + $0x10] sm:$0xff]
      %v221 = vld [vmem:[%s2 + $0x18] sm:$0xff]
      %v222 = vld [vmem:[%s2 + $0x20] sm:$0xff]
      %v223 = vld [vmem:[%s2 + $0x28] sm:$0xff]
      %v224 = vld [vmem:[%s2 + $0x30] sm:$0xff]
      %v225 = vld [vmem:[%s2 + $0x38] sm:$0xff]
      %v226 = vld [vmem:[%s3] sm:$0x1]
      %v227 = vld [vmem:[%s207] sm:$0xff]
      %v228 = vld [vmem:[%s207 + $0x8] sm:$0xff]
      %v229 = vld [vmem:[%s207 + $0x10] sm:$0xff]
      %v230 = vld [vmem:[%s207 + $0x18] sm:$0x7f]
      %v232 = vperm.slane %v226, 0
      %vm234 = vcmask 523264
      %v236 = vsel %vm234, %v227, 0
      %v239 = vsel %vm234, %v228, 0
      %v242 = vsel %vm234, %v229, 0
      %v245 = vsel %vm234, %v230, 0
      %247 = vmatpush.msra.mxu0 0.0
      %248 = vmatpush.msra.mxu0 0.0
      %249 = vmatpush.msra.mxu0 0.0
      %250 = vmatpush.msra.mxu0 0.0
      %251 = vmatpush.msra.mxu0 0.0
      %252 = vmatpush.msra.mxu0 0.0
      %253 = vmatpush.msra.mxu0 0.0
      %254 = vmatpush.msra.mxu0 0.0
      %255 = vmatpush.msra.mxu0 %v225
      %256 = vmatpush.msra.mxu0 %v224
      %257 = vmatpush.msra.mxu0 %v223
      %258 = vmatpush.msra.mxu0 %v222
      %259 = vmatpush.msra.mxu0 %v221
      %260 = vmatpush.msra.mxu0 %v220
      %261 = vmatpush.msra.mxu0 %v219
      %262 = vmatpush.msra.mxu0 %v218
      %263 = vmatmul.f32.gmra.mxu0 %v236
      %v264 = vpop.f32.mrf.mxu0
      %v265 = vadd.f32 %v232, %v264
      %266 = vmatmul.f32.gmra.mxu0 %v239
      %v267 = vpop.f32.mrf.mxu0
      %v268 = vadd.f32 %v232, %v267
      %269 = vmatmul.f32.gmra.mxu0 %v242
      %v270 = vpop.f32.mrf.mxu0
      %v271 = vadd.f32 %v232, %v270
      %272 = vmatmul.f32.gmra.mxu0 %v245
      %v273 = vpop.f32.mrf.mxu0
      %v274 = vadd.f32 %v232, %v273
      %275 = vdwg.mxu0
      %v276 = vld [vmem:[%s212] sm:$0xff]
      %v277 = vld [vmem:[%s212 + $0x8] sm:$0xff]
      %v278 = vld [vmem:[%s212 + $0x10] sm:$0xff]
      %v279 = vld [vmem:[%s212 + $0x18] sm:$0x7f]
      %v281 = vsel %vm234, %v276, 0
      %v284 = vsel %vm234, %v277, 0
      %v287 = vsel %vm234, %v278, 0
      %v290 = vsel %vm234, %v279, 0
      %292 = vmatpush.msra.mxu0 0.0
      %293 = vmatpush.msra.mxu0 0.0
      %294 = vmatpush.msra.mxu0 0.0
      %295 = vmatpush.msra.mxu0 0.0
      %296 = vmatpush.msra.mxu0 0.0
      %297 = vmatpush.msra.mxu0 0.0
      %298 = vmatpush.msra.mxu0 0.0
      %299 = vmatpush.msra.mxu0 0.0
      %300 = vmatpush.msra.mxu0 %v225
      %301 = vmatpush.msra.mxu0 %v224
      %302 = vmatpush.msra.mxu0 %v223
      %303 = vmatpush.msra.mxu0 %v222
      %304 = vmatpush.msra.mxu0 %v221
      %305 = vmatpush.msra.mxu0 %v220
      %306 = vmatpush.msra.mxu0 %v219
      %307 = vmatpush.msra.mxu0 %v218
      %308 = vmatmul.f32.gmra.mxu0 %v281
      %v309 = vpop.f32.mrf.mxu0
      %v310 = vadd.f32 %v232, %v309
      %311 = vmatmul.f32.gmra.mxu0 %v284
      %v312 = vpop.f32.mrf.mxu0
      %v313 = vadd.f32 %v232, %v312
      %314 = vmatmul.f32.gmra.mxu0 %v287
      %v315 = vpop.f32.mrf.mxu0
      %v316 = vadd.f32 %v232, %v315
      %317 = vmatmul.f32.gmra.mxu0 %v290
      %v318 = vpop.f32.mrf.mxu0
      %v319 = vadd.f32 %v232, %v318
      %320 = vdwg.mxu0
      %v321 = vmax.f32 %v265, %v310
      %v322 = vmax.f32 %v268, %v313
      %v323 = vmax.f32 %v271, %v316
      %v324 = vmax.f32 %v274, %v319
      %v325 = vmax.f32 %v321, 0.0
      %v326 = vmax.f32 %v322, 0.0
      %v327 = vmax.f32 %v323, 0.0
      %v328 = vmax.f32 %v324, 0.0
      %vm329 = vcmask 261120
      %330 = vst.msk [vmem:[%s217] sm:$0xff] %vm329, %v325
      %331 = vst.msk [vmem:[%s217 + $0x8] sm:$0xff] %vm329, %v326
      %332 = vst.msk [vmem:[%s217 + $0x10] sm:$0xff] %vm329, %v327
      %vm333 = vcmask 260096
      %334 = vst.msk [vmem:[%s217 + $0x18] sm:$0x7f] %vm333, %v328
      %p335 = scmp.lt.s32.totalorder %s15, 1
      %s336 = scalar_select %p335, %s15, 1
      %s337 = smul.addr %s336, 4
      %s338 = smul.addr %s337, 8
      %s339 = scalar_lea.vmem %s4, %s338
      // Predicated region
      $region37: #{_lambda_.7} parent=35 // pred_check
        %p340 = pneg %p127
      $region38: #{_lambda_.7} parent=35 // pred_check_branch
        %342 = sbr.rel (%p340) target = $region40
      $region39: #{_lambda_.7} parent=35 // pred_region
        _
      $region40: #{_lambda_.7} parent=35 // pred_fallthru
        _
    $region36: #{_lambda_.7} parent=5 // pred_fallthru
      _
    %p343 = scmp.le.s32.totalorder 2, %s10
    // Predicated region
    $region41: #{_lambda_.7} parent=5 // pred_check
      %p344 = pneg %p343
    $region42: #{_lambda_.7} parent=5 // pred_check_branch
      %346 = sbr.rel (%p344) target = $region44
    $region43: #{_lambda_.7} parent=5 // pred_region
      %s347 = ssub.s32 %s10, 2
      // Predicated region
      $region45: #{_lambda_.7} parent=43 // pred_check
        %p348 = pneg %p133
      $region46: #{_lambda_.7} parent=43 // pred_check_branch
        %350 = sbr.rel (%p348) target = $region48
      $region47: #{_lambda_.7} parent=43 // pred_region
        %p351 = scmp.lt.s32.totalorder %s16, 1
        %s352 = scalar_select %p351, %s16, 1
        %s353 = smul.addr %s352, 4
        %s354 = smul.addr %s353, 8
        %s355 = scalar_lea.vmem %s4, %s354
      $region48: #{_lambda_.7} parent=43 // pred_fallthru
        _
    $region44: #{_lambda_.7} parent=5 // pred_fallthru
      _
  $region6: #{_lambda_.7} parent=0 // loop_footer
    %s14 = sadd.s32 1, %s10
  $region7: #{_lambda_.7} parent=0 // loop_footer_branch
    %9 = sbr.rel target = $region3
  $region8: #{_lambda_.7} parent=0 // loop_exit
    _

// kernel: _lambda_.8
$region0: #{_lambda_.8}
  #allocation0 [shape = 'u32[]', space=smem, size = 0x4, offset = 0x4, fixed_abs, tag = 'smem constant byte address 0x4 - core index']
  #allocation1 [shape = 'u32[72,128]{1,0:T(1,128)}', space=vmem, size = 0x9000, scoped, tag = 'internal scratch']
  %s0 = inlined_call_operand.vmem [shape: f32[2,15,64], index: 0, kind: input, shape index: {}]
  %s1 = inlined_call_operand.vmem [shape: f32[2,15,64], index: 1, kind: input, shape index: {}]
  %s2 = inlined_call_operand.vmem [shape: f32[64,32], index: 2, kind: input, shape index: {}]
  %s3 = inlined_call_operand.vmem [shape: f32[1,32], index: 3, kind: input, shape index: {}]
  %s4 = inlined_call_operand.vmem [shape: f32[2,15,32], index: 4, kind: output, shape index: {}]
  %s5 = sld [smem:[#allocation0]]
  $region49: #{_lambda_.8} parent=0
    _
  %s7 = ssub.s32 1, %s5
  %s8 = scalar_select 0, %s7, %s5
  loop: start=0, step=1, limit=4
  $region2: #{_lambda_.8} parent=0 // loop_pre_header
    _
  $region3: #{_lambda_.8} parent=0 // loop_header
    %s10 = sphi 0, %s14
    %p11 = scmp.ge.s32.totalorder %s10, 4
    %s20 = sphi 0, %s22
    %s23 = sphi 0, %s20
    %s24 = sphi 0, %s23
    %s40 = sphi 0, %s24
    %s46 = sphi 0, %s48
    %s49 = sphi 0, %s46
    %s50 = sphi 0, %s49
    %s66 = sphi 0, %s50
    %s70 = sphi 0, %s70
    %s72 = sphi 0, %s70
    %s73 = sphi 0, %s72
    %s87 = sphi 0, %s73
    %s91 = sphi 0, %s91
    %s93 = sphi 0, %s91
    %s94 = sphi 0, %s93
    %s108 = sphi 0, %s94
    %s114 = sphi 0, %s116
    %s117 = sphi 0, %s114
    %s118 = sphi 0, %s117
    %s134 = sphi 0, %s118
  $region4: #{_lambda_.8} parent=0 // loop_header_branch
    %13 = sbr.rel (%p11) target = $region8
  $region5: #{_lambda_.8} parent=0 // loop_body
    %s15 = ssub.s32 %s10, 1
    %s16 = ssub.s32 %s10, 2
    %s17 = sadd.s32 %s10, 1
    %s18 = ssub.s32 %s10, %s17
    %p19 = scmp.eq.s32.totalorder %s18, 0
    %s21 = sadd.s32 %s20, 1
    %s22 = scalar_select %p19, %s20, %s21
    %p25 = pneg %p19
    %p26 = scmp.eq.s32.totalorder %s10, 1
    %p27 = por %p25, %p26
    %p28 = scmp.ne.s32.totalorder %s20, %s23
    %p29 = scmp.eq.s32.totalorder %s10, 0
    %p30 = por %p28, %p29
    %p31 = scmp.ne.s32.totalorder %s20, %s23
    %p32 = scmp.eq.s32.totalorder %s15, 1
    %p33 = por %p31, %p32
    %p34 = scmp.ne.s32.totalorder %s23, %s24
    %p35 = scmp.eq.s32.totalorder %s15, 0
    %p36 = por %p34, %p35
    %p37 = scmp.ne.s32.totalorder %s23, %s24
    %p38 = scmp.eq.s32.totalorder %s16, 1
    %p39 = por %p37, %p38
    %p41 = scmp.ne.s32.totalorder %s24, %s40
    %p42 = scmp.eq.s32.totalorder %s16, 0
    %p43 = por %p41, %p42
    %s44 = ssub.s32 %s10, %s17
    %p45 = scmp.eq.s32.totalorder %s44, 0
    %s47 = sadd.s32 %s46, 1
    %s48 = scalar_select %p45, %s46, %s47
    %p51 = pneg %p45
    %p52 = scmp.eq.s32.totalorder %s10, 1
    %p53 = por %p51, %p52
    %p54 = scmp.ne.s32.totalorder %s46, %s49
    %p55 = scmp.eq.s32.totalorder %s10, 0
    %p56 = por %p54, %p55
    %p57 = scmp.ne.s32.totalorder %s46, %s49
    %p58 = scmp.eq.s32.totalorder %s15, 1
    %p59 = por %p57, %p58
    %p60 = scmp.ne.s32.totalorder %s49, %s50
    %p61 = scmp.eq.s32.totalorder %s15, 0
    %p62 = por %p60, %p61
    %p63 = scmp.ne.s32.totalorder %s49, %s50
    %p64 = scmp.eq.s32.totalorder %s16, 1
    %p65 = por %p63, %p64
    %p67 = scmp.ne.s32.totalorder %s50, %s66
    %p68 = scmp.eq.s32.totalorder %s16, 0
    %p69 = por %p67, %p68
    %s71 = sadd.s32 %s70, 1
    %p74 = scmp.eq.s32.totalorder %s10, 1
    %p75 = scmp.ne.s32.totalorder %s70, %s72
    %p76 = scmp.eq.s32.totalorder %s10, 0
    %p77 = por %p75, %p76
    %p78 = scmp.ne.s32.totalorder %s70, %s72
    %p79 = scmp.eq.s32.totalorder %s15, 1
    %p80 = por %p78, %p79
    %p81 = scmp.ne.s32.totalorder %s72, %s73
    %p82 = scmp.eq.s32.totalorder %s15, 0
    %p83 = por %p81, %p82
    %p84 = scmp.ne.s32.totalorder %s72, %s73
    %p85 = scmp.eq.s32.totalorder %s16, 1
    %p86 = por %p84, %p85
    %p88 = scmp.ne.s32.totalorder %s73, %s87
    %p89 = scmp.eq.s32.totalorder %s16, 0
    %p90 = por %p88, %p89
    %s92 = sadd.s32 %s91, 1
    %p95 = scmp.eq.s32.totalorder %s10, 1
    %p96 = scmp.ne.s32.totalorder %s91, %s93
    %p97 = scmp.eq.s32.totalorder %s10, 0
    %p98 = por %p96, %p97
    %p99 = scmp.ne.s32.totalorder %s91, %s93
    %p100 = scmp.eq.s32.totalorder %s15, 1
    %p101 = por %p99, %p100
    %p102 = scmp.ne.s32.totalorder %s93, %s94
    %p103 = scmp.eq.s32.totalorder %s15, 0
    %p104 = por %p102, %p103
    %p105 = scmp.ne.s32.totalorder %s93, %s94
    %p106 = scmp.eq.s32.totalorder %s16, 1
    %p107 = por %p105, %p106
    %p109 = scmp.ne.s32.totalorder %s94, %s108
    %p110 = scmp.eq.s32.totalorder %s16, 0
    %p111 = por %p109, %p110
    %s112 = ssub.s32 %s10, %s17
    %p113 = scmp.eq.s32.totalorder %s112, 0
    %s115 = sadd.s32 %s114, 1
    %s116 = scalar_select %p113, %s114, %s115
    %p119 = pneg %p113
    %p120 = scmp.eq.s32.totalorder %s10, 1
    %p121 = por %p119, %p120
    %p122 = scmp.ne.s32.totalorder %s114, %s117
    %p123 = scmp.eq.s32.totalorder %s10, 0
    %p124 = por %p122, %p123
    %p125 = scmp.ne.s32.totalorder %s114, %s117
    %p126 = scmp.eq.s32.totalorder %s15, 1
    %p127 = por %p125, %p126
    %p128 = scmp.ne.s32.totalorder %s117, %s118
    %p129 = scmp.eq.s32.totalorder %s15, 0
    %p130 = por %p128, %p129
    %p131 = scmp.ne.s32.totalorder %s117, %s118
    %p132 = scmp.eq.s32.totalorder %s16, 1
    %p133 = por %p131, %p132
    %p135 = scmp.ne.s32.totalorder %s118, %s134
    %p136 = scmp.eq.s32.totalorder %s16, 0
    %p137 = por %p135, %p136
    %p138 = scmp.le.s32.totalorder 1, %s10
    %p139 = scmp.lt.s32.totalorder %s10, 3
    %p140 = pnand %p138, %p139
    %p141 = pneg %p140
    // Predicated region
    $region9: #{_lambda_.8} parent=5 // pred_check
      _
    $region10: #{_lambda_.8} parent=5 // pred_check_branch
      %143 = sbr.rel (%p140) target = $region12
    $region11: #{_lambda_.8} parent=5 // pred_region
      %s144 = ssub.s32 %s10, 1
      // Predicated region
      $region13: #{_lambda_.8} parent=11 // pred_check
        %p145 = pneg %p83
      $region14: #{_lambda_.8} parent=11 // pred_check_branch
        %147 = sbr.rel (%p145) target = $region16
      $region15: #{_lambda_.8} parent=11 // pred_region
        _
      $region16: #{_lambda_.8} parent=11 // pred_fallthru
        _
      // Predicated region
      $region17: #{_lambda_.8} parent=11 // pred_check
        %p148 = pneg %p104
      $region18: #{_lambda_.8} parent=11 // pred_check_branch
        %150 = sbr.rel (%p148) target = $region20
      $region19: #{_lambda_.8} parent=11 // pred_region
        _
      $region20: #{_lambda_.8} parent=11 // pred_fallthru
        _
    $region12: #{_lambda_.8} parent=5 // pred_fallthru
      _
    %p151 = scmp.lt.s32.totalorder %s10, 2
    // Predicated region
    $region21: #{_lambda_.8} parent=5 // pred_check
      %p152 = pneg %p151
    $region22: #{_lambda_.8} parent=5 // pred_check_branch
      %154 = sbr.rel (%p152) target = $region24
    $region23: #{_lambda_.8} parent=5 // pred_region
      // Predicated region
      $region25: #{_lambda_.8} parent=23 // pred_check
        %p155 = pneg %p30
      $region26: #{_lambda_.8} parent=23 // pred_check_branch
        %157 = sbr.rel (%p155) target = $region28
      $region27: #{_lambda_.8} parent=23 // pred_region
        %p158 = scmp.lt.s32.totalorder %s10, 1
        %s159 = scalar_select %p158, %s10, 1
        %s160 = smul.addr %s159, 2
        %s161 = smul.addr %s160, 8
        %s162 = scalar_lea.vmem %s0, %s161
      $region28: #{_lambda_.8} parent=23 // pred_fallthru
        _
      // Predicated region
      $region29: #{_lambda_.8} parent=23 // pred_check
        %p163 = pneg %p56
      $region30: #{_lambda_.8} parent=23 // pred_check_branch
        %165 = sbr.rel (%p163) target = $region32
      $region31: #{_lambda_.8} parent=23 // pred_region
        %p166 = scmp.lt.s32.totalorder %s10, 1
        %s167 = scalar_select %p166, %s10, 1
        %s168 = smul.addr %s167, 2
        %s169 = smul.addr %s168, 8
        %s170 = scalar_lea.vmem %s1, %s169
      $region32: #{_lambda_.8} parent=23 // pred_fallthru
        _
    $region24: #{_lambda_.8} parent=5 // pred_fallthru
      _
    %p171 = scmp.le.s32.totalorder 1, %s10
    %p172 = scmp.lt.s32.totalorder %s10, 3
    %p173 = pnand %p171, %p172
    %p174 = pneg %p173
    // Predicated region
    $region33: #{_lambda_.8} parent=5 // pred_check
      _
    $region34: #{_lambda_.8} parent=5 // pred_check_branch
      %176 = sbr.rel (%p173) target = $region36
    $region35: #{_lambda_.8} parent=5 // pred_region
      %s177 = ssub.s32 %s10, 1
      %p178 = scmp.lt.s32.totalorder %s15, 1
      %s179 = scalar_select %p178, %s15, 1
      %s180 = smul.addr %s179, 2
      %s181 = smul.addr %s180, 8
      %s182 = scalar_lea.vmem %s0, %s181
      %p183 = pneg %p36
      %p184 = pneg %p33
      %p185 = scmp.lt.s32.totalorder %s15, 1
      %s186 = scalar_select %p185, %s15, 1
      %s187 = smul.addr %s186, 2
      %s188 = smul.addr %s187, 8
      %s189 = scalar_lea.vmem %s1, %s188
      %p190 = pneg %p62
      %p191 = pneg %p59
      %p192 = pneg %p83
      %p193 = pneg %p80
      %p194 = pneg %p104
      %p195 = pneg %p101
      %p196 = pneg %p130
      %p197 = pneg %p127
      %p198 = scmp.lt.s32.totalorder %s15, 1
      %s199 = scalar_select %p198, %s15, 1
      %s200 = smul.addr %s199, 2
      %s201 = smul.addr %s200, 8
      %s202 = scalar_lea.vmem %s4, %s201
      %p203 = scmp.lt.s32.totalorder %s15, 1
      %s204 = scalar_select %p203, %s15, 1
      %s205 = smul.addr %s204, 2
      %s206 = smul.addr %s205, 8
      %s207 = scalar_lea.vmem %s0, %s206
      %p208 = scmp.lt.s32.totalorder %s15, 1
      %s209 = scalar_select %p208, %s15, 1
      %s210 = smul.addr %s209, 2
      %s211 = smul.addr %s210, 8
      %s212 = scalar_lea.vmem %s1, %s211
      %p213 = scmp.lt.s32.totalorder %s15, 1
      %s214 = scalar_select %p213, %s15, 1
      %s215 = smul.addr %s214, 2
      %s216 = smul.addr %s215, 8
      %s217 = scalar_lea.vmem %s4, %s216
      %v218 = vld [vmem:[%s2] sm:$0xff]
      %v219 = vld [vmem:[%s2 + $0x8] sm:$0xff]
      %v220 = vld [vmem:[%s2 + $0x10] sm:$0xff]
      %v221 = vld [vmem:[%s2 + $0x18] sm:$0xff]
      %v222 = vld [vmem:[%s2 + $0x20] sm:$0xff]
      %v223 = vld [vmem:[%s2 + $0x28] sm:$0xff]
      %v224 = vld [vmem:[%s2 + $0x30] sm:$0xff]
      %v225 = vld [vmem:[%s2 + $0x38] sm:$0xff]
      %v226 = vld [vmem:[%s3] sm:$0x1]
      %v227 = vld [vmem:[%s207] sm:$0xff]
      %v228 = vld [vmem:[%s207 + $0x8] sm:$0x7f]
      %v230 = vperm.slane %v226, 0
      %vm232 = vcmask 523264
      %v234 = vsel %vm232, %v227, 0
      %v237 = vsel %vm232, %v228, 0
      %239 = vmatpush.msra.mxu0 0.0
      %240 = vmatpush.msra.mxu0 0.0
      %241 = vmatpush.msra.mxu0 0.0
      %242 = vmatpush.msra.mxu0 0.0
      %243 = vmatpush.msra.mxu0 0.0
      %244 = vmatpush.msra.mxu0 0.0
      %245 = vmatpush.msra.mxu0 0.0
      %246 = vmatpush.msra.mxu0 0.0
      %247 = vmatpush.msra.mxu0 %v225
      %248 = vmatpush.msra.mxu0 %v224
      %249 = vmatpush.msra.mxu0 %v223
      %250 = vmatpush.msra.mxu0 %v222
      %251 = vmatpush.msra.mxu0 %v221
      %252 = vmatpush.msra.mxu0 %v220
      %253 = vmatpush.msra.mxu0 %v219
      %254 = vmatpush.msra.mxu0 %v218
      %255 = vmatmul.f32.gmra.mxu0 %v234
      %v256 = vpop.f32.mrf.mxu0
      %v257 = vadd.f32 %v230, %v256
      %258 = vmatmul.f32.gmra.mxu0 %v237
      %v259 = vpop.f32.mrf.mxu0
      %v260 = vadd.f32 %v230, %v259
      %261 = vdwg.mxu0
      %v262 = vld [vmem:[%s212] sm:$0xff]
      %v263 = vld [vmem:[%s212 + $0x8] sm:$0x7f]
      %v265 = vsel %vm232, %v262, 0
      %v268 = vsel %vm232, %v263, 0
      %270 = vmatpush.msra.mxu0 0.0
      %271 = vmatpush.msra.mxu0 0.0
      %272 = vmatpush.msra.mxu0 0.0
      %273 = vmatpush.msra.mxu0 0.0
      %274 = vmatpush.msra.mxu0 0.0
      %275 = vmatpush.msra.mxu0 0.0
      %276 = vmatpush.msra.mxu0 0.0
      %277 = vmatpush.msra.mxu0 0.0
      %278 = vmatpush.msra.mxu0 %v225
      %279 = vmatpush.msra.mxu0 %v224
      %280 = vmatpush.msra.mxu0 %v223
      %281 = vmatpush.msra.mxu0 %v222
      %282 = vmatpush.msra.mxu0 %v221
      %283 = vmatpush.msra.mxu0 %v220
      %284 = vmatpush.msra.mxu0 %v219
      %285 = vmatpush.msra.mxu0 %v218
      %286 = vmatmul.f32.gmra.mxu0 %v265
      %v287 = vpop.f32.mrf.mxu0
      %v288 = vadd.f32 %v230, %v287
      %289 = vmatmul.f32.gmra.mxu0 %v268
      %v290 = vpop.f32.mrf.mxu0
      %v291 = vadd.f32 %v230, %v290
      %292 = vdwg.mxu0
      %v293 = vmax.f32 %v257, %v288
      %v294 = vmax.f32 %v260, %v291
      %v295 = vmax.f32 %v293, 0.0
      %v296 = vmax.f32 %v294, 0.0
      %vm297 = vcmask 261120
      %298 = vst.msk [vmem:[%s217] sm:$0xff] %vm297, %v295
      %vm299 = vcmask 260096
      %300 = vst.msk [vmem:[%s217 + $0x8] sm:$0x7f] %vm299, %v296
      %p301 = scmp.lt.s32.totalorder %s15, 1
      %s302 = scalar_select %p301, %s15, 1
      %s303 = smul.addr %s302, 2
      %s304 = smul.addr %s303, 8
      %s305 = scalar_lea.vmem %s4, %s304
      // Predicated region
      $region37: #{_lambda_.8} parent=35 // pred_check
        %p306 = pneg %p127
      $region38: #{_lambda_.8} parent=35 // pred_check_branch
        %308 = sbr.rel (%p306) target = $region40
      $region39: #{_lambda_.8} parent=35 // pred_region
        _
      $region40: #{_lambda_.8} parent=35 // pred_fallthru
        _
    $region36: #{_lambda_.8} parent=5 // pred_fallthru
      _
    %p309 = scmp.le.s32.totalorder 2, %s10
    // Predicated region
    $region41: #{_lambda_.8} parent=5 // pred_check
      %p310 = pneg %p309
    $region42: #{_lambda_.8} parent=5 // pred_check_branch
      %312 = sbr.rel (%p310) target = $region44
    $region43: #{_lambda_.8} parent=5 // pred_region
      %s313 = ssub.s32 %s10, 2
      // Predicated region
      $region45: #{_lambda_.8} parent=43 // pred_check
        %p314 = pneg %p133
      $region46: #{_lambda_.8} parent=43 // pred_check_branch
        %316 = sbr.rel (%p314) target = $region48
      $region47: #{_lambda_.8} parent=43 // pred_region
        %p317 = scmp.lt.s32.totalorder %s16, 1
        %s318 = scalar_select %p317, %s16, 1
        %s319 = smul.addr %s318, 2
        %s320 = smul.addr %s319, 8
        %s321 = scalar_lea.vmem %s4, %s320
      $region48: #{_lambda_.8} parent=43 // pred_fallthru
        _
    $region44: #{_lambda_.8} parent=5 // pred_fallthru
      _
  $region6: #{_lambda_.8} parent=0 // loop_footer
    %s14 = sadd.s32 1, %s10
  $region7: #{_lambda_.8} parent=0 // loop_footer_branch
    %9 = sbr.rel target = $region3
  $region8: #{_lambda_.8} parent=0 // loop_exit
    _

// kernel: _lambda_.9
$region0: #{_lambda_.9}
  #allocation0 [shape = 'u32[]', space=smem, size = 0x4, offset = 0x4, fixed_abs, tag = 'smem constant byte address 0x4 - core index']
  #allocation1 [shape = 'u32[72,128]{1,0:T(1,128)}', space=vmem, size = 0x9000, scoped, tag = 'internal scratch']
  %s0 = inlined_call_operand.vmem [shape: f32[2,15,32], index: 0, kind: input, shape index: {}]
  %s1 = inlined_call_operand.vmem [shape: f32[32,96], index: 1, kind: input, shape index: {}]
  %s2 = inlined_call_operand.vmem [shape: f32[1,96], index: 2, kind: input, shape index: {}]
  %s3 = inlined_call_operand.vmem [shape: f32[32,32], index: 3, kind: input, shape index: {}]
  %s4 = inlined_call_operand.vmem [shape: f32[1,32], index: 4, kind: input, shape index: {}, may-alias: {4,6,10,12}]
  %s5 = inlined_call_operand.vmem [shape: f32[1,32], index: 5, kind: input, shape index: {}, may-alias: {5,11}]
  %s6 = inlined_call_operand.vmem [shape: f32[1,32], index: 6, kind: input, shape index: {}, may-alias: {4,6,10,12}]
  %s7 = inlined_call_operand.vmem [shape: f32[32,16], index: 7, kind: input, shape index: {}]
  %s8 = inlined_call_operand.vmem [shape: f32[1,16], index: 8, kind: input, shape index: {}]
  %s9 = inlined_call_operand.vmem [shape: f32[16,32], index: 9, kind: input, shape index: {}]
  %s10 = inlined_call_operand.vmem [shape: f32[1,32], index: 10, kind: input, shape index: {}, may-alias: {4,6,10,12}]
  %s11 = inlined_call_operand.vmem [shape: f32[1,32], index: 11, kind: input, shape index: {}, may-alias: {5,11}]
  %s12 = inlined_call_operand.vmem [shape: f32[1,32], index: 12, kind: input, shape index: {}, may-alias: {4,6,10,12}]
  %s13 = inlined_call_operand.vmem [shape: f32[2,15,32], index: 13, kind: output, shape index: {}]
  %s14 = sld [smem:[#allocation0]]
  $region85: #{_lambda_.9} parent=0
    _
  %s16 = ssub.s32 1, %s14
  %s17 = scalar_select 0, %s16, %s14
  loop: start=0, step=1, limit=4
  $region2: #{_lambda_.9} parent=0 // loop_pre_header
    _
  $region3: #{_lambda_.9} parent=0 // loop_header
    %s19 = sphi 0, %s23
    %p20 = scmp.ge.s32.totalorder %s19, 4
    %s29 = sphi 0, %s31
    %s32 = sphi 0, %s29
    %s33 = sphi 0, %s32
    %s49 = sphi 0, %s33
    %s53 = sphi 0, %s53
    %s55 = sphi 0, %s53
    %s56 = sphi 0, %s55
    %s70 = sphi 0, %s56
    %s74 = sphi 0, %s74
    %s76 = sphi 0, %s74
    %s77 = sphi 0, %s76
    %s91 = sphi 0, %s77
    %s95 = sphi 0, %s95
    %s97 = sphi 0, %s95
    %s98 = sphi 0, %s97
    %s112 = sphi 0, %s98
    %s116 = sphi 0, %s116
    %s118 = sphi 0, %s116
    %s119 = sphi 0, %s118
    %s133 = sphi 0, %s119
    %s137 = sphi 0, %s137
    %s139 = sphi 0, %s137
    %s140 = sphi 0, %s139
    %s154 = sphi 0, %s140
    %s158 = sphi 0, %s158
    %s160 = sphi 0, %s158
    %s161 = sphi 0, %s160
    %s175 = sphi 0, %s161
    %s179 = sphi 0, %s179
    %s181 = sphi 0, %s179
    %s182 = sphi 0, %s181
    %s196 = sphi 0, %s182
    %s200 = sphi 0, %s200
    %s202 = sphi 0, %s200
    %s203 = sphi 0, %s202
    %s217 = sphi 0, %s203
    %s221 = sphi 0, %s221
    %s223 = sphi 0, %s221
    %s224 = sphi 0, %s223
    %s238 = sphi 0, %s224
    %s242 = sphi 0, %s242
    %s244 = sphi 0, %s242
    %s245 = sphi 0, %s244
    %s259 = sphi 0, %s245
    %s263 = sphi 0, %s263
    %s265 = sphi 0, %s263
    %s266 = sphi 0, %s265
    %s280 = sphi 0, %s266
    %s284 = sphi 0, %s284
    %s286 = sphi 0, %s284
    %s287 = sphi 0, %s286
    %s301 = sphi 0, %s287
    %s307 = sphi 0, %s309
    %s310 = sphi 0, %s307
    %s311 = sphi 0, %s310
    %s327 = sphi 0, %s311
  $region4: #{_lambda_.9} parent=0 // loop_header_branch
    %22 = sbr.rel (%p20) target = $region8
  $region5: #{_lambda_.9} parent=0 // loop_body
    %s24 = ssub.s32 %s19, 1
    %s25 = ssub.s32 %s19, 2
    %s26 = sadd.s32 %s19, 1
    %s27 = ssub.s32 %s19, %s26
    %p28 = scmp.eq.s32.totalorder %s27, 0
    %s30 = sadd.s32 %s29, 1
    %s31 = scalar_select %p28, %s29, %s30
    %p34 = pneg %p28
    %p35 = scmp.eq.s32.totalorder %s19, 1
    %p36 = por %p34, %p35
    %p37 = scmp.ne.s32.totalorder %s29, %s32
    %p38 = scmp.eq.s32.totalorder %s19, 0
    %p39 = por %p37, %p38
    %p40 = scmp.ne.s32.totalorder %s29, %s32
    %p41 = scmp.eq.s32.totalorder %s24, 1
    %p42 = por %p40, %p41
    %p43 = scmp.ne.s32.totalorder %s32, %s33
    %p44 = scmp.eq.s32.totalorder %s24, 0
    %p45 = por %p43, %p44
    %p46 = scmp.ne.s32.totalorder %s32, %s33
    %p47 = scmp.eq.s32.totalorder %s25, 1
    %p48 = por %p46, %p47
    %p50 = scmp.ne.s32.totalorder %s33, %s49
    %p51 = scmp.eq.s32.totalorder %s25, 0
    %p52 = por %p50, %p51
    %s54 = sadd.s32 %s53, 1
    %p57 = scmp.eq.s32.totalorder %s19, 1
    %p58 = scmp.ne.s32.totalorder %s53, %s55
    %p59 = scmp.eq.s32.totalorder %s19, 0
    %p60 = por %p58, %p59
    %p61 = scmp.ne.s32.totalorder %s53, %s55
    %p62 = scmp.eq.s32.totalorder %s24, 1
    %p63 = por %p61, %p62
    %p64 = scmp.ne.s32.totalorder %s55, %s56
    %p65 = scmp.eq.s32.totalorder %s24, 0
    %p66 = por %p64, %p65
    %p67 = scmp.ne.s32.totalorder %s55, %s56
    %p68 = scmp.eq.s32.totalorder %s25, 1
    %p69 = por %p67, %p68
    %p71 = scmp.ne.s32.totalorder %s56, %s70
    %p72 = scmp.eq.s32.totalorder %s25, 0
    %p73 = por %p71, %p72
    %s75 = sadd.s32 %s74, 1
    %p78 = scmp.eq.s32.totalorder %s19, 1
    %p79 = scmp.ne.s32.totalorder %s74, %s76
    %p80 = scmp.eq.s32.totalorder %s19, 0
    %p81 = por %p79, %p80
    %p82 = scmp.ne.s32.totalorder %s74, %s76
    %p83 = scmp.eq.s32.totalorder %s24, 1
    %p84 = por %p82, %p83
    %p85 = scmp.ne.s32.totalorder %s76, %s77
    %p86 = scmp.eq.s32.totalorder %s24, 0
    %p87 = por %p85, %p86
    %p88 = scmp.ne.s32.totalorder %s76, %s77
    %p89 = scmp.eq.s32.totalorder %s25, 1
    %p90 = por %p88, %p89
    %p92 = scmp.ne.s32.totalorder %s77, %s91
    %p93 = scmp.eq.s32.totalorder %s25, 0
    %p94 = por %p92, %p93
    %s96 = sadd.s32 %s95, 1
    %p99 = scmp.eq.s32.totalorder %s19, 1
    %p100 = scmp.ne.s32.totalorder %s95, %s97
    %p101 = scmp.eq.s32.totalorder %s19, 0
    %p102 = por %p100, %p101
    %p103 = scmp.ne.s32.totalorder %s95, %s97
    %p104 = scmp.eq.s32.totalorder %s24, 1
    %p105 = por %p103, %p104
    %p106 = scmp.ne.s32.totalorder %s97, %s98
    %p107 = scmp.eq.s32.totalorder %s24, 0
    %p108 = por %p106, %p107
    %p109 = scmp.ne.s32.totalorder %s97, %s98
    %p110 = scmp.eq.s32.totalorder %s25, 1
    %p111 = por %p109, %p110
    %p113 = scmp.ne.s32.totalorder %s98, %s112
    %p114 = scmp.eq.s32.totalorder %s25, 0
    %p115 = por %p113, %p114
    %s117 = sadd.s32 %s116, 1
    %p120 = scmp.eq.s32.totalorder %s19, 1
    %p121 = scmp.ne.s32.totalorder %s116, %s118
    %p122 = scmp.eq.s32.totalorder %s19, 0
    %p123 = por %p121, %p122
    %p124 = scmp.ne.s32.totalorder %s116, %s118
    %p125 = scmp.eq.s32.totalorder %s24, 1
    %p126 = por %p124, %p125
    %p127 = scmp.ne.s32.totalorder %s118, %s119
    %p128 = scmp.eq.s32.totalorder %s24, 0
    %p129 = por %p127, %p128
    %p130 = scmp.ne.s32.totalorder %s118, %s119
    %p131 = scmp.eq.s32.totalorder %s25, 1
    %p132 = por %p130, %p131
    %p134 = scmp.ne.s32.totalorder %s119, %s133
    %p135 = scmp.eq.s32.totalorder %s25, 0
    %p136 = por %p134, %p135
    %s138 = sadd.s32 %s137, 1
    %p141 = scmp.eq.s32.totalorder %s19, 1
    %p142 = scmp.ne.s32.totalorder %s137, %s139
    %p143 = scmp.eq.s32.totalorder %s19, 0
    %p144 = por %p142, %p143
    %p145 = scmp.ne.s32.totalorder %s137, %s139
    %p146 = scmp.eq.s32.totalorder %s24, 1
    %p147 = por %p145, %p146
    %p148 = scmp.ne.s32.totalorder %s139, %s140
    %p149 = scmp.eq.s32.totalorder %s24, 0
    %p150 = por %p148, %p149
    %p151 = scmp.ne.s32.totalorder %s139, %s140
    %p152 = scmp.eq.s32.totalorder %s25, 1
    %p153 = por %p151, %p152
    %p155 = scmp.ne.s32.totalorder %s140, %s154
    %p156 = scmp.eq.s32.totalorder %s25, 0
    %p157 = por %p155, %p156
    %s159 = sadd.s32 %s158, 1
    %p162 = scmp.eq.s32.totalorder %s19, 1
    %p163 = scmp.ne.s32.totalorder %s158, %s160
    %p164 = scmp.eq.s32.totalorder %s19, 0
    %p165 = por %p163, %p164
    %p166 = scmp.ne.s32.totalorder %s158, %s160
    %p167 = scmp.eq.s32.totalorder %s24, 1
    %p168 = por %p166, %p167
    %p169 = scmp.ne.s32.totalorder %s160, %s161
    %p170 = scmp.eq.s32.totalorder %s24, 0
    %p171 = por %p169, %p170
    %p172 = scmp.ne.s32.totalorder %s160, %s161
    %p173 = scmp.eq.s32.totalorder %s25, 1
    %p174 = por %p172, %p173
    %p176 = scmp.ne.s32.totalorder %s161, %s175
    %p177 = scmp.eq.s32.totalorder %s25, 0
    %p178 = por %p176, %p177
    %s180 = sadd.s32 %s179, 1
    %p183 = scmp.eq.s32.totalorder %s19, 1
    %p184 = scmp.ne.s32.totalorder %s179, %s181
    %p185 = scmp.eq.s32.totalorder %s19, 0
    %p186 = por %p184, %p185
    %p187 = scmp.ne.s32.totalorder %s179, %s181
    %p188 = scmp.eq.s32.totalorder %s24, 1
    %p189 = por %p187, %p188
    %p190 = scmp.ne.s32.totalorder %s181, %s182
    %p191 = scmp.eq.s32.totalorder %s24, 0
    %p192 = por %p190, %p191
    %p193 = scmp.ne.s32.totalorder %s181, %s182
    %p194 = scmp.eq.s32.totalorder %s25, 1
    %p195 = por %p193, %p194
    %p197 = scmp.ne.s32.totalorder %s182, %s196
    %p198 = scmp.eq.s32.totalorder %s25, 0
    %p199 = por %p197, %p198
    %s201 = sadd.s32 %s200, 1
    %p204 = scmp.eq.s32.totalorder %s19, 1
    %p205 = scmp.ne.s32.totalorder %s200, %s202
    %p206 = scmp.eq.s32.totalorder %s19, 0
    %p207 = por %p205, %p206
    %p208 = scmp.ne.s32.totalorder %s200, %s202
    %p209 = scmp.eq.s32.totalorder %s24, 1
    %p210 = por %p208, %p209
    %p211 = scmp.ne.s32.totalorder %s202, %s203
    %p212 = scmp.eq.s32.totalorder %s24, 0
    %p213 = por %p211, %p212
    %p214 = scmp.ne.s32.totalorder %s202, %s203
    %p215 = scmp.eq.s32.totalorder %s25, 1
    %p216 = por %p214, %p215
    %p218 = scmp.ne.s32.totalorder %s203, %s217
    %p219 = scmp.eq.s32.totalorder %s25, 0
    %p220 = por %p218, %p219
    %s222 = sadd.s32 %s221, 1
    %p225 = scmp.eq.s32.totalorder %s19, 1
    %p226 = scmp.ne.s32.totalorder %s221, %s223
    %p227 = scmp.eq.s32.totalorder %s19, 0
    %p228 = por %p226, %p227
    %p229 = scmp.ne.s32.totalorder %s221, %s223
    %p230 = scmp.eq.s32.totalorder %s24, 1
    %p231 = por %p229, %p230
    %p232 = scmp.ne.s32.totalorder %s223, %s224
    %p233 = scmp.eq.s32.totalorder %s24, 0
    %p234 = por %p232, %p233
    %p235 = scmp.ne.s32.totalorder %s223, %s224
    %p236 = scmp.eq.s32.totalorder %s25, 1
    %p237 = por %p235, %p236
    %p239 = scmp.ne.s32.totalorder %s224, %s238
    %p240 = scmp.eq.s32.totalorder %s25, 0
    %p241 = por %p239, %p240
    %s243 = sadd.s32 %s242, 1
    %p246 = scmp.eq.s32.totalorder %s19, 1
    %p247 = scmp.ne.s32.totalorder %s242, %s244
    %p248 = scmp.eq.s32.totalorder %s19, 0
    %p249 = por %p247, %p248
    %p250 = scmp.ne.s32.totalorder %s242, %s244
    %p251 = scmp.eq.s32.totalorder %s24, 1
    %p252 = por %p250, %p251
    %p253 = scmp.ne.s32.totalorder %s244, %s245
    %p254 = scmp.eq.s32.totalorder %s24, 0
    %p255 = por %p253, %p254
    %p256 = scmp.ne.s32.totalorder %s244, %s245
    %p257 = scmp.eq.s32.totalorder %s25, 1
    %p258 = por %p256, %p257
    %p260 = scmp.ne.s32.totalorder %s245, %s259
    %p261 = scmp.eq.s32.totalorder %s25, 0
    %p262 = por %p260, %p261
    %s264 = sadd.s32 %s263, 1
    %p267 = scmp.eq.s32.totalorder %s19, 1
    %p268 = scmp.ne.s32.totalorder %s263, %s265
    %p269 = scmp.eq.s32.totalorder %s19, 0
    %p270 = por %p268, %p269
    %p271 = scmp.ne.s32.totalorder %s263, %s265
    %p272 = scmp.eq.s32.totalorder %s24, 1
    %p273 = por %p271, %p272
    %p274 = scmp.ne.s32.totalorder %s265, %s266
    %p275 = scmp.eq.s32.totalorder %s24, 0
    %p276 = por %p274, %p275
    %p277 = scmp.ne.s32.totalorder %s265, %s266
    %p278 = scmp.eq.s32.totalorder %s25, 1
    %p279 = por %p277, %p278
    %p281 = scmp.ne.s32.totalorder %s266, %s280
    %p282 = scmp.eq.s32.totalorder %s25, 0
    %p283 = por %p281, %p282
    %s285 = sadd.s32 %s284, 1
    %p288 = scmp.eq.s32.totalorder %s19, 1
    %p289 = scmp.ne.s32.totalorder %s284, %s286
    %p290 = scmp.eq.s32.totalorder %s19, 0
    %p291 = por %p289, %p290
    %p292 = scmp.ne.s32.totalorder %s284, %s286
    %p293 = scmp.eq.s32.totalorder %s24, 1
    %p294 = por %p292, %p293
    %p295 = scmp.ne.s32.totalorder %s286, %s287
    %p296 = scmp.eq.s32.totalorder %s24, 0
    %p297 = por %p295, %p296
    %p298 = scmp.ne.s32.totalorder %s286, %s287
    %p299 = scmp.eq.s32.totalorder %s25, 1
    %p300 = por %p298, %p299
    %p302 = scmp.ne.s32.totalorder %s287, %s301
    %p303 = scmp.eq.s32.totalorder %s25, 0
    %p304 = por %p302, %p303
    %s305 = ssub.s32 %s19, %s26
    %p306 = scmp.eq.s32.totalorder %s305, 0
    %s308 = sadd.s32 %s307, 1
    %s309 = scalar_select %p306, %s307, %s308
    %p312 = pneg %p306
    %p313 = scmp.eq.s32.totalorder %s19, 1
    %p314 = por %p312, %p313
    %p315 = scmp.ne.s32.totalorder %s307, %s310
    %p316 = scmp.eq.s32.totalorder %s19, 0
    %p317 = por %p315, %p316
    %p318 = scmp.ne.s32.totalorder %s307, %s310
    %p319 = scmp.eq.s32.totalorder %s24, 1
    %p320 = por %p318, %p319
    %p321 = scmp.ne.s32.totalorder %s310, %s311
    %p322 = scmp.eq.s32.totalorder %s24, 0
    %p323 = por %p321, %p322
    %p324 = scmp.ne.s32.totalorder %s310, %s311
    %p325 = scmp.eq.s32.totalorder %s25, 1
    %p326 = por %p324, %p325
    %p328 = scmp.ne.s32.totalorder %s311, %s327
    %p329 = scmp.eq.s32.totalorder %s25, 0
    %p330 = por %p328, %p329
    %p331 = scmp.le.s32.totalorder 1, %s19
    %p332 = scmp.lt.s32.totalorder %s19, 3
    %p333 = pnand %p331, %p332
    %p334 = pneg %p333
    // Predicated region
    $region9: #{_lambda_.9} parent=5 // pred_check
      _
    $region10: #{_lambda_.9} parent=5 // pred_check_branch
      %336 = sbr.rel (%p333) target = $region12
    $region11: #{_lambda_.9} parent=5 // pred_region
      %s337 = ssub.s32 %s19, 1
      // Predicated region
      $region13: #{_lambda_.9} parent=11 // pred_check
        %p338 = pneg %p66
      $region14: #{_lambda_.9} parent=11 // pred_check_branch
        %340 = sbr.rel (%p338) target = $region16
      $region15: #{_lambda_.9} parent=11 // pred_region
        _
      $region16: #{_lambda_.9} parent=11 // pred_fallthru
        _
      // Predicated region
      $region17: #{_lambda_.9} parent=11 // pred_check
        %p341 = pneg %p87
      $region18: #{_lambda_.9} parent=11 // pred_check_branch
        %343 = sbr.rel (%p341) target = $region20
      $region19: #{_lambda_.9} parent=11 // pred_region
        _
      $region20: #{_lambda_.9} parent=11 // pred_fallthru
        _
      // Predicated region
      $region21: #{_lambda_.9} parent=11 // pred_check
        %p344 = pneg %p108
      $region22: #{_lambda_.9} parent=11 // pred_check_branch
        %346 = sbr.rel (%p344) target = $region24
      $region23: #{_lambda_.9} parent=11 // pred_region
        _
      $region24: #{_lambda_.9} parent=11 // pred_fallthru
        _
      // Predicated region
      $region25: #{_lambda_.9} parent=11 // pred_check
        %p347 = pneg %p129
      $region26: #{_lambda_.9} parent=11 // pred_check_branch
        %349 = sbr.rel (%p347) target = $region28
      $region27: #{_lambda_.9} parent=11 // pred_region
        _
      $region28: #{_lambda_.9} parent=11 // pred_fallthru
        _
      // Predicated region
      $region29: #{_lambda_.9} parent=11 // pred_check
        %p350 = pneg %p150
      $region30: #{_lambda_.9} parent=11 // pred_check_branch
        %352 = sbr.rel (%p350) target = $region32
      $region31: #{_lambda_.9} parent=11 // pred_region
        _
      $region32: #{_lambda_.9} parent=11 // pred_fallthru
        _
      // Predicated region
      $region33: #{_lambda_.9} parent=11 // pred_check
        %p353 = pneg %p171
      $region34: #{_lambda_.9} parent=11 // pred_check_branch
        %355 = sbr.rel (%p353) target = $region36
      $region35: #{_lambda_.9} parent=11 // pred_region
        _
      $region36: #{_lambda_.9} parent=11 // pred_fallthru
        _
      // Predicated region
      $region37: #{_lambda_.9} parent=11 // pred_check
        %p356 = pneg %p192
      $region38: #{_lambda_.9} parent=11 // pred_check_branch
        %358 = sbr.rel (%p356) target = $region40
      $region39: #{_lambda_.9} parent=11 // pred_region
        _
      $region40: #{_lambda_.9} parent=11 // pred_fallthru
        _
      // Predicated region
      $region41: #{_lambda_.9} parent=11 // pred_check
        %p359 = pneg %p213
      $region42: #{_lambda_.9} parent=11 // pred_check_branch
        %361 = sbr.rel (%p359) target = $region44
      $region43: #{_lambda_.9} parent=11 // pred_region
        _
      $region44: #{_lambda_.9} parent=11 // pred_fallthru
        _
      // Predicated region
      $region45: #{_lambda_.9} parent=11 // pred_check
        %p362 = pneg %p234
      $region46: #{_lambda_.9} parent=11 // pred_check_branch
        %364 = sbr.rel (%p362) target = $region48
      $region47: #{_lambda_.9} parent=11 // pred_region
        _
      $region48: #{_lambda_.9} parent=11 // pred_fallthru
        _
      // Predicated region
      $region49: #{_lambda_.9} parent=11 // pred_check
        %p365 = pneg %p255
      $region50: #{_lambda_.9} parent=11 // pred_check_branch
        %367 = sbr.rel (%p365) target = $region52
      $region51: #{_lambda_.9} parent=11 // pred_region
        _
      $region52: #{_lambda_.9} parent=11 // pred_fallthru
        _
      // Predicated region
      $region53: #{_lambda_.9} parent=11 // pred_check
        %p368 = pneg %p276
      $region54: #{_lambda_.9} parent=11 // pred_check_branch
        %370 = sbr.rel (%p368) target = $region56
      $region55: #{_lambda_.9} parent=11 // pred_region
        _
      $region56: #{_lambda_.9} parent=11 // pred_fallthru
        _
      // Predicated region
      $region57: #{_lambda_.9} parent=11 // pred_check
        %p371 = pneg %p297
      $region58: #{_lambda_.9} parent=11 // pred_check_branch
        %373 = sbr.rel (%p371) target = $region60
      $region59: #{_lambda_.9} parent=11 // pred_region
        _
      $region60: #{_lambda_.9} parent=11 // pred_fallthru
        _
    $region12: #{_lambda_.9} parent=5 // pred_fallthru
      _
    %p374 = scmp.lt.s32.totalorder %s19, 2
    // Predicated region
    $region61: #{_lambda_.9} parent=5 // pred_check
      %p375 = pneg %p374
    $region62: #{_lambda_.9} parent=5 // pred_check_branch
      %377 = sbr.rel (%p375) target = $region64
    $region63: #{_lambda_.9} parent=5 // pred_region
      // Predicated region
      $region65: #{_lambda_.9} parent=63 // pred_check
        %p378 = pneg %p39
      $region66: #{_lambda_.9} parent=63 // pred_check_branch
        %380 = sbr.rel (%p378) target = $region68
      $region67: #{_lambda_.9} parent=63 // pred_region
        %p381 = scmp.lt.s32.totalorder %s19, 1
        %s382 = scalar_select %p381, %s19, 1
        %s383 = smul.addr %s382, 2
        %s384 = smul.addr %s383, 8
        %s385 = scalar_lea.vmem %s0, %s384
      $region68: #{_lambda_.9} parent=63 // pred_fallthru
        _
    $region64: #{_lambda_.9} parent=5 // pred_fallthru
      _
    %p386 = scmp.le.s32.totalorder 1, %s19
    %p387 = scmp.lt.s32.totalorder %s19, 3
    %p388 = pnand %p386, %p387
    %p389 = pneg %p388
    // Predicated region
    $region69: #{_lambda_.9} parent=5 // pred_check
      _
    $region70: #{_lambda_.9} parent=5 // pred_check_branch
      %391 = sbr.rel (%p388) target = $region72
    $region71: #{_lambda_.9} parent=5 // pred_region
      %s392 = ssub.s32 %s19, 1
      %p393 = scmp.lt.s32.totalorder %s24, 1
      %s394 = scalar_select %p393, %s24, 1
      %s395 = smul.addr %s394, 2
      %s396 = smul.addr %s395, 8
      %s397 = scalar_lea.vmem %s0, %s396
      %p398 = pneg %p45
      %p399 = pneg %p42
      %p400 = pneg %p66
      %p401 = pneg %p63
      %p402 = pneg %p87
      %p403 = pneg %p84
      %p404 = pneg %p108
      %p405 = pneg %p105
      %p406 = pneg %p129
      %p407 = pneg %p126
      %p408 = pneg %p150
      %p409 = pneg %p147
      %p410 = pneg %p171
      %p411 = pneg %p168
      %p412 = pneg %p192
      %p413 = pneg %p189
      %p414 = pneg %p213
      %p415 = pneg %p210
      %p416 = pneg %p234
      %p417 = pneg %p231
      %p418 = pneg %p255
      %p419 = pneg %p252
      %p420 = pneg %p276
      %p421 = pneg %p273
      %p422 = pneg %p297
      %p423 = pneg %p294
      %p424 = pneg %p323
      %p425 = pneg %p320
      %p426 = scmp.lt.s32.totalorder %s24, 1
      %s427 = scalar_select %p426, %s24, 1
      %s428 = smul.addr %s427, 2
      %s429 = smul.addr %s428, 8
      %s430 = scalar_lea.vmem %s13, %s429
      %p431 = scmp.lt.s32.totalorder %s24, 1
      %s432 = scalar_select %p431, %s24, 1
      %s433 = smul.addr %s432, 2
      %s434 = smul.addr %s433, 8
      %s435 = scalar_lea.vmem %s0, %s434
      %p436 = scmp.lt.s32.totalorder %s24, 1
      %s437 = scalar_select %p436, %s24, 1
      %s438 = smul.addr %s437, 2
      %s439 = smul.addr %s438, 8
      %s440 = scalar_lea.vmem %s13, %s439
      %v441 = vld [vmem:[%s435] sm:$0xff]
      %v442 = vld [vmem:[%s435 + $0x8] sm:$0x7f]
      %v443 = vld [vmem:[%s1] sm:$0xff]
      %v444 = vld [vmem:[%s1 + $0x8] sm:$0xff]
      %v445 = vld [vmem:[%s1 + $0x10] sm:$0xff]
      %v446 = vld [vmem:[%s1 + $0x18] sm:$0xff]
      %v447 = vld [vmem:[%s2] sm:$0x1]
      %v449 = vperm.slane %v447, 0
      %vm451 = vcmask 261120
      %v453 = vsel %vm451, %v441, 0
      %v456 = vsel %vm451, %v442, 0
      %458 = vmatpush.msra.mxu0 0.0
      %459 = vmatpush.msra.mxu0 0.0
      %460 = vmatpush.msra.mxu0 0.0
      %461 = vmatpush.msra.mxu0 0.0
      %462 = vmatpush.msra.mxu0 0.0
      %463 = vmatpush.msra.mxu0 0.0
      %464 = vmatpush.msra.mxu0 0.0
      %465 = vmatpush.msra.mxu0 0.0
      %466 = vmatpush.msra.mxu0 0.0
      %467 = vmatpush.msra.mxu0 0.0
      %468 = vmatpush.msra.mxu0 0.0
      %469 = vmatpush.msra.mxu0 0.0
      %470 = vmatpush.msra.mxu0 %v446
      %471 = vmatpush.msra.mxu0 %v445
      %472 = vmatpush.msra.mxu0 %v444
      %473 = vmatpush.msra.mxu0 %v443
      %474 = vmatmul.f32.gmra.mxu0 %v453
      %v475 = vpop.f32.mrf.mxu0
      %v476 = vadd.f32 %v449, %v475
      %477 = vmatmul.f32.gmra.mxu0 %v456
      %v478 = vpop.f32.mrf.mxu0
      %v479 = vadd.f32 %v449, %v478
      %480 = vdwg.mxu0
      %483 = vrot.lane.b32.xlu0 %v476, 96
      %v484 = vpop.permute.xlu0 %483
      %485 = vrot.lane.b32.xlu0 %v479, 96
      %v486 = vpop.permute.xlu0 %485
      %vm487 = vcmask 64512
      %v488 = vsel %vm487, %v476, 0
      %v490 = vsel %vm487, %v479, 0
      %v492 = vsel %vm487, %v484, 0
      %v494 = vsel %vm487, %v486, 0
      %496 = vmatpush.xpose.msra.mxu0 0.0
      %497 = vmatpush.xpose.msra.mxu0 0.0
      %498 = vmatpush.xpose.msra.mxu0 0.0
      %499 = vmatpush.xpose.msra.mxu0 0.0
      %500 = vmatpush.xpose.msra.mxu0 0.0
      %501 = vmatpush.xpose.msra.mxu0 0.0
      %502 = vmatpush.xpose.msra.mxu0 0.0
      %503 = vmatpush.xpose.msra.mxu0 0.0
      %504 = vmatpush.xpose.msra.mxu0 0.0
      %505 = vmatpush.xpose.msra.mxu0 0.0
      %506 = vmatpush.xpose.msra.mxu0 0.0
      %507 = vmatpush.xpose.msra.mxu0 0.0
      %508 = vmatpush.xpose.msra.mxu0 0.0
      %509 = vmatpush.xpose.msra.mxu0 0.0
      %510 = vmatpush.xpose.msra.mxu0 %v494
      %511 = vmatpush.xpose.msra.mxu0 %v492
      %512 = vmatmul.f32.gmra.mxu0 %v488
      %v513 = vpop.f32.mrf.mxu0
      %v514 = vadd.f32 0.0, %v513
      %515 = vmatmul.f32.gmra.mxu0 %v490
      %v516 = vpop.f32.mrf.mxu0
      %v517 = vadd.f32 0.0, %v516
      %518 = vdwg.mxu0
      %v519 = vmul.f32 %v514, 0.35355338
      %v520 = vmul.f32 %v517, 0.35355338
      %vm521 = vcmask 121856
      %v522 = vsel %vm521, %v519, -inf
      %523 = vmax.xlane.f32.xlu0 %v522
      %v524 = vpop.xlane.xlu0 %523
      %vm525 = vcmask 120832
      %v526 = vsel %vm525, %v520, -inf
      %527 = vmax.xlane.f32.xlu0 %v526
      %v528 = vpop.xlane.xlu0 %527
      %v529 = vsub.f32 %v519, %v524
      %v530 = vsub.f32 %v520, %v528
      %v531 = vmul.f32 %v529, 1.442695
      %v532 = vpow.pop %v531
      %v533 = vmul.f32 %v530, 1.442695
      %v534 = vpow.pop %v533
      %v535 = vsel %vm521, %v532, 0.0
      %536 = vadd.xlane.f32.xlu0 %v535
      %v537 = vpop.xlane.xlu0 %536
      %v538 = vsel %vm525, %v534, 0.0
      %539 = vadd.xlane.f32.xlu0 %v538
      %v540 = vpop.xlane.xlu0 %539
      %v541 = vrcp.pop %v537
      %v542 = vrcp.pop %v540
      %v543 = vmul.f32 %v532, %v541
      %v544 = vmul.f32 %v534, %v542
      %545 = vrot.lane.b32.xlu0 %v476, 64
      %v546 = vpop.permute.xlu0 %545
      %547 = vrot.lane.b32.xlu0 %v479, 64
      %v548 = vpop.permute.xlu0 %547
      %v551 = vsel %vm521, %v543, 0
      %v554 = vsel %vm521, %v544, 0
      %vm556 = vcmask 1046528
      %v557 = vsel %vm556, %v548, 0
      %559 = vmatpush.msra.mxu0 0.0
      %560 = vmatpush.msra.mxu0 0.0
      %561 = vmatpush.msra.mxu0 0.0
      %562 = vmatpush.msra.mxu0 0.0
      %563 = vmatpush.msra.mxu0 0.0
      %564 = vmatpush.msra.mxu0 0.0
      %565 = vmatpush.msra.mxu0 0.0
      %566 = vmatpush.msra.mxu0 0.0
      %567 = vmatpush.msra.mxu0 0.0
      %568 = vmatpush.msra.mxu0 0.0
      %569 = vmatpush.msra.mxu0 0.0
      %570 = vmatpush.msra.mxu0 0.0
      %571 = vmatpush.msra.mxu0 0.0
      %572 = vmatpush.msra.mxu0 0.0
      %573 = vmatpush.msra.mxu0 %v557
      %574 = vmatpush.msra.mxu0 %v546
      %575 = vmatmul.f32.gmra.mxu0 %v551
      %v576 = vpop.f32.mrf.mxu0
      %v577 = vadd.f32 0.0, %v576
      %578 = vmatmul.f32.gmra.mxu0 %v554
      %v579 = vpop.f32.mrf.mxu0
      %v580 = vadd.f32 0.0, %v579
      %581 = vdwg.mxu0
      %v582 = vld [vmem:[%s3] sm:$0xff]
      %583 = vrot.lane.b32.xlu0 %v476, 120
      %v584 = vpop.permute.xlu0 %583
      %585 = vrot.lane.b32.xlu0 %v479, 120
      %v586 = vpop.permute.xlu0 %585
      %587 = vrot.lane.b32.xlu0 %v476, 88
      %v588 = vpop.permute.xlu0 %587
      %589 = vrot.lane.b32.xlu0 %v479, 88
      %v590 = vpop.permute.xlu0 %589
      %v591 = vsel %vm487, %v584, 0
      %v593 = vsel %vm487, %v586, 0
      %v595 = vsel %vm487, %v588, 0
      %v597 = vsel %vm487, %v590, 0
      %599 = vmatpush.xpose.msra.mxu0 0.0
      %600 = vmatpush.xpose.msra.mxu0 0.0
      %601 = vmatpush.xpose.msra.mxu0 0.0
      %602 = vmatpush.xpose.msra.mxu0 0.0
      %603 = vmatpush.xpose.msra.mxu0 0.0
      %604 = vmatpush.xpose.msra.mxu0 0.0
      %605 = vmatpush.xpose.msra.mxu0 0.0
      %606 = vmatpush.xpose.msra.mxu0 0.0
      %607 = vmatpush.xpose.msra.mxu0 0.0
      %608 = vmatpush.xpose.msra.mxu0 0.0
      %609 = vmatpush.xpose.msra.mxu0 0.0
      %610 = vmatpush.xpose.msra.mxu0 0.0
      %611 = vmatpush.xpose.msra.mxu0 0.0
      %612 = vmatpush.xpose.msra.mxu0 0.0
      %613 = vmatpush.xpose.msra.mxu0 %v597
      %614 = vmatpush.xpose.msra.mxu0 %v595
      %615 = vmatmul.f32.gmra.mxu0 %v591
      %v616 = vpop.f32.mrf.mxu0
      %v617 = vadd.f32 0.0, %v616
      %618 = vmatmul.f32.gmra.mxu0 %v593
      %v619 = vpop.f32.mrf.mxu0
      %v620 = vadd.f32 0.0, %v619
      %621 = vdwg.mxu0
      %v622 = vmul.f32 %v617, 0.35355338
      %v623 = vmul.f32 %v620, 0.35355338
      %v624 = vsel %vm521, %v622, -inf
      %625 = vmax.xlane.f32.xlu0 %v624
      %v626 = vpop.xlane.xlu0 %625
      %v627 = vsel %vm525, %v623, -inf
      %628 = vmax.xlane.f32.xlu0 %v627
      %v629 = vpop.xlane.xlu0 %628
      %v630 = vsub.f32 %v622, %v626
      %v631 = vsub.f32 %v623, %v629
      %v632 = vmul.f32 %v630, 1.442695
      %v633 = vpow.pop %v632
      %v634 = vmul.f32 %v631, 1.442695
      %v635 = vpow.pop %v634
      %v636 = vsel %vm521, %v633, 0.0
      %637 = vadd.xlane.f32.xlu0 %v636
      %v638 = vpop.xlane.xlu0 %637
      %v639 = vsel %vm525, %v635, 0.0
      %640 = vadd.xlane.f32.xlu0 %v639
      %v641 = vpop.xlane.xlu0 %640
      %v642 = vrcp.pop %v638
      %v643 = vrcp.pop %v641
      %v644 = vmul.f32 %v633, %v642
      %v645 = vmul.f32 %v635, %v643
      %646 = vrot.lane.b32.xlu0 %v476, 56
      %v647 = vpop.permute.xlu0 %646
      %648 = vrot.lane.b32.xlu0 %v479, 56
      %v649 = vpop.permute.xlu0 %648
      %v652 = vsel %vm521, %v644, 0
      %v655 = vsel %vm521, %v645, 0
      %v657 = vsel %vm556, %v649, 0
      %659 = vmatpush.msra.mxu0 0.0
      %660 = vmatpush.msra.mxu0 0.0
      %661 = vmatpush.msra.mxu0 0.0
      %662 = vmatpush.msra.mxu0 0.0
      %663 = vmatpush.msra.mxu0 0.0
      %664 = vmatpush.msra.mxu0 0.0
      %665 = vmatpush.msra.mxu0 0.0
      %666 = vmatpush.msra.mxu0 0.0
      %667 = vmatpush.msra.mxu0 0.0
      %668 = vmatpush.msra.mxu0 0.0
      %669 = vmatpush.msra.mxu0 0.0
      %670 = vmatpush.msra.mxu0 0.0
      %671 = vmatpush.msra.mxu0 0.0
      %672 = vmatpush.msra.mxu0 0.0
      %673 = vmatpush.msra.mxu0 %v657
      %674 = vmatpush.msra.mxu0 %v647
      %675 = vmatmul.f32.gmra.mxu0 %v652
      %v676 = vpop.f32.mrf.mxu0
      %v677 = vadd.f32 0.0, %v676
      %678 = vmatmul.f32.gmra.mxu0 %v655
      %v679 = vpop.f32.mrf.mxu0
      %v680 = vadd.f32 0.0, %v679
      %681 = vdwg.mxu0
      %v682 = vld [vmem:[%s3 + $0x8] sm:$0xff]
      %v684 = vsel %vm487, %v677, 0
      %v687 = vsel %vm487, %v680, 0
      %689 = vmatpush.msra.mxu0 0.0
      %690 = vmatpush.msra.mxu0 0.0
      %691 = vmatpush.msra.mxu0 0.0
      %692 = vmatpush.msra.mxu0 0.0
      %693 = vmatpush.msra.mxu0 0.0
      %694 = vmatpush.msra.mxu0 0.0
      %695 = vmatpush.msra.mxu0 0.0
      %696 = vmatpush.msra.mxu0 0.0
      %697 = vmatpush.msra.mxu0 0.0
      %698 = vmatpush.msra.mxu0 0.0
      %699 = vmatpush.msra.mxu0 0.0
      %700 = vmatpush.msra.mxu0 0.0
      %701 = vmatpush.msra.mxu0 0.0
      %702 = vmatpush.msra.mxu0 0.0
      %703 = vmatpush.msra.mxu0 0.0
      %704 = vmatpush.msra.mxu0 %v682
      %705 = vmatmul.f32.gmra.mxu0 %v684
      %v706 = vpop.f32.mrf.mxu0
      %v707 = vadd.f32 0.0, %v706
      %708 = vmatmul.f32.gmra.mxu0 %v687
      %v709 = vpop.f32.mrf.mxu0
      %v710 = vadd.f32 0.0, %v709
      %711 = vdwg.mxu0
      %v713 = vsel %vm487, %v577, 0
      %v716 = vsel %vm487, %v580, 0
      %718 = vmatpush.msra.mxu0 0.0
      %719 = vmatpush.msra.mxu0 0.0
      %720 = vmatpush.msra.mxu0 0.0
      %721 = vmatpush.msra.mxu0 0.0
      %722 = vmatpush.msra.mxu0 0.0
      %723 = vmatpush.msra.mxu0 0.0
      %724 = vmatpush.msra.mxu0 0.0
      %725 = vmatpush.msra.mxu0 0.0
      %726 = vmatpush.msra.mxu0 0.0
      %727 = vmatpush.msra.mxu0 0.0
      %728 = vmatpush.msra.mxu0 0.0
      %729 = vmatpush.msra.mxu0 0.0
      %730 = vmatpush.msra.mxu0 0.0
      %731 = vmatpush.msra.mxu0 0.0
      %732 = vmatpush.msra.mxu0 0.0
      %733 = vmatpush.msra.mxu0 %v582
      %734 = vmatmul.f32.gmra.mxu0 %v713
      %v735 = vpop.f32.mrf.mxu0
      %v736 = vadd.f32 %v707, %v735
      %737 = vmatmul.f32.gmra.mxu0 %v716
      %v738 = vpop.f32.mrf.mxu0
      %v739 = vadd.f32 %v710, %v738
      %740 = vdwg.mxu0
      %741 = vrot.lane.b32.xlu0 %v476, 112
      %v742 = vpop.permute.xlu0 %741
      %743 = vrot.lane.b32.xlu0 %v479, 112
      %v744 = vpop.permute.xlu0 %743
      %745 = vrot.lane.b32.xlu0 %v476, 80
      %v746 = vpop.permute.xlu0 %745
      %747 = vrot.lane.b32.xlu0 %v479, 80
      %v748 = vpop.permute.xlu0 %747
      %v749 = vsel %vm487, %v742, 0
      %v751 = vsel %vm487, %v744, 0
      %v753 = vsel %vm487, %v746, 0
      %v755 = vsel %vm487, %v748, 0
      %757 = vmatpush.xpose.msra.mxu0 0.0
      %758 = vmatpush.xpose.msra.mxu0 0.0
      %759 = vmatpush.xpose.msra.mxu0 0.0
      %760 = vmatpush.xpose.msra.mxu0 0.0
      %761 = vmatpush.xpose.msra.mxu0 0.0
      %762 = vmatpush.xpose.msra.mxu0 0.0
      %763 = vmatpush.xpose.msra.mxu0 0.0
      %764 = vmatpush.xpose.msra.mxu0 0.0
      %765 = vmatpush.xpose.msra.mxu0 0.0
      %766 = vmatpush.xpose.msra.mxu0 0.0
      %767 = vmatpush.xpose.msra.mxu0 0.0
      %768 = vmatpush.xpose.msra.mxu0 0.0
      %769 = vmatpush.xpose.msra.mxu0 0.0
      %770 = vmatpush.xpose.msra.mxu0 0.0
      %771 = vmatpush.xpose.msra.mxu0 %v755
      %772 = vmatpush.xpose.msra.mxu0 %v753
      %773 = vmatmul.f32.gmra.mxu0 %v749
      %v774 = vpop.f32.mrf.mxu0
      %v775 = vadd.f32 0.0, %v774
      %776 = vmatmul.f32.gmra.mxu0 %v751
      %v777 = vpop.f32.mrf.mxu0
      %v778 = vadd.f32 0.0, %v777
      %779 = vdwg.mxu0
      %v780 = vmul.f32 %v775, 0.35355338
      %v781 = vmul.f32 %v778, 0.35355338
      %v782 = vsel %vm521, %v780, -inf
      %783 = vmax.xlane.f32.xlu0 %v782
      %v784 = vpop.xlane.xlu0 %783
      %v785 = vsel %vm525, %v781, -inf
      %786 = vmax.xlane.f32.xlu0 %v785
      %v787 = vpop.xlane.xlu0 %786
      %v788 = vsub.f32 %v780, %v784
      %v789 = vsub.f32 %v781, %v787
      %v790 = vmul.f32 %v788, 1.442695
      %v791 = vpow.pop %v790
      %v792 = vmul.f32 %v789, 1.442695
      %v793 = vpow.pop %v792
      %v794 = vsel %vm521, %v791, 0.0
      %795 = vadd.xlane.f32.xlu0 %v794
      %v796 = vpop.xlane.xlu0 %795
      %v797 = vsel %vm525, %v793, 0.0
      %798 = vadd.xlane.f32.xlu0 %v797
      %v799 = vpop.xlane.xlu0 %798
      %v800 = vrcp.pop %v796
      %v801 = vrcp.pop %v799
      %v802 = vmul.f32 %v791, %v800
      %v803 = vmul.f32 %v793, %v801
      %804 = vrot.lane.b32.xlu0 %v476, 48
      %v805 = vpop.permute.xlu0 %804
      %806 = vrot.lane.b32.xlu0 %v479, 48
      %v807 = vpop.permute.xlu0 %806
      %v810 = vsel %vm521, %v802, 0
      %v813 = vsel %vm521, %v803, 0
      %v815 = vsel %vm556, %v807, 0
      %817 = vmatpush.msra.mxu0 0.0
      %818 = vmatpush.msra.mxu0 0.0
      %819 = vmatpush.msra.mxu0 0.0
      %820 = vmatpush.msra.mxu0 0.0
      %821 = vmatpush.msra.mxu0 0.0
      %822 = vmatpush.msra.mxu0 0.0
      %823 = vmatpush.msra.mxu0 0.0
      %824 = vmatpush.msra.mxu0 0.0
      %825 = vmatpush.msra.mxu0 0.0
      %826 = vmatpush.msra.mxu0 0.0
      %827 = vmatpush.msra.mxu0 0.0
      %828 = vmatpush.msra.mxu0 0.0
      %829 = vmatpush.msra.mxu0 0.0
      %830 = vmatpush.msra.mxu0 0.0
      %831 = vmatpush.msra.mxu0 %v815
      %832 = vmatpush.msra.mxu0 %v805
      %833 = vmatmul.f32.gmra.mxu0 %v810
      %v834 = vpop.f32.mrf.mxu0
      %v835 = vadd.f32 0.0, %v834
      %836 = vmatmul.f32.gmra.mxu0 %v813
      %v837 = vpop.f32.mrf.mxu0
      %v838 = vadd.f32 0.0, %v837
      %839 = vdwg.mxu0
      %v840 = vld [vmem:[%s3 + $0x10] sm:$0xff]
      %v842 = vsel %vm487, %v835, 0
      %v845 = vsel %vm487, %v838, 0
      %847 = vmatpush.msra.mxu0 0.0
      %848 = vmatpush.msra.mxu0 0.0
      %849 = vmatpush.msra.mxu0 0.0
      %850 = vmatpush.msra.mxu0 0.0
      %851 = vmatpush.msra.mxu0 0.0
      %852 = vmatpush.msra.mxu0 0.0
      %853 = vmatpush.msra.mxu0 0.0
      %854 = vmatpush.msra.mxu0 0.0
      %855 = vmatpush.msra.mxu0 0.0
      %856 = vmatpush.msra.mxu0 0.0
      %857 = vmatpush.msra.mxu0 0.0
      %858 = vmatpush.msra.mxu0 0.0
      %859 = vmatpush.msra.mxu0 0.0
      %860 = vmatpush.msra.mxu0 0.0
      %861 = vmatpush.msra.mxu0 0.0
      %862 = vmatpush.msra.mxu0 %v840
      %863 = vmatmul.f32.gmra.mxu0 %v842
      %v864 = vpop.f32.mrf.mxu0
      %v865 = vadd.f32 0.0, %v864
      %866 = vmatmul.f32.gmra.mxu0 %v845
      %v867 = vpop.f32.mrf.mxu0
      %v868 = vadd.f32 0.0, %v867
      %869 = vdwg.mxu0
      %v870 = vadd.f32 %v736, %v865
      %v871 = vadd.f32 %v739, %v868
      %872 = vrot.lane.b32.xlu0 %v476, 104
      %v873 = vpop.permute.xlu0 %872
      %874 = vrot.lane.b32.xlu0 %v479, 104
      %v875 = vpop.permute.xlu0 %874
      %876 = vrot.lane.b32.xlu0 %v476, 72
      %v877 = vpop.permute.xlu0 %876
      %878 = vrot.lane.b32.xlu0 %v479, 72
      %v879 = vpop.permute.xlu0 %878
      %v880 = vsel %vm487, %v873, 0
      %v882 = vsel %vm487, %v875, 0
      %v884 = vsel %vm487, %v877, 0
      %v886 = vsel %vm487, %v879, 0
      %888 = vmatpush.xpose.msra.mxu0 0.0
      %889 = vmatpush.xpose.msra.mxu0 0.0
      %890 = vmatpush.xpose.msra.mxu0 0.0
      %891 = vmatpush.xpose.msra.mxu0 0.0
      %892 = vmatpush.xpose.msra.mxu0 0.0
      %893 = vmatpush.xpose.msra.mxu0 0.0
      %894 = vmatpush.xpose.msra.mxu0 0.0
      %895 = vmatpush.xpose.msra.mxu0 0.0
      %896 = vmatpush.xpose.msra.mxu0 0.0
      %897 = vmatpush.xpose.msra.mxu0 0.0
      %898 = vmatpush.xpose.msra.mxu0 0.0
      %899 = vmatpush.xpose.msra.mxu0 0.0
      %900 = vmatpush.xpose.msra.mxu0 0.0
      %901 = vmatpush.xpose.msra.mxu0 0.0
      %902 = vmatpush.xpose.msra.mxu0 %v886
      %903 = vmatpush.xpose.msra.mxu0 %v884
      %904 = vmatmul.f32.gmra.mxu0 %v880
      %v905 = vpop.f32.mrf.mxu0
      %v906 = vadd.f32 0.0, %v905
      %907 = vmatmul.f32.gmra.mxu0 %v882
      %v908 = vpop.f32.mrf.mxu0
      %v909 = vadd.f32 0.0, %v908
      %910 = vdwg.mxu0
      %v911 = vmul.f32 %v906, 0.35355338
      %v912 = vmul.f32 %v909, 0.35355338
      %v913 = vsel %vm521, %v911, -inf
      %914 = vmax.xlane.f32.xlu0 %v913
      %v915 = vpop.xlane.xlu0 %914
      %v916 = vsel %vm525, %v912, -inf
      %917 = vmax.xlane.f32.xlu0 %v916
      %v918 = vpop.xlane.xlu0 %917
      %v919 = vsub.f32 %v911, %v915
      %v920 = vsub.f32 %v912, %v918
      %v921 = vmul.f32 %v919, 1.442695
      %v922 = vpow.pop %v921
      %v923 = vmul.f32 %v920, 1.442695
      %v924 = vpow.pop %v923
      %v925 = vsel %vm521, %v922, 0.0
      %926 = vadd.xlane.f32.xlu0 %v925
      %v927 = vpop.xlane.xlu0 %926
      %v928 = vsel %vm525, %v924, 0.0
      %929 = vadd.xlane.f32.xlu0 %v928
      %v930 = vpop.xlane.xlu0 %929
      %v931 = vrcp.pop %v927
      %v932 = vrcp.pop %v930
      %v933 = vmul.f32 %v922, %v931
      %v934 = vmul.f32 %v924, %v932
      %935 = vrot.lane.b32.xlu0 %v476, 40
      %v936 = vpop.permute.xlu0 %935
      %937 = vrot.lane.b32.xlu0 %v479, 40
      %v938 = vpop.permute.xlu0 %937
      %v941 = vsel %vm521, %v933, 0
      %v944 = vsel %vm521, %v934, 0
      %v946 = vsel %vm556, %v938, 0
      %948 = vmatpush.msra.mxu0 0.0
      %949 = vmatpush.msra.mxu0 0.0
      %950 = vmatpush.msra.mxu0 0.0
      %951 = vmatpush.msra.mxu0 0.0
      %952 = vmatpush.msra.mxu0 0.0
      %953 = vmatpush.msra.mxu0 0.0
      %954 = vmatpush.msra.mxu0 0.0
      %955 = vmatpush.msra.mxu0 0.0
      %956 = vmatpush.msra.mxu0 0.0
      %957 = vmatpush.msra.mxu0 0.0
      %958 = vmatpush.msra.mxu0 0.0
      %959 = vmatpush.msra.mxu0 0.0
      %960 = vmatpush.msra.mxu0 0.0
      %961 = vmatpush.msra.mxu0 0.0
      %962 = vmatpush.msra.mxu0 %v946
      %963 = vmatpush.msra.mxu0 %v936
      %964 = vmatmul.f32.gmra.mxu0 %v941
      %v965 = vpop.f32.mrf.mxu0
      %v966 = vadd.f32 0.0, %v965
      %967 = vmatmul.f32.gmra.mxu0 %v944
      %v968 = vpop.f32.mrf.mxu0
      %v969 = vadd.f32 0.0, %v968
      %970 = vdwg.mxu0
      %v971 = vld [vmem:[%s3 + $0x18] sm:$0xff]
      %v973 = vsel %vm487, %v966, 0
      %v976 = vsel %vm487, %v969, 0
      %978 = vmatpush.msra.mxu0 0.0
      %979 = vmatpush.msra.mxu0 0.0
      %980 = vmatpush.msra.mxu0 0.0
      %981 = vmatpush.msra.mxu0 0.0
      %982 = vmatpush.msra.mxu0 0.0
      %983 = vmatpush.msra.mxu0 0.0
      %984 = vmatpush.msra.mxu0 0.0
      %985 = vmatpush.msra.mxu0 0.0
      %986 = vmatpush.msra.mxu0 0.0
      %987 = vmatpush.msra.mxu0 0.0
      %988 = vmatpush.msra.mxu0 0.0
      %989 = vmatpush.msra.mxu0 0.0
      %990 = vmatpush.msra.mxu0 0.0
      %991 = vmatpush.msra.mxu0 0.0
      %992 = vmatpush.msra.mxu0 0.0
      %993 = vmatpush.msra.mxu0 %v971
      %994 = vmatmul.f32.gmra.mxu0 %v973
      %v995 = vpop.f32.mrf.mxu0
      %v996 = vadd.f32 0.0, %v995
      %997 = vmatmul.f32.gmra.mxu0 %v976
      %v998 = vpop.f32.mrf.mxu0
      %v999 = vadd.f32 0.0, %v998
      %1000 = vdwg.mxu0
      %v1001 = vadd.f32 %v870, %v996
      %v1002 = vadd.f32 %v871, %v999
      %v1003 = vld [vmem:[%s4] sm:$0x1]
      %v1005 = vperm.slane %v1003, 0
      %v1007 = vadd.f32 %v1001, %v1005
      %v1008 = vadd.f32 %v1002, %v1005
      %v1009 = vadd.f32 %v1007, %v441
      %v1010 = vadd.f32 %v1008, %v442
      %v1011 = vld [vmem:[%s5] sm:$0x1]
      %v1012 = vld [vmem:[%s6] sm:$0x1]
      %v1013 = vsel %vm451, %v1009, 0.0
      %1014 = vadd.xlane.f32.xlu0 %v1013
      %v1015 = vpop.xlane.xlu0 %1014
      %vm1016 = vcmask 260096
      %v1017 = vsel %vm1016, %v1010, 0.0
      %1018 = vadd.xlane.f32.xlu0 %v1017
      %v1019 = vpop.xlane.xlu0 %1018
      %v1020 = vrcp.pop 32.0
      %v1021 = vmul.f32 32.0, %v1020
      %v1022 = vsub.f32 1.0, %v1021
      %v1023 = vmul.f32 %v1020, %v1022
      %v1024 = vadd.f32 %v1020, %v1023
      %vm1025 = vweird.f32 %v1020
      %v1026 = vsel %vm1025, %v1020, %v1024
      %v1027 = vmul.f32 %v1015, %v1026
      %v1028 = vmul.f32 %v1019, %v1026
      %v1029 = vsub.f32 %v1009, %v1027
      %v1030 = vsub.f32 %v1010, %v1028
      %v1031 = vmul.f32 %v1029, %v1029
      %v1032 = vmul.f32 %v1030, %v1030
      %v1033 = vsel %vm451, %v1031, 0.0
      %1034 = vadd.xlane.f32.xlu0 %v1033
      %v1035 = vpop.xlane.xlu0 %1034
      %v1036 = vsel %vm1016, %v1032, 0.0
      %1037 = vadd.xlane.f32.xlu0 %v1036
      %v1038 = vpop.xlane.xlu0 %1037
      %v1039 = vmul.f32 %v1035, %v1026
      %v1040 = vmul.f32 %v1038, %v1026
      %v1041 = vadd.f32 %v1039, 1e-05
      %v1042 = vadd.f32 %v1040, 1e-05
      %v1043 = vrsqrt.pop %v1041
      %v1044 = vmul.f32 %v1043, %v1041
      %v1045 = vmul.f32 %v1044, %v1043
      %v1046 = vmul.f32 0.5, %v1045
      %v1047 = vsub.f32 1.5, %v1046
      %v1048 = vmul.f32 %v1043, %v1047
      %vm1049 = vweird.f32 %v1041
      %vm1050 = vweird.f32 %v1043
      %vm1051 = vmor %vm1049, %vm1050
      %v1052 = vsel %vm1051, %v1043, %v1048
      %v1053 = vrsqrt.pop %v1042
      %v1054 = vmul.f32 %v1053, %v1042
      %v1055 = vmul.f32 %v1054, %v1053
      %v1056 = vmul.f32 0.5, %v1055
      %v1057 = vsub.f32 1.5, %v1056
      %v1058 = vmul.f32 %v1053, %v1057
      %vm1059 = vweird.f32 %v1042
      %vm1060 = vweird.f32 %v1053
      %vm1061 = vmor %vm1059, %vm1060
      %v1062 = vsel %vm1061, %v1053, %v1058
      %v1063 = vmul.f32 %v1029, %v1052
      %v1064 = vmul.f32 %v1030, %v1062
      %v1066 = vperm.slane %v1011, 0
      %v1068 = vmul.f32 %v1063, %v1066
      %v1069 = vmul.f32 %v1064, %v1066
      %v1071 = vperm.slane %v1012, 0
      %v1073 = vadd.f32 %v1068, %v1071
      %v1074 = vadd.f32 %v1069, %v1071
      %v1075 = vld [vmem:[%s7] sm:$0xff]
      %v1076 = vld [vmem:[%s7 + $0x8] sm:$0xff]
      %v1077 = vld [vmem:[%s7 + $0x10] sm:$0xff]
      %v1078 = vld [vmem:[%s7 + $0x18] sm:$0xff]
      %v1079 = vld [vmem:[%s8] sm:$0x1]
      %v1081 = vperm.slane %v1079, 0
      %v1084 = vsel %vm451, %v1073, 0
      %v1087 = vsel %vm451, %v1074, 0
      %1089 = vmatpush.msra.mxu0 0.0
      %1090 = vmatpush.msra.mxu0 0.0
      %1091 = vmatpush.msra.mxu0 0.0
      %1092 = vmatpush.msra.mxu0 0.0
      %1093 = vmatpush.msra.mxu0 0.0
      %1094 = vmatpush.msra.mxu0 0.0
      %1095 = vmatpush.msra.mxu0 0.0
      %1096 = vmatpush.msra.mxu0 0.0
      %1097 = vmatpush.msra.mxu0 0.0
      %1098 = vmatpush.msra.mxu0 0.0
      %1099 = vmatpush.msra.mxu0 0.0
      %1100 = vmatpush.msra.mxu0 0.0
      %1101 = vmatpush.msra.mxu0 %v1078
      %1102 = vmatpush.msra.mxu0 %v1077
      %1103 = vmatpush.msra.mxu0 %v1076
      %1104 = vmatpush.msra.mxu0 %v1075
      %1105 = vmatmul.f32.gmra.mxu0 %v1084
      %v1106 = vpop.f32.mrf.mxu0
      %v1107 = vadd.f32 %v1081, %v1106
      %1108 = vmatmul.f32.gmra.mxu0 %v1087
      %v1109 = vpop.f32.mrf.mxu0
      %v1110 = vadd.f32 %v1081, %v1109
      %1111 = vdwg.mxu0
      %v1112 = vmax.f32 %v1107, 0.0
      %v1113 = vmax.f32 %v1110, 0.0
      %v1114 = vld [vmem:[%s9] sm:$0xff]
      %v1115 = vld [vmem:[%s9 + $0x8] sm:$0xff]
      %v1116 = vld [vmem:[%s10] sm:$0x1]
      %v1118 = vperm.slane %v1116, 0
      %vm1120 = vcmask 130048
      %v1122 = vsel %vm1120, %v1112, 0
      %v1125 = vsel %vm1120, %v1113, 0
      %1127 = vmatpush.msra.mxu0 0.0
      %1128 = vmatpush.msra.mxu0 0.0
      %1129 = vmatpush.msra.mxu0 0.0
      %1130 = vmatpush.msra.mxu0 0.0
      %1131 = vmatpush.msra.mxu0 0.0
      %1132 = vmatpush.msra.mxu0 0.0
      %1133 = vmatpush.msra.mxu0 0.0
      %1134 = vmatpush.msra.mxu0 0.0
      %1135 = vmatpush.msra.mxu0 0.0
      %1136 = vmatpush.msra.mxu0 0.0
      %1137 = vmatpush.msra.mxu0 0.0
      %1138 = vmatpush.msra.mxu0 0.0
      %1139 = vmatpush.msra.mxu0 0.0
      %1140 = vmatpush.msra.mxu0 0.0
      %1141 = vmatpush.msra.mxu0 %v1115
      %1142 = vmatpush.msra.mxu0 %v1114
      %1143 = vmatmul.f32.gmra.mxu0 %v1122
      %v1144 = vpop.f32.mrf.mxu0
      %v1145 = vadd.f32 %v1118, %v1144
      %1146 = vmatmul.f32.gmra.mxu0 %v1125
      %v1147 = vpop.f32.mrf.mxu0
      %v1148 = vadd.f32 %v1118, %v1147
      %1149 = vdwg.mxu0
      %v1150 = vadd.f32 %v1145, %v1073
      %v1151 = vadd.f32 %v1148, %v1074
      %v1152 = vld [vmem:[%s11] sm:$0x1]
      %v1153 = vld [vmem:[%s12] sm:$0x1]
      %v1154 = vsel %vm451, %v1150, 0.0
      %1155 = vadd.xlane.f32.xlu0 %v1154
      %v1156 = vpop.xlane.xlu0 %1155
      %v1157 = vsel %vm1016, %v1151, 0.0
      %1158 = vadd.xlane.f32.xlu0 %v1157
      %v1159 = vpop.xlane.xlu0 %1158
      %v1160 = vmul.f32 %v1156, %v1026
      %v1161 = vmul.f32 %v1159, %v1026
      %v1162 = vsub.f32 %v1150, %v1160
      %v1163 = vsub.f32 %v1151, %v1161
      %v1164 = vmul.f32 %v1162, %v1162
      %v1165 = vmul.f32 %v1163, %v1163
      %v1166 = vsel %vm451, %v1164, 0.0
      %1167 = vadd.xlane.f32.xlu0 %v1166
      %v1168 = vpop.xlane.xlu0 %1167
      %v1169 = vsel %vm1016, %v1165, 0.0
      %1170 = vadd.xlane.f32.xlu0 %v1169
      %v1171 = vpop.xlane.xlu0 %1170
      %v1172 = vmul.f32 %v1168, %v1026
      %v1173 = vmul.f32 %v1171, %v1026
      %v1174 = vadd.f32 %v1172, 1e-05
      %v1175 = vadd.f32 %v1173, 1e-05
      %v1176 = vrsqrt.pop %v1174
      %v1177 = vmul.f32 %v1176, %v1174
      %v1178 = vmul.f32 %v1177, %v1176
      %v1179 = vmul.f32 0.5, %v1178
      %v1180 = vsub.f32 1.5, %v1179
      %v1181 = vmul.f32 %v1176, %v1180
      %vm1182 = vweird.f32 %v1174
      %vm1183 = vweird.f32 %v1176
      %vm1184 = vmor %vm1182, %vm1183
      %v1185 = vsel %vm1184, %v1176, %v1181
      %v1186 = vrsqrt.pop %v1175
      %v1187 = vmul.f32 %v1186, %v1175
      %v1188 = vmul.f32 %v1187, %v1186
      %v1189 = vmul.f32 0.5, %v1188
      %v1190 = vsub.f32 1.5, %v1189
      %v1191 = vmul.f32 %v1186, %v1190
      %vm1192 = vweird.f32 %v1175
      %vm1193 = vweird.f32 %v1186
      %vm1194 = vmor %vm1192, %vm1193
      %v1195 = vsel %vm1194, %v1186, %v1191
      %v1196 = vmul.f32 %v1162, %v1185
      %v1197 = vmul.f32 %v1163, %v1195
      %v1199 = vperm.slane %v1152, 0
      %v1201 = vmul.f32 %v1196, %v1199
      %v1202 = vmul.f32 %v1197, %v1199
      %v1204 = vperm.slane %v1153, 0
      %v1206 = vadd.f32 %v1201, %v1204
      %v1207 = vadd.f32 %v1202, %v1204
      %1208 = vst.msk [vmem:[%s440] sm:$0xff] %vm451, %v1206
      %1209 = vst.msk [vmem:[%s440 + $0x8] sm:$0x7f] %vm1016, %v1207
      %p1210 = scmp.lt.s32.totalorder %s24, 1
      %s1211 = scalar_select %p1210, %s24, 1
      %s1212 = smul.addr %s1211, 2
      %s1213 = smul.addr %s1212, 8
      %s1214 = scalar_lea.vmem %s13, %s1213
      // Predicated region
      $region73: #{_lambda_.9} parent=71 // pred_check
        %p1215 = pneg %p320
      $region74: #{_lambda_.9} parent=71 // pred_check_branch
        %1217 = sbr.rel (%p1215) target = $region76
      $region75: #{_lambda_.9} parent=71 // pred_region
        _
      $region76: #{_lambda_.9} parent=71 // pred_fallthru
        _
    $region72: #{_lambda_.9} parent=5 // pred_fallthru
      _
    %p1218 = scmp.le.s32.totalorder 2, %s19
    // Predicated region
    $region77: #{_lambda_.9} parent=5 // pred_check
      %p1219 = pneg %p1218
    $region78: #{_lambda_.9} parent=5 // pred_check_branch
      %1221 = sbr.rel (%p1219) target = $region80
    $region79: #{_lambda_.9} parent=5 // pred_region
      %s1222 = ssub.s32 %s19, 2
      // Predicated region
      $region81: #{_lambda_.9} parent=79 // pred_check
        %p1223 = pneg %p326
      $region82: #{_lambda_.9} parent=79 // pred_check_branch
        %1225 = sbr.rel (%p1223) target = $region84
      $region83: #{_lambda_.9} parent=79 // pred_region
        %p1226 = scmp.lt.s32.totalorder %s25, 1
        %s1227 = scalar_select %p1226, %s25, 1
        %s1228 = smul.addr %s1227, 2
        %s1229 = smul.addr %s1228, 8
        %s1230 = scalar_lea.vmem %s13, %s1229
      $region84: #{_lambda_.9} parent=79 // pred_fallthru
        _
    $region80: #{_lambda_.9} parent=5 // pred_fallthru
      _
  $region6: #{_lambda_.9} parent=0 // loop_footer
    %s23 = sadd.s32 1, %s19
  $region7: #{_lambda_.9} parent=0 // loop_footer_branch
    %18 = sbr.rel target = $region3
  $region8: #{_lambda_.9} parent=0 // loop_exit
    _

// kernel: _lambda_.11
$region0: #{_lambda_.11}
  #allocation0 [shape = 'u32[]', space=smem, size = 0x4, offset = 0x4, fixed_abs, tag = 'smem constant byte address 0x4 - core index']
  #allocation1 [shape = 'u32[72,128]{1,0:T(1,128)}', space=vmem, size = 0x9000, scoped, tag = 'internal scratch']
  %s0 = inlined_call_operand.vmem [shape: f32[2,15,32], index: 0, kind: input, shape index: {}]
  %s1 = inlined_call_operand.vmem [shape: f32[1,32], index: 1, kind: input, shape index: {}]
  %s2 = inlined_call_operand.vmem [shape: f32[32,64], index: 2, kind: input, shape index: {}]
  %s3 = inlined_call_operand.vmem [shape: f32[1,64], index: 3, kind: input, shape index: {}]
  %s4 = inlined_call_operand.vmem [shape: f32[32,32], index: 4, kind: input, shape index: {}]
  %s5 = inlined_call_operand.vmem [shape: f32[1,32], index: 5, kind: input, shape index: {}, may-alias: {5,7}]
  %s6 = inlined_call_operand.vmem [shape: f32[1,32], index: 6, kind: input, shape index: {}]
  %s7 = inlined_call_operand.vmem [shape: f32[1,32], index: 7, kind: input, shape index: {}, may-alias: {5,7}]
  %s8 = inlined_call_operand.vmem [shape: f32[32,200], index: 8, kind: input, shape index: {}]
  %s9 = inlined_call_operand.vmem [shape: f32[1,200], index: 9, kind: input, shape index: {}, may-alias: {9,11}]
  %s10 = inlined_call_operand.vmem [shape: f32[200,200], index: 10, kind: input, shape index: {}]
  %s11 = inlined_call_operand.vmem [shape: f32[1,200], index: 11, kind: input, shape index: {}, may-alias: {9,11}]
  %s12 = inlined_call_operand.vmem [shape: f32[200,5], index: 12, kind: input, shape index: {}]
  %s13 = inlined_call_operand.vmem [shape: f32[1,5], index: 13, kind: input, shape index: {}]
  %s14 = inlined_call_operand.hbm [shape: f32[2,1,5], index: 14, kind: output, shape index: {}]
  %s15 = sld [smem:[#allocation0]]
  $region89: #{_lambda_.11} parent=0
    _
  %s17 = ssub.s32 1, %s15
  %s18 = scalar_select 0, %s17, %s15
  $region1: #{_lambda_.11} parent=0
    #allocation2 [shape = 'u8[1024]{0}', space=vmem, size = 0x400, scoped, tag = 'output window, operand 0']
    #allocation3 [shape = 's32[2]{0}', space=sflag, size = 0x8, scoped, tag = 'scoped memory for _lambda_.11']
    %19 = vsyncpa [#allocation3], 0
    %s20 = scalar_lea.sflag [#allocation3], 1
    %21 = vsyncpa %s20, 0
    loop: start=0, step=1, limit=4
    $region2: #{_lambda_.11} parent=1 // loop_pre_header
      _
    $region3: #{_lambda_.11} parent=1 // loop_header
      %s23 = sphi 0, %s27
      %p24 = scmp.ge.s32.totalorder %s23, 4
      %s33 = sphi 0, %s35
      %s36 = sphi 0, %s33
      %s37 = sphi 0, %s36
      %s53 = sphi 0, %s37
      %s57 = sphi 0, %s57
      %s59 = sphi 0, %s57
      %s60 = sphi 0, %s59
      %s74 = sphi 0, %s60
      %s78 = sphi 0, %s78
      %s80 = sphi 0, %s78
      %s81 = sphi 0, %s80
      %s95 = sphi 0, %s81
      %s99 = sphi 0, %s99
      %s101 = sphi 0, %s99
      %s102 = sphi 0, %s101
      %s116 = sphi 0, %s102
      %s120 = sphi 0, %s120
      %s122 = sphi 0, %s120
      %s123 = sphi 0, %s122
      %s137 = sphi 0, %s123
      %s141 = sphi 0, %s141
      %s143 = sphi 0, %s141
      %s144 = sphi 0, %s143
      %s158 = sphi 0, %s144
      %s162 = sphi 0, %s162
      %s164 = sphi 0, %s162
      %s165 = sphi 0, %s164
      %s179 = sphi 0, %s165
      %s183 = sphi 0, %s183
      %s185 = sphi 0, %s183
      %s186 = sphi 0, %s185
      %s200 = sphi 0, %s186
      %s204 = sphi 0, %s204
      %s206 = sphi 0, %s204
      %s207 = sphi 0, %s206
      %s221 = sphi 0, %s207
      %s225 = sphi 0, %s225
      %s227 = sphi 0, %s225
      %s228 = sphi 0, %s227
      %s242 = sphi 0, %s228
      %s246 = sphi 0, %s246
      %s248 = sphi 0, %s246
      %s249 = sphi 0, %s248
      %s263 = sphi 0, %s249
      %s267 = sphi 0, %s267
      %s269 = sphi 0, %s267
      %s270 = sphi 0, %s269
      %s284 = sphi 0, %s270
      %s288 = sphi 0, %s288
      %s290 = sphi 0, %s288
      %s291 = sphi 0, %s290
      %s305 = sphi 0, %s291
      %s309 = sphi 0, %s309
      %s311 = sphi 0, %s309
      %s312 = sphi 0, %s311
      %s326 = sphi 0, %s312
      %s332 = sphi 0, %s334
      %s335 = sphi 0, %s332
      %s336 = sphi 0, %s335
      %s352 = sphi 0, %s336
    $region4: #{_lambda_.11} parent=1 // loop_header_branch
      %26 = sbr.rel (%p24) target = $region8
    $region5: #{_lambda_.11} parent=1 // loop_body
      %s28 = ssub.s32 %s23, 1
      %s29 = ssub.s32 %s23, 2
      %s30 = sadd.s32 %s23, 1
      %s31 = ssub.s32 %s23, %s30
      %p32 = scmp.eq.s32.totalorder %s31, 0
      %s34 = sadd.s32 %s33, 1
      %s35 = scalar_select %p32, %s33, %s34
      %p38 = pneg %p32
      %p39 = scmp.eq.s32.totalorder %s23, 1
      %p40 = por %p38, %p39
      %p41 = scmp.ne.s32.totalorder %s33, %s36
      %p42 = scmp.eq.s32.totalorder %s23, 0
      %p43 = por %p41, %p42
      %p44 = scmp.ne.s32.totalorder %s33, %s36
      %p45 = scmp.eq.s32.totalorder %s28, 1
      %p46 = por %p44, %p45
      %p47 = scmp.ne.s32.totalorder %s36, %s37
      %p48 = scmp.eq.s32.totalorder %s28, 0
      %p49 = por %p47, %p48
      %p50 = scmp.ne.s32.totalorder %s36, %s37
      %p51 = scmp.eq.s32.totalorder %s29, 1
      %p52 = por %p50, %p51
      %p54 = scmp.ne.s32.totalorder %s37, %s53
      %p55 = scmp.eq.s32.totalorder %s29, 0
      %p56 = por %p54, %p55
      %s58 = sadd.s32 %s57, 1
      %p61 = scmp.eq.s32.totalorder %s23, 1
      %p62 = scmp.ne.s32.totalorder %s57, %s59
      %p63 = scmp.eq.s32.totalorder %s23, 0
      %p64 = por %p62, %p63
      %p65 = scmp.ne.s32.totalorder %s57, %s59
      %p66 = scmp.eq.s32.totalorder %s28, 1
      %p67 = por %p65, %p66
      %p68 = scmp.ne.s32.totalorder %s59, %s60
      %p69 = scmp.eq.s32.totalorder %s28, 0
      %p70 = por %p68, %p69
      %p71 = scmp.ne.s32.totalorder %s59, %s60
      %p72 = scmp.eq.s32.totalorder %s29, 1
      %p73 = por %p71, %p72
      %p75 = scmp.ne.s32.totalorder %s60, %s74
      %p76 = scmp.eq.s32.totalorder %s29, 0
      %p77 = por %p75, %p76
      %s79 = sadd.s32 %s78, 1
      %p82 = scmp.eq.s32.totalorder %s23, 1
      %p83 = scmp.ne.s32.totalorder %s78, %s80
      %p84 = scmp.eq.s32.totalorder %s23, 0
      %p85 = por %p83, %p84
      %p86 = scmp.ne.s32.totalorder %s78, %s80
      %p87 = scmp.eq.s32.totalorder %s28, 1
      %p88 = por %p86, %p87
      %p89 = scmp.ne.s32.totalorder %s80, %s81
      %p90 = scmp.eq.s32.totalorder %s28, 0
      %p91 = por %p89, %p90
      %p92 = scmp.ne.s32.totalorder %s80, %s81
      %p93 = scmp.eq.s32.totalorder %s29, 1
      %p94 = por %p92, %p93
      %p96 = scmp.ne.s32.totalorder %s81, %s95
      %p97 = scmp.eq.s32.totalorder %s29, 0
      %p98 = por %p96, %p97
      %s100 = sadd.s32 %s99, 1
      %p103 = scmp.eq.s32.totalorder %s23, 1
      %p104 = scmp.ne.s32.totalorder %s99, %s101
      %p105 = scmp.eq.s32.totalorder %s23, 0
      %p106 = por %p104, %p105
      %p107 = scmp.ne.s32.totalorder %s99, %s101
      %p108 = scmp.eq.s32.totalorder %s28, 1
      %p109 = por %p107, %p108
      %p110 = scmp.ne.s32.totalorder %s101, %s102
      %p111 = scmp.eq.s32.totalorder %s28, 0
      %p112 = por %p110, %p111
      %p113 = scmp.ne.s32.totalorder %s101, %s102
      %p114 = scmp.eq.s32.totalorder %s29, 1
      %p115 = por %p113, %p114
      %p117 = scmp.ne.s32.totalorder %s102, %s116
      %p118 = scmp.eq.s32.totalorder %s29, 0
      %p119 = por %p117, %p118
      %s121 = sadd.s32 %s120, 1
      %p124 = scmp.eq.s32.totalorder %s23, 1
      %p125 = scmp.ne.s32.totalorder %s120, %s122
      %p126 = scmp.eq.s32.totalorder %s23, 0
      %p127 = por %p125, %p126
      %p128 = scmp.ne.s32.totalorder %s120, %s122
      %p129 = scmp.eq.s32.totalorder %s28, 1
      %p130 = por %p128, %p129
      %p131 = scmp.ne.s32.totalorder %s122, %s123
      %p132 = scmp.eq.s32.totalorder %s28, 0
      %p133 = por %p131, %p132
      %p134 = scmp.ne.s32.totalorder %s122, %s123
      %p135 = scmp.eq.s32.totalorder %s29, 1
      %p136 = por %p134, %p135
      %p138 = scmp.ne.s32.totalorder %s123, %s137
      %p139 = scmp.eq.s32.totalorder %s29, 0
      %p140 = por %p138, %p139
      %s142 = sadd.s32 %s141, 1
      %p145 = scmp.eq.s32.totalorder %s23, 1
      %p146 = scmp.ne.s32.totalorder %s141, %s143
      %p147 = scmp.eq.s32.totalorder %s23, 0
      %p148 = por %p146, %p147
      %p149 = scmp.ne.s32.totalorder %s141, %s143
      %p150 = scmp.eq.s32.totalorder %s28, 1
      %p151 = por %p149, %p150
      %p152 = scmp.ne.s32.totalorder %s143, %s144
      %p153 = scmp.eq.s32.totalorder %s28, 0
      %p154 = por %p152, %p153
      %p155 = scmp.ne.s32.totalorder %s143, %s144
      %p156 = scmp.eq.s32.totalorder %s29, 1
      %p157 = por %p155, %p156
      %p159 = scmp.ne.s32.totalorder %s144, %s158
      %p160 = scmp.eq.s32.totalorder %s29, 0
      %p161 = por %p159, %p160
      %s163 = sadd.s32 %s162, 1
      %p166 = scmp.eq.s32.totalorder %s23, 1
      %p167 = scmp.ne.s32.totalorder %s162, %s164
      %p168 = scmp.eq.s32.totalorder %s23, 0
      %p169 = por %p167, %p168
      %p170 = scmp.ne.s32.totalorder %s162, %s164
      %p171 = scmp.eq.s32.totalorder %s28, 1
      %p172 = por %p170, %p171
      %p173 = scmp.ne.s32.totalorder %s164, %s165
      %p174 = scmp.eq.s32.totalorder %s28, 0
      %p175 = por %p173, %p174
      %p176 = scmp.ne.s32.totalorder %s164, %s165
      %p177 = scmp.eq.s32.totalorder %s29, 1
      %p178 = por %p176, %p177
      %p180 = scmp.ne.s32.totalorder %s165, %s179
      %p181 = scmp.eq.s32.totalorder %s29, 0
      %p182 = por %p180, %p181
      %s184 = sadd.s32 %s183, 1
      %p187 = scmp.eq.s32.totalorder %s23, 1
      %p188 = scmp.ne.s32.totalorder %s183, %s185
      %p189 = scmp.eq.s32.totalorder %s23, 0
      %p190 = por %p188, %p189
      %p191 = scmp.ne.s32.totalorder %s183, %s185
      %p192 = scmp.eq.s32.totalorder %s28, 1
      %p193 = por %p191, %p192
      %p194 = scmp.ne.s32.totalorder %s185, %s186
      %p195 = scmp.eq.s32.totalorder %s28, 0
      %p196 = por %p194, %p195
      %p197 = scmp.ne.s32.totalorder %s185, %s186
      %p198 = scmp.eq.s32.totalorder %s29, 1
      %p199 = por %p197, %p198
      %p201 = scmp.ne.s32.totalorder %s186, %s200
      %p202 = scmp.eq.s32.totalorder %s29, 0
      %p203 = por %p201, %p202
      %s205 = sadd.s32 %s204, 1
      %p208 = scmp.eq.s32.totalorder %s23, 1
      %p209 = scmp.ne.s32.totalorder %s204, %s206
      %p210 = scmp.eq.s32.totalorder %s23, 0
      %p211 = por %p209, %p210
      %p212 = scmp.ne.s32.totalorder %s204, %s206
      %p213 = scmp.eq.s32.totalorder %s28, 1
      %p214 = por %p212, %p213
      %p215 = scmp.ne.s32.totalorder %s206, %s207
      %p216 = scmp.eq.s32.totalorder %s28, 0
      %p217 = por %p215, %p216
      %p218 = scmp.ne.s32.totalorder %s206, %s207
      %p219 = scmp.eq.s32.totalorder %s29, 1
      %p220 = por %p218, %p219
      %p222 = scmp.ne.s32.totalorder %s207, %s221
      %p223 = scmp.eq.s32.totalorder %s29, 0
      %p224 = por %p222, %p223
      %s226 = sadd.s32 %s225, 1
      %p229 = scmp.eq.s32.totalorder %s23, 1
      %p230 = scmp.ne.s32.totalorder %s225, %s227
      %p231 = scmp.eq.s32.totalorder %s23, 0
      %p232 = por %p230, %p231
      %p233 = scmp.ne.s32.totalorder %s225, %s227
      %p234 = scmp.eq.s32.totalorder %s28, 1
      %p235 = por %p233, %p234
      %p236 = scmp.ne.s32.totalorder %s227, %s228
      %p237 = scmp.eq.s32.totalorder %s28, 0
      %p238 = por %p236, %p237
      %p239 = scmp.ne.s32.totalorder %s227, %s228
      %p240 = scmp.eq.s32.totalorder %s29, 1
      %p241 = por %p239, %p240
      %p243 = scmp.ne.s32.totalorder %s228, %s242
      %p244 = scmp.eq.s32.totalorder %s29, 0
      %p245 = por %p243, %p244
      %s247 = sadd.s32 %s246, 1
      %p250 = scmp.eq.s32.totalorder %s23, 1
      %p251 = scmp.ne.s32.totalorder %s246, %s248
      %p252 = scmp.eq.s32.totalorder %s23, 0
      %p253 = por %p251, %p252
      %p254 = scmp.ne.s32.totalorder %s246, %s248
      %p255 = scmp.eq.s32.totalorder %s28, 1
      %p256 = por %p254, %p255
      %p257 = scmp.ne.s32.totalorder %s248, %s249
      %p258 = scmp.eq.s32.totalorder %s28, 0
      %p259 = por %p257, %p258
      %p260 = scmp.ne.s32.totalorder %s248, %s249
      %p261 = scmp.eq.s32.totalorder %s29, 1
      %p262 = por %p260, %p261
      %p264 = scmp.ne.s32.totalorder %s249, %s263
      %p265 = scmp.eq.s32.totalorder %s29, 0
      %p266 = por %p264, %p265
      %s268 = sadd.s32 %s267, 1
      %p271 = scmp.eq.s32.totalorder %s23, 1
      %p272 = scmp.ne.s32.totalorder %s267, %s269
      %p273 = scmp.eq.s32.totalorder %s23, 0
      %p274 = por %p272, %p273
      %p275 = scmp.ne.s32.totalorder %s267, %s269
      %p276 = scmp.eq.s32.totalorder %s28, 1
      %p277 = por %p275, %p276
      %p278 = scmp.ne.s32.totalorder %s269, %s270
      %p279 = scmp.eq.s32.totalorder %s28, 0
      %p280 = por %p278, %p279
      %p281 = scmp.ne.s32.totalorder %s269, %s270
      %p282 = scmp.eq.s32.totalorder %s29, 1
      %p283 = por %p281, %p282
      %p285 = scmp.ne.s32.totalorder %s270, %s284
      %p286 = scmp.eq.s32.totalorder %s29, 0
      %p287 = por %p285, %p286
      %s289 = sadd.s32 %s288, 1
      %p292 = scmp.eq.s32.totalorder %s23, 1
      %p293 = scmp.ne.s32.totalorder %s288, %s290
      %p294 = scmp.eq.s32.totalorder %s23, 0
      %p295 = por %p293, %p294
      %p296 = scmp.ne.s32.totalorder %s288, %s290
      %p297 = scmp.eq.s32.totalorder %s28, 1
      %p298 = por %p296, %p297
      %p299 = scmp.ne.s32.totalorder %s290, %s291
      %p300 = scmp.eq.s32.totalorder %s28, 0
      %p301 = por %p299, %p300
      %p302 = scmp.ne.s32.totalorder %s290, %s291
      %p303 = scmp.eq.s32.totalorder %s29, 1
      %p304 = por %p302, %p303
      %p306 = scmp.ne.s32.totalorder %s291, %s305
      %p307 = scmp.eq.s32.totalorder %s29, 0
      %p308 = por %p306, %p307
      %s310 = sadd.s32 %s309, 1
      %p313 = scmp.eq.s32.totalorder %s23, 1
      %p314 = scmp.ne.s32.totalorder %s309, %s311
      %p315 = scmp.eq.s32.totalorder %s23, 0
      %p316 = por %p314, %p315
      %p317 = scmp.ne.s32.totalorder %s309, %s311
      %p318 = scmp.eq.s32.totalorder %s28, 1
      %p319 = por %p317, %p318
      %p320 = scmp.ne.s32.totalorder %s311, %s312
      %p321 = scmp.eq.s32.totalorder %s28, 0
      %p322 = por %p320, %p321
      %p323 = scmp.ne.s32.totalorder %s311, %s312
      %p324 = scmp.eq.s32.totalorder %s29, 1
      %p325 = por %p323, %p324
      %p327 = scmp.ne.s32.totalorder %s312, %s326
      %p328 = scmp.eq.s32.totalorder %s29, 0
      %p329 = por %p327, %p328
      %s330 = ssub.s32 %s23, %s30
      %p331 = scmp.eq.s32.totalorder %s330, 0
      %s333 = sadd.s32 %s332, 1
      %s334 = scalar_select %p331, %s332, %s333
      %p337 = pneg %p331
      %p338 = scmp.eq.s32.totalorder %s23, 1
      %p339 = por %p337, %p338
      %p340 = scmp.ne.s32.totalorder %s332, %s335
      %p341 = scmp.eq.s32.totalorder %s23, 0
      %p342 = por %p340, %p341
      %p343 = scmp.ne.s32.totalorder %s332, %s335
      %p344 = scmp.eq.s32.totalorder %s28, 1
      %p345 = por %p343, %p344
      %p346 = scmp.ne.s32.totalorder %s335, %s336
      %p347 = scmp.eq.s32.totalorder %s28, 0
      %p348 = por %p346, %p347
      %p349 = scmp.ne.s32.totalorder %s335, %s336
      %p350 = scmp.eq.s32.totalorder %s29, 1
      %p351 = por %p349, %p350
      %p353 = scmp.ne.s32.totalorder %s336, %s352
      %p354 = scmp.eq.s32.totalorder %s29, 0
      %p355 = por %p353, %p354
      %p356 = scmp.le.s32.totalorder 1, %s23
      %p357 = scmp.lt.s32.totalorder %s23, 3
      %p358 = pnand %p356, %p357
      %p359 = pneg %p358
      // Predicated region
      $region9: #{_lambda_.11} parent=5 // pred_check
        _
      $region10: #{_lambda_.11} parent=5 // pred_check_branch
        %361 = sbr.rel (%p358) target = $region12
      $region11: #{_lambda_.11} parent=5 // pred_region
        %s362 = ssub.s32 %s23, 1
        // Predicated region
        $region13: #{_lambda_.11} parent=11 // pred_check
          %p363 = pneg %p70
        $region14: #{_lambda_.11} parent=11 // pred_check_branch
          %365 = sbr.rel (%p363) target = $region16
        $region15: #{_lambda_.11} parent=11 // pred_region
          _
        $region16: #{_lambda_.11} parent=11 // pred_fallthru
          _
        // Predicated region
        $region17: #{_lambda_.11} parent=11 // pred_check
          %p366 = pneg %p91
        $region18: #{_lambda_.11} parent=11 // pred_check_branch
          %368 = sbr.rel (%p366) target = $region20
        $region19: #{_lambda_.11} parent=11 // pred_region
          _
        $region20: #{_lambda_.11} parent=11 // pred_fallthru
          _
        // Predicated region
        $region21: #{_lambda_.11} parent=11 // pred_check
          %p369 = pneg %p112
        $region22: #{_lambda_.11} parent=11 // pred_check_branch
          %371 = sbr.rel (%p369) target = $region24
        $region23: #{_lambda_.11} parent=11 // pred_region
          _
        $region24: #{_lambda_.11} parent=11 // pred_fallthru
          _
        // Predicated region
        $region25: #{_lambda_.11} parent=11 // pred_check
          %p372 = pneg %p133
        $region26: #{_lambda_.11} parent=11 // pred_check_branch
          %374 = sbr.rel (%p372) target = $region28
        $region27: #{_lambda_.11} parent=11 // pred_region
          _
        $region28: #{_lambda_.11} parent=11 // pred_fallthru
          _
        // Predicated region
        $region29: #{_lambda_.11} parent=11 // pred_check
          %p375 = pneg %p154
        $region30: #{_lambda_.11} parent=11 // pred_check_branch
          %377 = sbr.rel (%p375) target = $region32
        $region31: #{_lambda_.11} parent=11 // pred_region
          _
        $region32: #{_lambda_.11} parent=11 // pred_fallthru
          _
        // Predicated region
        $region33: #{_lambda_.11} parent=11 // pred_check
          %p378 = pneg %p175
        $region34: #{_lambda_.11} parent=11 // pred_check_branch
          %380 = sbr.rel (%p378) target = $region36
        $region35: #{_lambda_.11} parent=11 // pred_region
          _
        $region36: #{_lambda_.11} parent=11 // pred_fallthru
          _
        // Predicated region
        $region37: #{_lambda_.11} parent=11 // pred_check
          %p381 = pneg %p196
        $region38: #{_lambda_.11} parent=11 // pred_check_branch
          %383 = sbr.rel (%p381) target = $region40
        $region39: #{_lambda_.11} parent=11 // pred_region
          _
        $region40: #{_lambda_.11} parent=11 // pred_fallthru
          _
        // Predicated region
        $region41: #{_lambda_.11} parent=11 // pred_check
          %p384 = pneg %p217
        $region42: #{_lambda_.11} parent=11 // pred_check_branch
          %386 = sbr.rel (%p384) target = $region44
        $region43: #{_lambda_.11} parent=11 // pred_region
          _
        $region44: #{_lambda_.11} parent=11 // pred_fallthru
          _
        // Predicated region
        $region45: #{_lambda_.11} parent=11 // pred_check
          %p387 = pneg %p238
        $region46: #{_lambda_.11} parent=11 // pred_check_branch
          %389 = sbr.rel (%p387) target = $region48
        $region47: #{_lambda_.11} parent=11 // pred_region
          _
        $region48: #{_lambda_.11} parent=11 // pred_fallthru
          _
        // Predicated region
        $region49: #{_lambda_.11} parent=11 // pred_check
          %p390 = pneg %p259
        $region50: #{_lambda_.11} parent=11 // pred_check_branch
          %392 = sbr.rel (%p390) target = $region52
        $region51: #{_lambda_.11} parent=11 // pred_region
          _
        $region52: #{_lambda_.11} parent=11 // pred_fallthru
          _
        // Predicated region
        $region53: #{_lambda_.11} parent=11 // pred_check
          %p393 = pneg %p280
        $region54: #{_lambda_.11} parent=11 // pred_check_branch
          %395 = sbr.rel (%p393) target = $region56
        $region55: #{_lambda_.11} parent=11 // pred_region
          _
        $region56: #{_lambda_.11} parent=11 // pred_fallthru
          _
        // Predicated region
        $region57: #{_lambda_.11} parent=11 // pred_check
          %p396 = pneg %p301
        $region58: #{_lambda_.11} parent=11 // pred_check_branch
          %398 = sbr.rel (%p396) target = $region60
        $region59: #{_lambda_.11} parent=11 // pred_region
          _
        $region60: #{_lambda_.11} parent=11 // pred_fallthru
          _
        // Predicated region
        $region61: #{_lambda_.11} parent=11 // pred_check
          %p399 = pneg %p322
        $region62: #{_lambda_.11} parent=11 // pred_check_branch
          %401 = sbr.rel (%p399) target = $region64
        $region63: #{_lambda_.11} parent=11 // pred_region
          _
        $region64: #{_lambda_.11} parent=11 // pred_fallthru
          _
      $region12: #{_lambda_.11} parent=5 // pred_fallthru
        _
      %p402 = scmp.lt.s32.totalorder %s23, 2
      // Predicated region
      $region65: #{_lambda_.11} parent=5 // pred_check
        %p403 = pneg %p402
      $region66: #{_lambda_.11} parent=5 // pred_check_branch
        %405 = sbr.rel (%p403) target = $region68
      $region67: #{_lambda_.11} parent=5 // pred_region
        // Predicated region
        $region69: #{_lambda_.11} parent=67 // pred_check
          %p406 = pneg %p43
        $region70: #{_lambda_.11} parent=67 // pred_check_branch
          %408 = sbr.rel (%p406) target = $region72
        $region71: #{_lambda_.11} parent=67 // pred_region
          %p409 = scmp.lt.s32.totalorder %s23, 1
          %s410 = scalar_select %p409, %s23, 1
          %s411 = smul.addr %s410, 2
          %s412 = smul.addr %s411, 8
          %s413 = scalar_lea.vmem %s0, %s412
        $region72: #{_lambda_.11} parent=67 // pred_fallthru
          _
      $region68: #{_lambda_.11} parent=5 // pred_fallthru
        _
      %p414 = scmp.le.s32.totalorder 1, %s23
      %p415 = scmp.lt.s32.totalorder %s23, 3
      %p416 = pnand %p414, %p415
      %p417 = pneg %p416
      // Predicated region
      $region73: #{_lambda_.11} parent=5 // pred_check
        _
      $region74: #{_lambda_.11} parent=5 // pred_check_branch
        %419 = sbr.rel (%p416) target = $region76
      $region75: #{_lambda_.11} parent=5 // pred_region
        %s420 = ssub.s32 %s23, 1
        %p421 = scmp.lt.s32.totalorder %s28, 1
        %s422 = scalar_select %p421, %s28, 1
        %s423 = smul.addr %s422, 2
        %s424 = smul.addr %s423, 8
        %s425 = scalar_lea.vmem %s0, %s424
        %p426 = pneg %p49
        %p427 = pneg %p46
        %p428 = pneg %p70
        %p429 = pneg %p67
        %p430 = pneg %p91
        %p431 = pneg %p88
        %p432 = pneg %p112
        %p433 = pneg %p109
        %p434 = pneg %p133
        %p435 = pneg %p130
        %p436 = pneg %p154
        %p437 = pneg %p151
        %p438 = pneg %p175
        %p439 = pneg %p172
        %p440 = pneg %p196
        %p441 = pneg %p193
        %p442 = pneg %p217
        %p443 = pneg %p214
        %p444 = pneg %p238
        %p445 = pneg %p235
        %p446 = pneg %p259
        %p447 = pneg %p256
        %p448 = pneg %p280
        %p449 = pneg %p277
        %p450 = pneg %p301
        %p451 = pneg %p298
        %p452 = pneg %p322
        %p453 = pneg %p319
        %p454 = pneg %p348
        %p455 = pneg %p345
        %s456 = sand.u32 %s335, 1
        %s457 = scalar_lea.sflag [#allocation3], %s456
        %s458 = sand.u32 %s335, 1
        %s459 = scalar_lea.vmem [#allocation2], %s458
        %p460 = scmp.lt.s32.totalorder %s28, 1
        %s461 = scalar_select %p460, %s28, 1
        %s462 = smul.addr %s461, 2
        %s463 = smul.addr %s462, 8
        %s464 = scalar_lea.vmem %s0, %s463
        %v465 = vld [vmem:[%s464] sm:$0xff]
        %v466 = vld [vmem:[%s464 + $0x8] sm:$0x7f]
        %v467 = vld [vmem:[%s2] sm:$0xff]
        %v468 = vld [vmem:[%s2 + $0x8] sm:$0xff]
        %v469 = vld [vmem:[%s2 + $0x10] sm:$0xff]
        %v470 = vld [vmem:[%s2 + $0x18] sm:$0xff]
        %v471 = vld [vmem:[%s3] sm:$0x1]
        %v473 = vperm.slane %v471, 0
        %vm475 = vcmask 261120
        %v477 = vsel %vm475, %v465, 0
        %v480 = vsel %vm475, %v466, 0
        %482 = vmatpush.msra.mxu0 0.0
        %483 = vmatpush.msra.mxu0 0.0
        %484 = vmatpush.msra.mxu0 0.0
        %485 = vmatpush.msra.mxu0 0.0
        %486 = vmatpush.msra.mxu0 0.0
        %487 = vmatpush.msra.mxu0 0.0
        %488 = vmatpush.msra.mxu0 0.0
        %489 = vmatpush.msra.mxu0 0.0
        %490 = vmatpush.msra.mxu0 0.0
        %491 = vmatpush.msra.mxu0 0.0
        %492 = vmatpush.msra.mxu0 0.0
        %493 = vmatpush.msra.mxu0 0.0
        %494 = vmatpush.msra.mxu0 %v470
        %495 = vmatpush.msra.mxu0 %v469
        %496 = vmatpush.msra.mxu0 %v468
        %497 = vmatpush.msra.mxu0 %v467
        %498 = vmatmul.f32.gmra.mxu0 %v477
        %v499 = vpop.f32.mrf.mxu0
        %v500 = vadd.f32 %v473, %v499
        %501 = vmatmul.f32.gmra.mxu0 %v480
        %v502 = vpop.f32.mrf.mxu0
        %v503 = vadd.f32 %v473, %v502
        %504 = vdwg.mxu0
        %v505 = vld [vmem:[%s1] sm:$0x1]
        %vm506 = vcmask 64512
        %v508 = vsel %vm506, %v505, 0
        %v511 = vsel %vm506, %v500, 0
        %v514 = vsel %vm506, %v503, 0
        %516 = vmatpush.xpose.msra.mxu0 0.0
        %517 = vmatpush.xpose.msra.mxu0 0.0
        %518 = vmatpush.xpose.msra.mxu0 0.0
        %519 = vmatpush.xpose.msra.mxu0 0.0
        %520 = vmatpush.xpose.msra.mxu0 0.0
        %521 = vmatpush.xpose.msra.mxu0 0.0
        %522 = vmatpush.xpose.msra.mxu0 0.0
        %523 = vmatpush.xpose.msra.mxu0 0.0
        %524 = vmatpush.xpose.msra.mxu0 0.0
        %525 = vmatpush.xpose.msra.mxu0 0.0
        %526 = vmatpush.xpose.msra.mxu0 0.0
        %527 = vmatpush.xpose.msra.mxu0 0.0
        %528 = vmatpush.xpose.msra.mxu0 0.0
        %529 = vmatpush.xpose.msra.mxu0 0.0
        %530 = vmatpush.xpose.msra.mxu0 %v514
        %531 = vmatpush.xpose.msra.mxu0 %v511
        %532 = vmatmul.f32.gmra.mxu0 %v508
        %v533 = vpop.f32.mrf.mxu0
        %v534 = vadd.f32 0.0, %v533
        %535 = vdwg.mxu0
        %v536 = vmul.f32 %v534, 0.35355338
        %vm537 = vcmask 114688
        %v538 = vsel %vm537, %v536, -inf
        %539 = vmax.xlane.f32.xlu0 %v538
        %v540 = vpop.xlane.xlu0 %539
        %v541 = vsub.f32 %v536, %v540
        %v542 = vmul.f32 %v541, 1.442695
        %v543 = vpow.pop %v542
        %v544 = vsel %vm537, %v543, 0.0
        %545 = vadd.xlane.f32.xlu0 %v544
        %v546 = vpop.xlane.xlu0 %545
        %v547 = vrcp.pop %v546
        %v548 = vmul.f32 %v543, %v547
        %549 = vrot.lane.b32.xlu0 %v500, 96
        %v550 = vpop.permute.xlu0 %549
        %551 = vrot.lane.b32.xlu0 %v503, 96
        %v552 = vpop.permute.xlu0 %551
        %vm554 = vcmask 121856
        %v556 = vsel %vm554, %v548, 0
        %vm558 = vcmask 1046528
        %v559 = vsel %vm558, %v552, 0
        %561 = vmatpush.msra.mxu0 0.0
        %562 = vmatpush.msra.mxu0 0.0
        %563 = vmatpush.msra.mxu0 0.0
        %564 = vmatpush.msra.mxu0 0.0
        %565 = vmatpush.msra.mxu0 0.0
        %566 = vmatpush.msra.mxu0 0.0
        %567 = vmatpush.msra.mxu0 0.0
        %568 = vmatpush.msra.mxu0 0.0
        %569 = vmatpush.msra.mxu0 0.0
        %570 = vmatpush.msra.mxu0 0.0
        %571 = vmatpush.msra.mxu0 0.0
        %572 = vmatpush.msra.mxu0 0.0
        %573 = vmatpush.msra.mxu0 0.0
        %574 = vmatpush.msra.mxu0 0.0
        %575 = vmatpush.msra.mxu0 %v559
        %576 = vmatpush.msra.mxu0 %v550
        %577 = vmatmul.f32.gmra.mxu0 %v556
        %v578 = vpop.f32.mrf.mxu0
        %v579 = vadd.f32 0.0, %v578
        %580 = vdwg.mxu0
        %v581 = vld [vmem:[%s4] sm:$0xff]
        %v582 = vperm.slane %v505, 0
        %583 = vrot.lane.b32.xlu0 %v582, 120
        %v584 = vpop.permute.xlu0 %583
        %585 = vrot.lane.b32.xlu0 %v500, 120
        %v586 = vpop.permute.xlu0 %585
        %587 = vrot.lane.b32.xlu0 %v503, 120
        %v588 = vpop.permute.xlu0 %587
        %v589 = vsel %vm506, %v584, 0
        %v591 = vsel %vm506, %v586, 0
        %v593 = vsel %vm506, %v588, 0
        %595 = vmatpush.xpose.msra.mxu0 0.0
        %596 = vmatpush.xpose.msra.mxu0 0.0
        %597 = vmatpush.xpose.msra.mxu0 0.0
        %598 = vmatpush.xpose.msra.mxu0 0.0
        %599 = vmatpush.xpose.msra.mxu0 0.0
        %600 = vmatpush.xpose.msra.mxu0 0.0
        %601 = vmatpush.xpose.msra.mxu0 0.0
        %602 = vmatpush.xpose.msra.mxu0 0.0
        %603 = vmatpush.xpose.msra.mxu0 0.0
        %604 = vmatpush.xpose.msra.mxu0 0.0
        %605 = vmatpush.xpose.msra.mxu0 0.0
        %606 = vmatpush.xpose.msra.mxu0 0.0
        %607 = vmatpush.xpose.msra.mxu0 0.0
        %608 = vmatpush.xpose.msra.mxu0 0.0
        %609 = vmatpush.xpose.msra.mxu0 %v593
        %610 = vmatpush.xpose.msra.mxu0 %v591
        %611 = vmatmul.f32.gmra.mxu0 %v589
        %v612 = vpop.f32.mrf.mxu0
        %v613 = vadd.f32 0.0, %v612
        %614 = vdwg.mxu0
        %v615 = vmul.f32 %v613, 0.35355338
        %v616 = vsel %vm537, %v615, -inf
        %617 = vmax.xlane.f32.xlu0 %v616
        %v618 = vpop.xlane.xlu0 %617
        %v619 = vsub.f32 %v615, %v618
        %v620 = vmul.f32 %v619, 1.442695
        %v621 = vpow.pop %v620
        %v622 = vsel %vm537, %v621, 0.0
        %623 = vadd.xlane.f32.xlu0 %v622
        %v624 = vpop.xlane.xlu0 %623
        %v625 = vrcp.pop %v624
        %v626 = vmul.f32 %v621, %v625
        %627 = vrot.lane.b32.xlu0 %v500, 88
        %v628 = vpop.permute.xlu0 %627
        %629 = vrot.lane.b32.xlu0 %v503, 88
        %v630 = vpop.permute.xlu0 %629
        %v633 = vsel %vm554, %v626, 0
        %v635 = vsel %vm558, %v630, 0
        %637 = vmatpush.msra.mxu0 0.0
        %638 = vmatpush.msra.mxu0 0.0
        %639 = vmatpush.msra.mxu0 0.0
        %640 = vmatpush.msra.mxu0 0.0
        %641 = vmatpush.msra.mxu0 0.0
        %642 = vmatpush.msra.mxu0 0.0
        %643 = vmatpush.msra.mxu0 0.0
        %644 = vmatpush.msra.mxu0 0.0
        %645 = vmatpush.msra.mxu0 0.0
        %646 = vmatpush.msra.mxu0 0.0
        %647 = vmatpush.msra.mxu0 0.0
        %648 = vmatpush.msra.mxu0 0.0
        %649 = vmatpush.msra.mxu0 0.0
        %650 = vmatpush.msra.mxu0 0.0
        %651 = vmatpush.msra.mxu0 %v635
        %652 = vmatpush.msra.mxu0 %v628
        %653 = vmatmul.f32.gmra.mxu0 %v633
        %v654 = vpop.f32.mrf.mxu0
        %v655 = vadd.f32 0.0, %v654
        %656 = vdwg.mxu0
        %v657 = vld [vmem:[%s4 + $0x8] sm:$0xff]
        %v659 = vsel %vm506, %v655, 0
        %661 = vmatpush.msra.mxu0 0.0
        %662 = vmatpush.msra.mxu0 0.0
        %663 = vmatpush.msra.mxu0 0.0
        %664 = vmatpush.msra.mxu0 0.0
        %665 = vmatpush.msra.mxu0 0.0
        %666 = vmatpush.msra.mxu0 0.0
        %667 = vmatpush.msra.mxu0 0.0
        %668 = vmatpush.msra.mxu0 0.0
        %669 = vmatpush.msra.mxu0 0.0
        %670 = vmatpush.msra.mxu0 0.0
        %671 = vmatpush.msra.mxu0 0.0
        %672 = vmatpush.msra.mxu0 0.0
        %673 = vmatpush.msra.mxu0 0.0
        %674 = vmatpush.msra.mxu0 0.0
        %675 = vmatpush.msra.mxu0 0.0
        %676 = vmatpush.msra.mxu0 %v657
        %677 = vmatmul.f32.gmra.mxu0 %v659
        %v678 = vpop.f32.mrf.mxu0
        %v679 = vadd.f32 0.0, %v678
        %680 = vdwg.mxu0
        %v682 = vsel %vm506, %v579, 0
        %684 = vmatpush.msra.mxu0 0.0
        %685 = vmatpush.msra.mxu0 0.0
        %686 = vmatpush.msra.mxu0 0.0
        %687 = vmatpush.msra.mxu0 0.0
        %688 = vmatpush.msra.mxu0 0.0
        %689 = vmatpush.msra.mxu0 0.0
        %690 = vmatpush.msra.mxu0 0.0
        %691 = vmatpush.msra.mxu0 0.0
        %692 = vmatpush.msra.mxu0 0.0
        %693 = vmatpush.msra.mxu0 0.0
        %694 = vmatpush.msra.mxu0 0.0
        %695 = vmatpush.msra.mxu0 0.0
        %696 = vmatpush.msra.mxu0 0.0
        %697 = vmatpush.msra.mxu0 0.0
        %698 = vmatpush.msra.mxu0 0.0
        %699 = vmatpush.msra.mxu0 %v581
        %700 = vmatmul.f32.gmra.mxu0 %v682
        %v701 = vpop.f32.mrf.mxu0
        %v702 = vadd.f32 %v679, %v701
        %703 = vdwg.mxu0
        %704 = vrot.lane.b32.xlu0 %v582, 112
        %v705 = vpop.permute.xlu0 %704
        %706 = vrot.lane.b32.xlu0 %v500, 112
        %v707 = vpop.permute.xlu0 %706
        %708 = vrot.lane.b32.xlu0 %v503, 112
        %v709 = vpop.permute.xlu0 %708
        %v710 = vsel %vm506, %v705, 0
        %v712 = vsel %vm506, %v707, 0
        %v714 = vsel %vm506, %v709, 0
        %716 = vmatpush.xpose.msra.mxu0 0.0
        %717 = vmatpush.xpose.msra.mxu0 0.0
        %718 = vmatpush.xpose.msra.mxu0 0.0
        %719 = vmatpush.xpose.msra.mxu0 0.0
        %720 = vmatpush.xpose.msra.mxu0 0.0
        %721 = vmatpush.xpose.msra.mxu0 0.0
        %722 = vmatpush.xpose.msra.mxu0 0.0
        %723 = vmatpush.xpose.msra.mxu0 0.0
        %724 = vmatpush.xpose.msra.mxu0 0.0
        %725 = vmatpush.xpose.msra.mxu0 0.0
        %726 = vmatpush.xpose.msra.mxu0 0.0
        %727 = vmatpush.xpose.msra.mxu0 0.0
        %728 = vmatpush.xpose.msra.mxu0 0.0
        %729 = vmatpush.xpose.msra.mxu0 0.0
        %730 = vmatpush.xpose.msra.mxu0 %v714
        %731 = vmatpush.xpose.msra.mxu0 %v712
        %732 = vmatmul.f32.gmra.mxu0 %v710
        %v733 = vpop.f32.mrf.mxu0
        %v734 = vadd.f32 0.0, %v733
        %735 = vdwg.mxu0
        %v736 = vmul.f32 %v734, 0.35355338
        %v737 = vsel %vm537, %v736, -inf
        %738 = vmax.xlane.f32.xlu0 %v737
        %v739 = vpop.xlane.xlu0 %738
        %v740 = vsub.f32 %v736, %v739
        %v741 = vmul.f32 %v740, 1.442695
        %v742 = vpow.pop %v741
        %v743 = vsel %vm537, %v742, 0.0
        %744 = vadd.xlane.f32.xlu0 %v743
        %v745 = vpop.xlane.xlu0 %744
        %v746 = vrcp.pop %v745
        %v747 = vmul.f32 %v742, %v746
        %748 = vrot.lane.b32.xlu0 %v500, 80
        %v749 = vpop.permute.xlu0 %748
        %750 = vrot.lane.b32.xlu0 %v503, 80
        %v751 = vpop.permute.xlu0 %750
        %v754 = vsel %vm554, %v747, 0
        %v756 = vsel %vm558, %v751, 0
        %758 = vmatpush.msra.mxu0 0.0
        %759 = vmatpush.msra.mxu0 0.0
        %760 = vmatpush.msra.mxu0 0.0
        %761 = vmatpush.msra.mxu0 0.0
        %762 = vmatpush.msra.mxu0 0.0
        %763 = vmatpush.msra.mxu0 0.0
        %764 = vmatpush.msra.mxu0 0.0
        %765 = vmatpush.msra.mxu0 0.0
        %766 = vmatpush.msra.mxu0 0.0
        %767 = vmatpush.msra.mxu0 0.0
        %768 = vmatpush.msra.mxu0 0.0
        %769 = vmatpush.msra.mxu0 0.0
        %770 = vmatpush.msra.mxu0 0.0
        %771 = vmatpush.msra.mxu0 0.0
        %772 = vmatpush.msra.mxu0 %v756
        %773 = vmatpush.msra.mxu0 %v749
        %774 = vmatmul.f32.gmra.mxu0 %v754
        %v775 = vpop.f32.mrf.mxu0
        %v776 = vadd.f32 0.0, %v775
        %777 = vdwg.mxu0
        %v778 = vld [vmem:[%s4 + $0x10] sm:$0xff]
        %v780 = vsel %vm506, %v776, 0
        %782 = vmatpush.msra.mxu0 0.0
        %783 = vmatpush.msra.mxu0 0.0
        %784 = vmatpush.msra.mxu0 0.0
        %785 = vmatpush.msra.mxu0 0.0
        %786 = vmatpush.msra.mxu0 0.0
        %787 = vmatpush.msra.mxu0 0.0
        %788 = vmatpush.msra.mxu0 0.0
        %789 = vmatpush.msra.mxu0 0.0
        %790 = vmatpush.msra.mxu0 0.0
        %791 = vmatpush.msra.mxu0 0.0
        %792 = vmatpush.msra.mxu0 0.0
        %793 = vmatpush.msra.mxu0 0.0
        %794 = vmatpush.msra.mxu0 0.0
        %795 = vmatpush.msra.mxu0 0.0
        %796 = vmatpush.msra.mxu0 0.0
        %797 = vmatpush.msra.mxu0 %v778
        %798 = vmatmul.f32.gmra.mxu0 %v780
        %v799 = vpop.f32.mrf.mxu0
        %v800 = vadd.f32 0.0, %v799
        %801 = vdwg.mxu0
        %v802 = vadd.f32 %v702, %v800
        %803 = vrot.lane.b32.xlu0 %v582, 104
        %v804 = vpop.permute.xlu0 %803
        %805 = vrot.lane.b32.xlu0 %v500, 104
        %v806 = vpop.permute.xlu0 %805
        %807 = vrot.lane.b32.xlu0 %v503, 104
        %v808 = vpop.permute.xlu0 %807
        %v809 = vsel %vm506, %v804, 0
        %v811 = vsel %vm506, %v806, 0
        %v813 = vsel %vm506, %v808, 0
        %815 = vmatpush.xpose.msra.mxu0 0.0
        %816 = vmatpush.xpose.msra.mxu0 0.0
        %817 = vmatpush.xpose.msra.mxu0 0.0
        %818 = vmatpush.xpose.msra.mxu0 0.0
        %819 = vmatpush.xpose.msra.mxu0 0.0
        %820 = vmatpush.xpose.msra.mxu0 0.0
        %821 = vmatpush.xpose.msra.mxu0 0.0
        %822 = vmatpush.xpose.msra.mxu0 0.0
        %823 = vmatpush.xpose.msra.mxu0 0.0
        %824 = vmatpush.xpose.msra.mxu0 0.0
        %825 = vmatpush.xpose.msra.mxu0 0.0
        %826 = vmatpush.xpose.msra.mxu0 0.0
        %827 = vmatpush.xpose.msra.mxu0 0.0
        %828 = vmatpush.xpose.msra.mxu0 0.0
        %829 = vmatpush.xpose.msra.mxu0 %v813
        %830 = vmatpush.xpose.msra.mxu0 %v811
        %831 = vmatmul.f32.gmra.mxu0 %v809
        %v832 = vpop.f32.mrf.mxu0
        %v833 = vadd.f32 0.0, %v832
        %834 = vdwg.mxu0
        %v835 = vmul.f32 %v833, 0.35355338
        %v836 = vsel %vm537, %v835, -inf
        %837 = vmax.xlane.f32.xlu0 %v836
        %v838 = vpop.xlane.xlu0 %837
        %v839 = vsub.f32 %v835, %v838
        %v840 = vmul.f32 %v839, 1.442695
        %v841 = vpow.pop %v840
        %v842 = vsel %vm537, %v841, 0.0
        %843 = vadd.xlane.f32.xlu0 %v842
        %v844 = vpop.xlane.xlu0 %843
        %v845 = vrcp.pop %v844
        %v846 = vmul.f32 %v841, %v845
        %847 = vrot.lane.b32.xlu0 %v500, 72
        %v848 = vpop.permute.xlu0 %847
        %849 = vrot.lane.b32.xlu0 %v503, 72
        %v850 = vpop.permute.xlu0 %849
        %v853 = vsel %vm554, %v846, 0
        %v855 = vsel %vm558, %v850, 0
        %857 = vmatpush.msra.mxu0 0.0
        %858 = vmatpush.msra.mxu0 0.0
        %859 = vmatpush.msra.mxu0 0.0
        %860 = vmatpush.msra.mxu0 0.0
        %861 = vmatpush.msra.mxu0 0.0
        %862 = vmatpush.msra.mxu0 0.0
        %863 = vmatpush.msra.mxu0 0.0
        %864 = vmatpush.msra.mxu0 0.0
        %865 = vmatpush.msra.mxu0 0.0
        %866 = vmatpush.msra.mxu0 0.0
        %867 = vmatpush.msra.mxu0 0.0
        %868 = vmatpush.msra.mxu0 0.0
        %869 = vmatpush.msra.mxu0 0.0
        %870 = vmatpush.msra.mxu0 0.0
        %871 = vmatpush.msra.mxu0 %v855
        %872 = vmatpush.msra.mxu0 %v848
        %873 = vmatmul.f32.gmra.mxu0 %v853
        %v874 = vpop.f32.mrf.mxu0
        %v875 = vadd.f32 0.0, %v874
        %876 = vdwg.mxu0
        %v877 = vld [vmem:[%s4 + $0x18] sm:$0xff]
        %v879 = vsel %vm506, %v875, 0
        %881 = vmatpush.msra.mxu0 0.0
        %882 = vmatpush.msra.mxu0 0.0
        %883 = vmatpush.msra.mxu0 0.0
        %884 = vmatpush.msra.mxu0 0.0
        %885 = vmatpush.msra.mxu0 0.0
        %886 = vmatpush.msra.mxu0 0.0
        %887 = vmatpush.msra.mxu0 0.0
        %888 = vmatpush.msra.mxu0 0.0
        %889 = vmatpush.msra.mxu0 0.0
        %890 = vmatpush.msra.mxu0 0.0
        %891 = vmatpush.msra.mxu0 0.0
        %892 = vmatpush.msra.mxu0 0.0
        %893 = vmatpush.msra.mxu0 0.0
        %894 = vmatpush.msra.mxu0 0.0
        %895 = vmatpush.msra.mxu0 0.0
        %896 = vmatpush.msra.mxu0 %v877
        %897 = vmatmul.f32.gmra.mxu0 %v879
        %v898 = vpop.f32.mrf.mxu0
        %v899 = vadd.f32 0.0, %v898
        %900 = vdwg.mxu0
        %v901 = vadd.f32 %v802, %v899
        %v902 = vld [vmem:[%s5] sm:$0x1]
        %v903 = vadd.f32 %v901, %v902
        %v904 = vld [vmem:[%s6] sm:$0x1]
        %v905 = vld [vmem:[%s7] sm:$0x1]
        %vm906 = vcmask 253952
        %v907 = vsel %vm906, %v903, 0.0
        %908 = vadd.xlane.f32.xlu0 %v907
        %v909 = vpop.xlane.xlu0 %908
        %v910 = vrcp.pop 32.0
        %v911 = vmul.f32 32.0, %v910
        %v912 = vsub.f32 1.0, %v911
        %v913 = vmul.f32 %v910, %v912
        %v914 = vadd.f32 %v910, %v913
        %vm915 = vweird.f32 %v910
        %v916 = vsel %vm915, %v910, %v914
        %v917 = vmul.f32 %v909, %v916
        %v918 = vsub.f32 %v903, %v917
        %v919 = vmul.f32 %v918, %v918
        %v920 = vsel %vm906, %v919, 0.0
        %921 = vadd.xlane.f32.xlu0 %v920
        %v922 = vpop.xlane.xlu0 %921
        %v923 = vmul.f32 %v922, %v916
        %v924 = vadd.f32 %v923, 1e-05
        %v925 = vrsqrt.pop %v924
        %v926 = vmul.f32 %v925, %v924
        %v927 = vmul.f32 %v926, %v925
        %v928 = vmul.f32 0.5, %v927
        %v929 = vsub.f32 1.5, %v928
        %v930 = vmul.f32 %v925, %v929
        %vm931 = vweird.f32 %v924
        %vm932 = vweird.f32 %v925
        %vm933 = vmor %vm931, %vm932
        %v934 = vsel %vm933, %v925, %v930
        %v935 = vmul.f32 %v918, %v934
        %v936 = vmul.f32 %v935, %v904
        %v937 = vadd.f32 %v936, %v905
        %v938 = vld [vmem:[%s8] sm:$0xff]
        %v939 = vld [vmem:[%s8 + $0x8] sm:$0xff]
        %v940 = vld [vmem:[%s8 + $0x10] sm:$0xff]
        %v941 = vld [vmem:[%s8 + $0x18] sm:$0xff]
        %v942 = vld [vmem:[%s8 + $0x20] sm:$0xff]
        %v943 = vld [vmem:[%s8 + $0x28] sm:$0xff]
        %v944 = vld [vmem:[%s8 + $0x30] sm:$0xff]
        %v945 = vld [vmem:[%s8 + $0x38] sm:$0xff]
        %v946 = vld [vmem:[%s9] sm:$0x3]
        %v948 = vperm.slane %v946, 0
        %v949 = vperm.slane %v946, 1
        %v953 = vsel %vm475, %v937, 0
        %955 = vmatpush.msra.mxu0 0.0
        %956 = vmatpush.msra.mxu0 0.0
        %957 = vmatpush.msra.mxu0 0.0
        %958 = vmatpush.msra.mxu0 0.0
        %959 = vmatpush.msra.mxu0 0.0
        %960 = vmatpush.msra.mxu0 0.0
        %961 = vmatpush.msra.mxu0 0.0
        %962 = vmatpush.msra.mxu0 0.0
        %963 = vmatpush.msra.mxu0 0.0
        %964 = vmatpush.msra.mxu0 0.0
        %965 = vmatpush.msra.mxu0 0.0
        %966 = vmatpush.msra.mxu0 0.0
        %967 = vmatpush.msra.mxu0 %v944
        %968 = vmatpush.msra.mxu0 %v942
        %969 = vmatpush.msra.mxu0 %v940
        %970 = vmatpush.msra.mxu0 %v938
        %971 = vmatmul.f32.gmra.mxu0 %v953
        %v972 = vpop.f32.mrf.mxu0
        %v973 = vadd.f32 %v948, %v972
        %974 = vdwg.mxu0
        %975 = vmatpush.msra.mxu0 0.0
        %976 = vmatpush.msra.mxu0 0.0
        %977 = vmatpush.msra.mxu0 0.0
        %978 = vmatpush.msra.mxu0 0.0
        %979 = vmatpush.msra.mxu0 0.0
        %980 = vmatpush.msra.mxu0 0.0
        %981 = vmatpush.msra.mxu0 0.0
        %982 = vmatpush.msra.mxu0 0.0
        %983 = vmatpush.msra.mxu0 0.0
        %984 = vmatpush.msra.mxu0 0.0
        %985 = vmatpush.msra.mxu0 0.0
        %986 = vmatpush.msra.mxu0 0.0
        %987 = vmatpush.msra.mxu0 %v945
        %988 = vmatpush.msra.mxu0 %v943
        %989 = vmatpush.msra.mxu0 %v941
        %990 = vmatpush.msra.mxu0 %v939
        %991 = vmatmul.f32.gmra.mxu0 %v953
        %v992 = vpop.f32.mrf.mxu0
        %v993 = vadd.f32 %v949, %v992
        %994 = vdwg.mxu0
        %v995 = vmax.f32 %v973, 0.0
        %v996 = vmax.f32 %v993, 0.0
        %v997 = vld [vmem:[%s10] sm:$0xff]
        %v998 = vld [vmem:[%s10 + $0x8] sm:$0xff]
        %v999 = vld [vmem:[%s10 + $0x10] sm:$0xff]
        %v1000 = vld [vmem:[%s10 + $0x18] sm:$0xff]
        %v1001 = vld [vmem:[%s10 + $0x20] sm:$0xff]
        %v1002 = vld [vmem:[%s10 + $0x28] sm:$0xff]
        %v1003 = vld [vmem:[%s10 + $0x30] sm:$0xff]
        %v1004 = vld [vmem:[%s10 + $0x38] sm:$0xff]
        %v1005 = vld [vmem:[%s10 + $0x40] sm:$0xff]
        %v1006 = vld [vmem:[%s10 + $0x48] sm:$0xff]
        %v1007 = vld [vmem:[%s10 + $0x50] sm:$0xff]
        %v1008 = vld [vmem:[%s10 + $0x58] sm:$0xff]
        %v1009 = vld [vmem:[%s10 + $0x60] sm:$0xff]
        %v1010 = vld [vmem:[%s10 + $0x68] sm:$0xff]
        %v1011 = vld [vmem:[%s10 + $0x70] sm:$0xff]
        %v1012 = vld [vmem:[%s10 + $0x78] sm:$0xff]
        %v1013 = vld [vmem:[%s10 + $0x80] sm:$0xff]
        %v1014 = vld [vmem:[%s10 + $0x88] sm:$0xff]
        %v1015 = vld [vmem:[%s10 + $0x90] sm:$0xff]
        %v1016 = vld [vmem:[%s10 + $0x98] sm:$0xff]
        %v1017 = vld [vmem:[%s10 + $0xa0] sm:$0xff]
        %v1018 = vld [vmem:[%s10 + $0xa8] sm:$0xff]
        %v1019 = vld [vmem:[%s10 + $0xb0] sm:$0xff]
        %v1020 = vld [vmem:[%s10 + $0xb8] sm:$0xff]
        %v1021 = vld [vmem:[%s10 + $0xc0] sm:$0xff]
        %v1022 = vld [vmem:[%s10 + $0xc8] sm:$0xff]
        %v1023 = vld [vmem:[%s10 + $0xd0] sm:$0xff]
        %v1024 = vld [vmem:[%s10 + $0xd8] sm:$0xff]
        %v1025 = vld [vmem:[%s10 + $0xe0] sm:$0xff]
        %v1026 = vld [vmem:[%s10 + $0xe8] sm:$0xff]
        %v1027 = vld [vmem:[%s10 + $0xf0] sm:$0xff]
        %v1028 = vld [vmem:[%s10 + $0xf8] sm:$0xff]
        %v1029 = vld [vmem:[%s10 + $0x100] sm:$0xff]
        %v1030 = vld [vmem:[%s10 + $0x108] sm:$0xff]
        %v1031 = vld [vmem:[%s10 + $0x110] sm:$0xff]
        %v1032 = vld [vmem:[%s10 + $0x118] sm:$0xff]
        %v1033 = vld [vmem:[%s10 + $0x120] sm:$0xff]
        %v1034 = vld [vmem:[%s10 + $0x128] sm:$0xff]
        %v1035 = vld [vmem:[%s10 + $0x130] sm:$0xff]
        %v1036 = vld [vmem:[%s10 + $0x138] sm:$0xff]
        %v1037 = vld [vmem:[%s10 + $0x140] sm:$0xff]
        %v1038 = vld [vmem:[%s10 + $0x148] sm:$0xff]
        %v1039 = vld [vmem:[%s10 + $0x150] sm:$0xff]
        %v1040 = vld [vmem:[%s10 + $0x158] sm:$0xff]
        %v1041 = vld [vmem:[%s10 + $0x160] sm:$0xff]
        %v1042 = vld [vmem:[%s10 + $0x168] sm:$0xff]
        %v1043 = vld [vmem:[%s10 + $0x170] sm:$0xff]
        %v1044 = vld [vmem:[%s10 + $0x178] sm:$0xff]
        %v1045 = vld [vmem:[%s10 + $0x180] sm:$0xff]
        %v1046 = vld [vmem:[%s10 + $0x188] sm:$0xff]
        %v1047 = vld [vmem:[%s11] sm:$0x3]
        %v1049 = vperm.slane %v1047, 0
        %v1050 = vperm.slane %v1047, 1
        %vm1053 = vcmask 588800
        %v1055 = vsel %vm1053, %v996, 0
        %1057 = vmatpush.msra.mxu0 %v1027
        %1058 = vmatpush.msra.mxu0 %v1025
        %1059 = vmatpush.msra.mxu0 %v1023
        %1060 = vmatpush.msra.mxu0 %v1021
        %1061 = vmatpush.msra.mxu0 %v1019
        %1062 = vmatpush.msra.mxu0 %v1017
        %1063 = vmatpush.msra.mxu0 %v1015
        %1064 = vmatpush.msra.mxu0 %v1013
        %1065 = vmatpush.msra.mxu0 %v1011
        %1066 = vmatpush.msra.mxu0 %v1009
        %1067 = vmatpush.msra.mxu0 %v1007
        %1068 = vmatpush.msra.mxu0 %v1005
        %1069 = vmatpush.msra.mxu0 %v1003
        %1070 = vmatpush.msra.mxu0 %v1001
        %1071 = vmatpush.msra.mxu0 %v999
        %1072 = vmatpush.msra.mxu0 %v997
        %1073 = vmatmul.f32.gmra.mxu0 %v995
        %v1074 = vpop.f32.mrf.mxu0
        %v1075 = vadd.f32 %v1049, %v1074
        %1076 = vdwg.mxu0
        %1077 = vmatpush.msra.mxu0 0.0
        %1078 = vmatpush.msra.mxu0 0.0
        %1079 = vmatpush.msra.mxu0 0.0
        %1080 = vmatpush.msra.mxu0 0.0
        %1081 = vmatpush.msra.mxu0 0.0
        %1082 = vmatpush.msra.mxu0 0.0
        %1083 = vmatpush.msra.mxu0 0.0
        %1084 = vmatpush.msra.mxu0 %v1045
        %1085 = vmatpush.msra.mxu0 %v1043
        %1086 = vmatpush.msra.mxu0 %v1041
        %1087 = vmatpush.msra.mxu0 %v1039
        %1088 = vmatpush.msra.mxu0 %v1037
        %1089 = vmatpush.msra.mxu0 %v1035
        %1090 = vmatpush.msra.mxu0 %v1033
        %1091 = vmatpush.msra.mxu0 %v1031
        %1092 = vmatpush.msra.mxu0 %v1029
        %1093 = vmatmul.f32.gmra.mxu0 %v1055
        %v1094 = vpop.f32.mrf.mxu0
        %v1095 = vadd.f32 %v1075, %v1094
        %1096 = vdwg.mxu0
        %1097 = vmatpush.msra.mxu0 %v1028
        %1098 = vmatpush.msra.mxu0 %v1026
        %1099 = vmatpush.msra.mxu0 %v1024
        %1100 = vmatpush.msra.mxu0 %v1022
        %1101 = vmatpush.msra.mxu0 %v1020
        %1102 = vmatpush.msra.mxu0 %v1018
        %1103 = vmatpush.msra.mxu0 %v1016
        %1104 = vmatpush.msra.mxu0 %v1014
        %1105 = vmatpush.msra.mxu0 %v1012
        %1106 = vmatpush.msra.mxu0 %v1010
        %1107 = vmatpush.msra.mxu0 %v1008
        %1108 = vmatpush.msra.mxu0 %v1006
        %1109 = vmatpush.msra.mxu0 %v1004
        %1110 = vmatpush.msra.mxu0 %v1002
        %1111 = vmatpush.msra.mxu0 %v1000
        %1112 = vmatpush.msra.mxu0 %v998
        %1113 = vmatmul.f32.gmra.mxu0 %v995
        %v1114 = vpop.f32.mrf.mxu0
        %v1115 = vadd.f32 %v1050, %v1114
        %1116 = vdwg.mxu0
        %1117 = vmatpush.msra.mxu0 0.0
        %1118 = vmatpush.msra.mxu0 0.0
        %1119 = vmatpush.msra.mxu0 0.0
        %1120 = vmatpush.msra.mxu0 0.0
        %1121 = vmatpush.msra.mxu0 0.0
        %1122 = vmatpush.msra.mxu0 0.0
        %1123 = vmatpush.msra.mxu0 0.0
        %1124 = vmatpush.msra.mxu0 %v1046
        %1125 = vmatpush.msra.mxu0 %v1044
        %1126 = vmatpush.msra.mxu0 %v1042
        %1127 = vmatpush.msra.mxu0 %v1040
        %1128 = vmatpush.msra.mxu0 %v1038
        %1129 = vmatpush.msra.mxu0 %v1036
        %1130 = vmatpush.msra.mxu0 %v1034
        %1131 = vmatpush.msra.mxu0 %v1032
        %1132 = vmatpush.msra.mxu0 %v1030
        %1133 = vmatmul.f32.gmra.mxu0 %v1055
        %v1134 = vpop.f32.mrf.mxu0
        %v1135 = vadd.f32 %v1115, %v1134
        %1136 = vdwg.mxu0
        %v1137 = vmax.f32 %v1095, 0.0
        %v1138 = vmax.f32 %v1135, 0.0
        %v1139 = vld [vmem:[%s12] sm:$0xff]
        %v1140 = vld [vmem:[%s12 + $0x8] sm:$0xff]
        %v1141 = vld [vmem:[%s12 + $0x10] sm:$0xff]
        %v1142 = vld [vmem:[%s12 + $0x18] sm:$0xff]
        %v1143 = vld [vmem:[%s12 + $0x20] sm:$0xff]
        %v1144 = vld [vmem:[%s12 + $0x28] sm:$0xff]
        %v1145 = vld [vmem:[%s12 + $0x30] sm:$0xff]
        %v1146 = vld [vmem:[%s12 + $0x38] sm:$0xff]
        %v1147 = vld [vmem:[%s12 + $0x40] sm:$0xff]
        %v1148 = vld [vmem:[%s12 + $0x48] sm:$0xff]
        %v1149 = vld [vmem:[%s12 + $0x50] sm:$0xff]
        %v1150 = vld [vmem:[%s12 + $0x58] sm:$0xff]
        %v1151 = vld [vmem:[%s12 + $0x60] sm:$0xff]
        %v1152 = vld [vmem:[%s12 + $0x68] sm:$0xff]
        %v1153 = vld [vmem:[%s12 + $0x70] sm:$0xff]
        %v1154 = vld [vmem:[%s12 + $0x78] sm:$0xff]
        %v1155 = vld [vmem:[%s12 + $0x80] sm:$0xff]
        %v1156 = vld [vmem:[%s12 + $0x88] sm:$0xff]
        %v1157 = vld [vmem:[%s12 + $0x90] sm:$0xff]
        %v1158 = vld [vmem:[%s12 + $0x98] sm:$0xff]
        %v1159 = vld [vmem:[%s12 + $0xa0] sm:$0xff]
        %v1160 = vld [vmem:[%s12 + $0xa8] sm:$0xff]
        %v1161 = vld [vmem:[%s12 + $0xb0] sm:$0xff]
        %v1162 = vld [vmem:[%s12 + $0xb8] sm:$0xff]
        %v1163 = vld [vmem:[%s12 + $0xc0] sm:$0xff]
        %v1164 = vld [vmem:[%s13] sm:$0x1]
        %v1166 = vsel %vm1053, %v1138, 0
        %1168 = vmatpush.msra.mxu0 %v1154
        %1169 = vmatpush.msra.mxu0 %v1153
        %1170 = vmatpush.msra.mxu0 %v1152
        %1171 = vmatpush.msra.mxu0 %v1151
        %1172 = vmatpush.msra.mxu0 %v1150
        %1173 = vmatpush.msra.mxu0 %v1149
        %1174 = vmatpush.msra.mxu0 %v1148
        %1175 = vmatpush.msra.mxu0 %v1147
        %1176 = vmatpush.msra.mxu0 %v1146
        %1177 = vmatpush.msra.mxu0 %v1145
        %1178 = vmatpush.msra.mxu0 %v1144
        %1179 = vmatpush.msra.mxu0 %v1143
        %1180 = vmatpush.msra.mxu0 %v1142
        %1181 = vmatpush.msra.mxu0 %v1141
        %1182 = vmatpush.msra.mxu0 %v1140
        %1183 = vmatpush.msra.mxu0 %v1139
        %1184 = vmatmul.f32.gmra.mxu0 %v1137
        %v1185 = vpop.f32.mrf.mxu0
        %v1186 = vadd.f32 %v1164, %v1185
        %1187 = vdwg.mxu0
        %1188 = vmatpush.msra.mxu0 0.0
        %1189 = vmatpush.msra.mxu0 0.0
        %1190 = vmatpush.msra.mxu0 0.0
        %1191 = vmatpush.msra.mxu0 0.0
        %1192 = vmatpush.msra.mxu0 0.0
        %1193 = vmatpush.msra.mxu0 0.0
        %1194 = vmatpush.msra.mxu0 0.0
        %1195 = vmatpush.msra.mxu0 %v1163
        %1196 = vmatpush.msra.mxu0 %v1162
        %1197 = vmatpush.msra.mxu0 %v1161
        %1198 = vmatpush.msra.mxu0 %v1160
        %1199 = vmatpush.msra.mxu0 %v1159
        %1200 = vmatpush.msra.mxu0 %v1158
        %1201 = vmatpush.msra.mxu0 %v1157
        %1202 = vmatpush.msra.mxu0 %v1156
        %1203 = vmatpush.msra.mxu0 %v1155
        %1204 = vmatmul.f32.gmra.mxu0 %v1166
        %v1205 = vpop.f32.mrf.mxu0
        %v1206 = vadd.f32 %v1186, %v1205
        %1207 = vdwg.mxu0
        %vm1208 = vcmask 32768
        %1209 = vst.msk [vmem:[%s459] sm:$0x1] %vm1208, %v1206
        %s1210 = sand.u32 %s335, 1
        %s1211 = scalar_lea.sflag [#allocation3], %s1210
        %s1212 = sand.u32 %s335, 1
        %s1213 = scalar_lea.vmem [#allocation2], %s1212
        // Predicated region
        $region77: #{_lambda_.11} parent=75 // pred_check
          %p1214 = pneg %p345
        $region78: #{_lambda_.11} parent=75 // pred_check_branch
          %1216 = sbr.rel (%p1214) target = $region80
        $region79: #{_lambda_.11} parent=75 // pred_region
          %1218 = vsyncadd %s1211, 0
          %s1219 = scalar_lea.hbm %s14, %s28
          %s1221 = sshll.u32 %s1213, 4
          %s1222 = int_to_ptr.vmem [resolvable:$true] %s1221
          %s1223 = sshll.u32 %s1219, 4
          %s1224 = int_to_ptr.hbm [resolvable:$true] %s1223
          %1226 = dma.vmem_to_hbm [thread:$0]  %s1222, 16, %s1224, %s1211
        $region80: #{_lambda_.11} parent=75 // pred_fallthru
          _
      $region76: #{_lambda_.11} parent=5 // pred_fallthru
        _
      %p1227 = scmp.le.s32.totalorder 2, %s23
      // Predicated region
      $region81: #{_lambda_.11} parent=5 // pred_check
        %p1228 = pneg %p1227
      $region82: #{_lambda_.11} parent=5 // pred_check_branch
        %1230 = sbr.rel (%p1228) target = $region84
      $region83: #{_lambda_.11} parent=5 // pred_region
        %s1231 = ssub.s32 %s23, 2
        // Predicated region
        $region85: #{_lambda_.11} parent=83 // pred_check
          %p1232 = pneg %p351
        $region86: #{_lambda_.11} parent=83 // pred_check_branch
          %1234 = sbr.rel (%p1232) target = $region88
        $region87: #{_lambda_.11} parent=83 // pred_region
          %s1235 = sand.u32 %s336, 1
          %s1236 = scalar_lea.sflag [#allocation3], %s1235
          %s1237 = sand.u32 %s336, 1
          %s1238 = scalar_lea.vmem [#allocation2], %s1237
          %1240 = dma.done %s1236, 16
        $region88: #{_lambda_.11} parent=83 // pred_fallthru
          _
      $region84: #{_lambda_.11} parent=5 // pred_fallthru
        _
    $region6: #{_lambda_.11} parent=1 // loop_footer
      %s27 = sadd.s32 1, %s23
    $region7: #{_lambda_.11} parent=1 // loop_footer_branch
      %22 = sbr.rel target = $region3
    $region8: #{_lambda_.11} parent=1 // loop_exit
      _
    %1241 = vsyncpa [#allocation3], 1
    %s1242 = scalar_lea.sflag [#allocation3], 1
    %1243 = vsyncpa %s1242, 1

</llo_original>
